<compile_context>
chip_gen: v6e
topology: v6e:2x2x1
jax: 0.10.0
libtpu: 0.0.40
codegen_flags: <defaults>
</compile_context>

<pallas_src>
import jax
import jax.numpy as jnp
from jax.experimental import pallas as pl
from jax.experimental.pallas import tpu as pltpu

NOISE_DIM = 100
NOISE_DIM_PAD = 128      # pad K of the noise-part matmul to the MXU depth
EMBED_DIM = 768          # DistilBERT hidden size (CLS embedding)
IMG_SIDE = 64
IMAGE_DIM = IMG_SIDE * IMG_SIDE  # 4096
H1, H2 = 256, 512
TN = 2048                # output-column tile of W3 (4096 / 2048 = 2 column tiles)


def _round_up(x, m):
    return (x + m - 1) // m * m


def generator_kernel(noise_ref, emb_ref,
                     w1n_ref, w1e_ref, b1_ref,
                     w2_ref, b2_ref,
                     w3_ref, b3_ref,
                     out_ref):
    # --- embedding L2-normalization (f32 math; matches torch.norm(dim=1)) ---
    emb = emb_ref[...].astype(jnp.float32)
    inv_norm = jax.lax.rsqrt(jnp.sum(emb * emb, axis=1, keepdims=True))
    emb_n = (emb * inv_norm).astype(jnp.bfloat16)

    # --- Linear(noise_dim+embed_dim -> 256) + ReLU (concat fused as split matmul) ---
    h1 = (jnp.dot(noise_ref[...], w1n_ref[...], preferred_element_type=jnp.float32)
          + jnp.dot(emb_n, w1e_ref[...], preferred_element_type=jnp.float32)
          + b1_ref[...])
    h1 = jnp.maximum(h1, 0.0).astype(jnp.bfloat16)

    # --- Linear(256 -> 512) + ReLU ---
    h2 = jnp.dot(h1, w2_ref[...], preferred_element_type=jnp.float32) + b2_ref[...]
    h2 = jnp.maximum(h2, 0.0).astype(jnp.bfloat16)

    # --- Linear(512 -> 4096), this TN-wide column slice, + Tanh ---
    h3 = jnp.dot(h2, w3_ref[...], preferred_element_type=jnp.float32) + b3_ref[...]
    out_ref[...] = jnp.tanh(h3).astype(out_ref.dtype)


def generator_forward(noise, embedding, params):
    """noise: (B, NOISE_DIM) f32, embedding: (B, EMBED_DIM) f32 -> (B, 1, 64, 64) f32."""
    w1n, w1e, b1, w2, b2, w3, b3 = params
    B = noise.shape[0]

    # Batch tile: MXU M-tile for large batches; pad tiny batches to the bf16
    # sublane tile (16 rows) so casts/MXU feeds avoid masked partial tiles.
    TB = 256 if B >= 256 else _round_up(B, 16)
    B_pad = _round_up(B, TB)

    # Noise: zero-pad features 100 -> 128 (and batch rows); tiny array, cheap.
    noise_p = (jnp.zeros((B_pad, NOISE_DIM_PAD), jnp.bfloat16)
               .at[:B, :NOISE_DIM].set(noise.astype(jnp.bfloat16)))
    # Embedding: pass as bf16 (halves the activation DMA); only pad batch rows
    # when needed (padded rows are ones so the row norm stays finite).
    emb_bf = embedding.astype(jnp.bfloat16)
    if B_pad != B:
        emb_bf = jnp.concatenate(
            [emb_bf, jnp.ones((B_pad - B, EMBED_DIM), jnp.bfloat16)], axis=0)

    # Grid: (W3-column tiles OUTER, batch tiles INNER) so the W3 block index is
    # constant while the batch loop runs -> W3 half stays VMEM-resident.
    grid = (IMAGE_DIM // TN, B_pad // TB)

    flat = pl.pallas_call(
        generator_kernel,
        out_shape=jax.ShapeDtypeStruct((B_pad, IMAGE_DIM), jnp.float32),
        grid_spec=pltpu.PrefetchScalarGridSpec(
            num_scalar_prefetch=0,
            grid=grid,
            in_specs=[
                # batch-tiled activations (bf16)
                pl.BlockSpec((TB, NOISE_DIM_PAD), lambda j, i: (i, 0)),
                pl.BlockSpec((TB, EMBED_DIM), lambda j, i: (i, 0)),
                # small weights: VMEM-resident across all grid steps
                pl.BlockSpec((NOISE_DIM_PAD, H1), lambda j, i: (0, 0)),
                pl.BlockSpec((EMBED_DIM, H1), lambda j, i: (0, 0)),
                pl.BlockSpec((1, H1), lambda j, i: (0, 0)),
                pl.BlockSpec((H1, H2), lambda j, i: (0, 0)),
                pl.BlockSpec((1, H2), lambda j, i: (0, 0)),
                # W3 / b3: column-tiled; block index depends only on the OUTER
                # axis, so each column half is fetched once and then reused.
                pl.BlockSpec((H2, TN), lambda j, i: (0, j)),
                pl.BlockSpec((1, TN), lambda j, i: (0, j)),
            ],
            out_specs=pl.BlockSpec((TB, TN), lambda j, i: (i, j)),
        ),
        compiler_params=pltpu.CompilerParams(
            # All grid points are independent (no cached state), so both axes
            # can be megacore-split; on v7x the 2 column tiles feed both TCs
            # even when the batch is a single tile.
            dimension_semantics=("parallel", "parallel")),
    )(noise_p, emb_bf, w1n, w1e, b1, w2, b2, w3, b3)

    return flat[:B].reshape(B, 1, IMG_SIDE, IMG_SIDE)


def init_params(key):
    """Deterministic parameter init (shapes from Generator.__init__); bf16 weights, f32 biases."""
    ks = jax.random.split(key, 6)
    in1 = NOISE_DIM + EMBED_DIM
    s1 = 1.0 / jnp.sqrt(in1)
    s2 = 1.0 / jnp.sqrt(H1)
    s3 = 1.0 / jnp.sqrt(H2)
    w1 = jax.random.uniform(ks[0], (in1, H1), jnp.float32, -s1, s1)
    b1 = jax.random.uniform(ks[1], (1, H1), jnp.float32, -s1, s1)
    w2 = jax.random.uniform(ks[2], (H1, H2), jnp.float32, -s2, s2)
    b2 = jax.random.uniform(ks[3], (1, H2), jnp.float32, -s2, s2)
    w3 = jax.random.uniform(ks[4], (H2, IMAGE_DIM), jnp.float32, -s3, s3)
    b3 = jax.random.uniform(ks[5], (1, IMAGE_DIM), jnp.float32, -s3, s3)
    # split W1 into the noise-part (zero-padded to 128 rows) and embedding-part
    w1n = jnp.zeros((NOISE_DIM_PAD, H1), jnp.float32).at[:NOISE_DIM].set(w1[:NOISE_DIM])
    w1e = w1[NOISE_DIM:]
    return (w1n.astype(jnp.bfloat16), w1e.astype(jnp.bfloat16), b1,
            w2.astype(jnp.bfloat16), b2,
            w3.astype(jnp.bfloat16), b3)


def reference_forward(noise, embedding, params):
    """Pure-JAX f32 reference mirroring the PyTorch forward (for correctness check)."""
    w1n, w1e, b1, w2, b2, w3, b3 = params
    w1n = w1n.astype(jnp.float32)[:NOISE_DIM]
    w1e = w1e.astype(jnp.float32)
    w2 = w2.astype(jnp.float32)
    w3 = w3.astype(jnp.float32)
    emb_n = embedding / jnp.linalg.norm(embedding, axis=1, keepdims=True)
    x = jnp.concatenate([noise, emb_n], axis=1)
    w1 = jnp.concatenate([w1n, w1e], axis=0)
    h = jax.nn.relu(x @ w1 + b1)
    h = jax.nn.relu(h @ w2 + b2)
    y = jnp.tanh(h @ w3 + b3)
    return y.reshape(-1, 1, IMG_SIDE, IMG_SIDE)


if __name__ == "__main__":
    key = jax.random.PRNGKey(0)
    k_param, k_noise, k_emb = jax.random.split(key, 3)

    B = 2
    params = init_params(k_param)
    noise = jax.random.normal(k_noise, (B, NOISE_DIM), jnp.float32)
    embedding = jax.random.normal(k_emb, (B, EMBED_DIM), jnp.float32)

    out = generator_forward(noise, embedding, params)
    out = jax.block_until_ready(out)

    ref = reference_forward(noise, embedding, params)
    assert out.shape == (B, 1, IMG_SIDE, IMG_SIDE), out.shape
    # bf16 weights/activations (f32 accumulation): loosened tolerance vs the f32 reference.
    max_err = float(jnp.max(jnp.abs(out - ref)))
    assert jnp.allclose(out, ref, atol=3e-2), f"mismatch vs reference, max_err={max_err}"

    print("KERNEL_OK")
</pallas_src>

<mosaic_0001>
module attributes {stable_mosaic.version = 11 : i64} {
  func.func @generator_kernel(%arg0: i32, %arg1: i32, %arg2: memref<16x128xbf16, #tpu.memory_space<vmem>>, %arg3: memref<16x768xbf16, #tpu.memory_space<vmem>>, %arg4: memref<128x256xbf16, #tpu.memory_space<vmem>>, %arg5: memref<768x256xbf16, #tpu.memory_space<vmem>>, %arg6: memref<1x256xf32, #tpu.memory_space<vmem>>, %arg7: memref<256x512xbf16, #tpu.memory_space<vmem>>, %arg8: memref<1x512xf32, #tpu.memory_space<vmem>>, %arg9: memref<512x2048xbf16, #tpu.memory_space<vmem>>, %arg10: memref<1x2048xf32, #tpu.memory_space<vmem>>, %arg11: memref<16x2048xf32, #tpu.memory_space<vmem>>) attributes {dimension_semantics = [#tpu.dimension_semantics<parallel>, #tpu.dimension_semantics<parallel>], iteration_bounds = array<i64: 2, 1>, scalar_prefetch = 0 : i64, scratch_operands = 0 : i64, tpu.core_type = #tpu.core_type<tc>, window_params = [{transform_indices = @transform_0, window_bounds = array<i64: 16, 128>}, {transform_indices = @transform_1, window_bounds = array<i64: 16, 768>}, {pipeline_mode = #tpu.pipeline_mode<synchronous>, transform_indices = @transform_2, window_bounds = array<i64: 128, 256>}, {pipeline_mode = #tpu.pipeline_mode<synchronous>, transform_indices = @transform_3, window_bounds = array<i64: 768, 256>}, {pipeline_mode = #tpu.pipeline_mode<synchronous>, transform_indices = @transform_4, window_bounds = array<i64: 1, 256>}, {pipeline_mode = #tpu.pipeline_mode<synchronous>, transform_indices = @transform_5, window_bounds = array<i64: 256, 512>}, {pipeline_mode = #tpu.pipeline_mode<synchronous>, transform_indices = @transform_6, window_bounds = array<i64: 1, 512>}, {transform_indices = @transform_7, window_bounds = array<i64: 512, 2048>}, {transform_indices = @transform_8, window_bounds = array<i64: 1, 2048>}, {transform_indices = @transform_9, window_bounds = array<i64: 16, 2048>}]} {
    %c0 = arith.constant 0 : index
    %c0_0 = arith.constant 0 : index
    %0 = vector.load %arg3[%c0, %c0_0] : memref<16x768xbf16, #tpu.memory_space<vmem>>, vector<16x768xbf16>
    %1 = arith.extf %0 : vector<16x768xbf16> to vector<16x768xf32>
    %2 = arith.mulf %1, %1 : vector<16x768xf32>
    %cst = arith.constant dense<0.000000e+00> : vector<16xf32>
    %3 = vector.multi_reduction <add>, %2, %cst [1] : vector<16x768xf32> to vector<16xf32>
    %4 = vector.shape_cast %3 : vector<16xf32> to vector<16x1xf32>
    %5 = math.rsqrt %4 : vector<16x1xf32>
    %6 = vector.broadcast %5 : vector<16x1xf32> to vector<16x768xf32>
    %7 = arith.mulf %1, %6 : vector<16x768xf32>
    %8 = arith.truncf %7 : vector<16x768xf32> to vector<16x768xbf16>
    %c0_1 = arith.constant 0 : index
    %c0_2 = arith.constant 0 : index
    %9 = vector.load %arg2[%c0_1, %c0_2] : memref<16x128xbf16, #tpu.memory_space<vmem>>, vector<16x128xbf16>
    %c0_3 = arith.constant 0 : index
    %c0_4 = arith.constant 0 : index
    %10 = vector.load %arg4[%c0_3, %c0_4] : memref<128x256xbf16, #tpu.memory_space<vmem>>, vector<128x256xbf16>
    %cst_5 = arith.constant dense<0.000000e+00> : vector<16x256xf32>
    %11 = tpu.matmul %9, %10, %cst_5 {dimension_numbers = #tpu.dot_dimension_numbers<[1], [0], [0], [1], [0, 0, 1, 1], [], []>} : vector<16x128xbf16>, vector<128x256xbf16>, vector<16x256xf32> -> vector<16x256xf32>
    %c0_6 = arith.constant 0 : index
    %c0_7 = arith.constant 0 : index
    %12 = vector.load %arg5[%c0_6, %c0_7] : memref<768x256xbf16, #tpu.memory_space<vmem>>, vector<768x256xbf16>
    %cst_8 = arith.constant dense<0.000000e+00> : vector<16x256xf32>
    %13 = tpu.matmul %8, %12, %cst_8 {dimension_numbers = #tpu.dot_dimension_numbers<[1], [0], [0], [1], [0, 0, 1, 1], [], []>} : vector<16x768xbf16>, vector<768x256xbf16>, vector<16x256xf32> -> vector<16x256xf32>
    %14 = arith.addf %11, %13 : vector<16x256xf32>
    %c0_9 = arith.constant 0 : index
    %c0_10 = arith.constant 0 : index
    %15 = vector.load %arg6[%c0_9, %c0_10] : memref<1x256xf32, #tpu.memory_space<vmem>>, vector<1x256xf32>
    %16 = vector.broadcast %15 : vector<1x256xf32> to vector<16x256xf32>
    %17 = arith.addf %14, %16 : vector<16x256xf32>
    %cst_11 = arith.constant 0.000000e+00 : f32
    %18 = vector.broadcast %cst_11 : f32 to vector<16x256xf32>
    %19 = arith.maximumf %17, %18 : vector<16x256xf32>
    %20 = arith.truncf %19 : vector<16x256xf32> to vector<16x256xbf16>
    %c0_12 = arith.constant 0 : index
    %c0_13 = arith.constant 0 : index
    %21 = vector.load %arg7[%c0_12, %c0_13] : memref<256x512xbf16, #tpu.memory_space<vmem>>, vector<256x512xbf16>
    %cst_14 = arith.constant dense<0.000000e+00> : vector<16x512xf32>
    %22 = tpu.matmul %20, %21, %cst_14 {dimension_numbers = #tpu.dot_dimension_numbers<[1], [0], [0], [1], [0, 0, 1, 1], [], []>} : vector<16x256xbf16>, vector<256x512xbf16>, vector<16x512xf32> -> vector<16x512xf32>
    %c0_15 = arith.constant 0 : index
    %c0_16 = arith.constant 0 : index
    %23 = vector.load %arg8[%c0_15, %c0_16] : memref<1x512xf32, #tpu.memory_space<vmem>>, vector<1x512xf32>
    %24 = vector.broadcast %23 : vector<1x512xf32> to vector<16x512xf32>
    %25 = arith.addf %22, %24 : vector<16x512xf32>
    %cst_17 = arith.constant 0.000000e+00 : f32
    %26 = vector.broadcast %cst_17 : f32 to vector<16x512xf32>
    %27 = arith.maximumf %25, %26 : vector<16x512xf32>
    %28 = arith.truncf %27 : vector<16x512xf32> to vector<16x512xbf16>
    %c0_18 = arith.constant 0 : index
    %c0_19 = arith.constant 0 : index
    %29 = vector.load %arg9[%c0_18, %c0_19] : memref<512x2048xbf16, #tpu.memory_space<vmem>>, vector<512x2048xbf16>
    %cst_20 = arith.constant dense<0.000000e+00> : vector<16x2048xf32>
    %30 = tpu.matmul %28, %29, %cst_20 {dimension_numbers = #tpu.dot_dimension_numbers<[1], [0], [0], [1], [0, 0, 1, 1], [], []>} : vector<16x512xbf16>, vector<512x2048xbf16>, vector<16x2048xf32> -> vector<16x2048xf32>
    %c0_21 = arith.constant 0 : index
    %c0_22 = arith.constant 0 : index
    %31 = vector.load %arg10[%c0_21, %c0_22] : memref<1x2048xf32, #tpu.memory_space<vmem>>, vector<1x2048xf32>
    %32 = vector.broadcast %31 : vector<1x2048xf32> to vector<16x2048xf32>
    %33 = arith.addf %30, %32 : vector<16x2048xf32>
    %34 = math.tanh %33 : vector<16x2048xf32>
    %c0_23 = arith.constant 0 : index
    %c0_24 = arith.constant 0 : index
    %35 = vector.load %arg11[%c0_23, %c0_24] : memref<16x2048xf32, #tpu.memory_space<vmem>>, vector<16x2048xf32>
    tpu.vector_store %arg11[%c0_23, %c0_24], %34 {strides = array<i32>} : memref<16x2048xf32, #tpu.memory_space<vmem>>, vector<16x2048xf32>,
    return
  }
  func.func @transform_0(%arg0: i32, %arg1: i32) -> (i32, i32) {
    %c0_i32 = arith.constant 0 : i32
    %c0_i32_0 = arith.constant 0 : i32
    return %arg1, %c0_i32 : i32, i32
  }
  func.func @transform_1(%arg0: i32, %arg1: i32) -> (i32, i32) {
    %c0_i32 = arith.constant 0 : i32
    %c0_i32_0 = arith.constant 0 : i32
    return %arg1, %c0_i32 : i32, i32
  }
  func.func @transform_2(%arg0: i32, %arg1: i32) -> (i32, i32) {
    %c0_i32 = arith.constant 0 : i32
    %c0_i32_0 = arith.constant 0 : i32
    %c0_i32_1 = arith.constant 0 : i32
    return %c0_i32, %c0_i32_0 : i32, i32
  }
  func.func @transform_3(%arg0: i32, %arg1: i32) -> (i32, i32) {
    %c0_i32 = arith.constant 0 : i32
    %c0_i32_0 = arith.constant 0 : i32
    %c0_i32_1 = arith.constant 0 : i32
    return %c0_i32, %c0_i32_0 : i32, i32
  }
  func.func @transform_4(%arg0: i32, %arg1: i32) -> (i32, i32) {
    %c0_i32 = arith.constant 0 : i32
    %c0_i32_0 = arith.constant 0 : i32
    %c0_i32_1 = arith.constant 0 : i32
    return %c0_i32, %c0_i32_0 : i32, i32
  }
  func.func @transform_5(%arg0: i32, %arg1: i32) -> (i32, i32) {
    %c0_i32 = arith.constant 0 : i32
    %c0_i32_0 = arith.constant 0 : i32
    %c0_i32_1 = arith.constant 0 : i32
    return %c0_i32, %c0_i32_0 : i32, i32
  }
  func.func @transform_6(%arg0: i32, %arg1: i32) -> (i32, i32) {
    %c0_i32 = arith.constant 0 : i32
    %c0_i32_0 = arith.constant 0 : i32
    %c0_i32_1 = arith.constant 0 : i32
    return %c0_i32, %c0_i32_0 : i32, i32
  }
  func.func @transform_7(%arg0: i32, %arg1: i32) -> (i32, i32) {
    %c0_i32 = arith.constant 0 : i32
    %c0_i32_0 = arith.constant 0 : i32
    return %c0_i32, %arg0 : i32, i32
  }
  func.func @transform_8(%arg0: i32, %arg1: i32) -> (i32, i32) {
    %c0_i32 = arith.constant 0 : i32
    %c0_i32_0 = arith.constant 0 : i32
    return %c0_i32, %arg0 : i32, i32
  }
  func.func @transform_9(%arg0: i32, %arg1: i32) -> (i32, i32) {
    %c0_i32 = arith.constant 0 : i32
    return %arg1, %arg0 : i32, i32
  }
}

</mosaic_0001>

<llo_original>
// kernel: tpu_custom_call.1
$region0: #{tpu_custom_call.1}
  #allocation0 [shape = 'u32[]', space=smem, size = 0x4, offset = 0x4, fixed_abs, tag = 'smem constant byte address 0x4 - core index']
  #allocation1 [shape = 'u32[144,128]{1,0:T(1,128)}', space=vmem, size = 0x12000, scoped, tag = 'internal scratch']
  %s0 = inlined_call_operand.hbm [shape: bf16[16,128], index: 0, kind: input, shape index: {}]
  %s1 = inlined_call_operand.hbm [shape: bf16[16,768], index: 1, kind: input, shape index: {}]
  %s2 = inlined_call_operand.hbm [shape: bf16[128,256], index: 2, kind: input, shape index: {}]
  %s3 = inlined_call_operand.hbm [shape: bf16[768,256], index: 3, kind: input, shape index: {}]
  %s4 = inlined_call_operand.hbm [shape: f32[1,256], index: 4, kind: input, shape index: {}]
  %s5 = inlined_call_operand.hbm [shape: bf16[256,512], index: 5, kind: input, shape index: {}]
  %s6 = inlined_call_operand.hbm [shape: f32[1,512], index: 6, kind: input, shape index: {}]
  %s7 = inlined_call_operand.hbm [shape: bf16[512,4096], index: 7, kind: input, shape index: {}]
  %s8 = inlined_call_operand.hbm [shape: f32[1,4096], index: 8, kind: input, shape index: {}]
  %s9 = inlined_call_operand.hbm [shape: f32[16,4096], index: 9, kind: output, shape index: {}]
  %s10 = sld [smem:[#allocation0]]
  $region105: #{tpu_custom_call.1} parent=0
    _
  %s12 = ssub.s32 1, %s10
  %s13 = scalar_select 0, %s12, %s10
  $region1: #{tpu_custom_call.1} parent=0
    #allocation2 [shape = 'u8[4096]{0}', space=vmem, size = 0x1000, scoped, tag = 'input window, operand 0, single buffered']
    #allocation3 [shape = 's32[2]{0}', space=sflag, size = 0x8, scoped, tag = 'scoped memory for tpu_custom_call.1']
    #allocation4 [shape = 's32[2]{0}', space=sflag, size = 0x8, scoped, tag = 'scoped memory for tpu_custom_call.1']
    #allocation5 [shape = 'u8[24576]{0}', space=vmem, size = 0x6000, scoped, tag = 'input window, operand 1, single buffered']
    #allocation6 [shape = 's32[1]{0}', space=sflag, size = 0x4, scoped, tag = 'scoped memory for tpu_custom_call.1']
    #allocation7 [shape = 'u8[65536]{0}', space=vmem, size = 0x10000, scoped, tag = 'input window, operand 2, single buffered']
    #allocation8 [shape = 'u8[393216]{0}', space=vmem, size = 0x60000, scoped, tag = 'input window, operand 3, single buffered']
    #allocation9 [shape = 's32[1]{0}', space=sflag, size = 0x4, scoped, tag = 'scoped memory for tpu_custom_call.1']
    #allocation10 [shape = 'u8[1024]{0}', space=vmem, size = 0x400, scoped, tag = 'input window, operand 4, single buffered']
    #allocation11 [shape = 'u8[262144]{0}', space=vmem, size = 0x40000, scoped, tag = 'input window, operand 5, single buffered']
    #allocation12 [shape = 's32[1]{0}', space=sflag, size = 0x4, scoped, tag = 'scoped memory for tpu_custom_call.1']
    #allocation13 [shape = 'u8[2048]{0}', space=vmem, size = 0x800, scoped, tag = 'input window, operand 6, single buffered']
    #allocation14 [shape = 'u8[4194304]{0}', space=vmem, size = 0x400000, scoped, tag = 'input window, operand 7']
    #allocation15 [shape = 's32[2]{0}', space=sflag, size = 0x8, scoped, tag = 'scoped memory for tpu_custom_call.1']
    #allocation16 [shape = 'u8[16384]{0}', space=vmem, size = 0x4000, scoped, tag = 'input window, operand 8']
    #allocation17 [shape = 'u8[262144]{0}', space=vmem, size = 0x40000, scoped, tag = 'output window, operand 0']
    %14 = vsyncpa [#allocation3], 0
    %15 = vsyncpa [#allocation6], 0
    %16 = vsyncpa [#allocation9], 0
    %17 = vsyncpa [#allocation12], 0
    %18 = vsyncpa [#allocation15], 0
    %s19 = scalar_lea.sflag [#allocation15], 1
    %20 = vsyncpa %s19, 0
    %21 = vsyncpa [#allocation4], 0
    %s22 = scalar_lea.sflag [#allocation4], 1
    %23 = vsyncpa %s22, 0
    loop: start=0, step=1, limit=4
    $region2: #{tpu_custom_call.1} parent=1 // loop_pre_header
      _
    $region3: #{tpu_custom_call.1} parent=1 // loop_header
      %s25 = sphi 0, %s29
      %p26 = scmp.ge.s32.totalorder %s25, 4
      %s32 = sphi 0, %s44
      %s33 = sphi 0, %s40
      %s34 = sphi 0, %s32
      %s35 = sphi 0, %s33
      %s36 = sphi 0, %s34
      %s37 = sphi 0, %s35
      %s47 = sphi 0, %s49
      %s50 = sphi 0, %s47
      %s51 = sphi 0, %s50
      %s67 = sphi 0, %s51
      %s73 = sphi 0, %s75
      %s76 = sphi 0, %s73
      %s77 = sphi 0, %s76
      %s93 = sphi 0, %s77
      %s97 = sphi 0, %s97
      %s99 = sphi 0, %s97
      %s100 = sphi 0, %s99
      %s114 = sphi 0, %s100
      %s118 = sphi 0, %s118
      %s120 = sphi 0, %s118
      %s121 = sphi 0, %s120
      %s135 = sphi 0, %s121
      %s139 = sphi 0, %s139
      %s141 = sphi 0, %s139
      %s142 = sphi 0, %s141
      %s156 = sphi 0, %s142
      %s160 = sphi 0, %s160
      %s162 = sphi 0, %s160
      %s163 = sphi 0, %s162
      %s177 = sphi 0, %s163
      %s181 = sphi 0, %s181
      %s183 = sphi 0, %s181
      %s184 = sphi 0, %s183
      %s198 = sphi 0, %s184
      %s204 = sphi 0, %s206
      %s207 = sphi 0, %s204
      %s208 = sphi 0, %s207
      %s224 = sphi 0, %s208
      %s230 = sphi 0, %s232
      %s233 = sphi 0, %s230
      %s234 = sphi 0, %s233
      %s250 = sphi 0, %s234
      %s258 = sphi 0, %s260
      %s261 = sphi 0, %s258
      %s262 = sphi 0, %s261
      %s278 = sphi 0, %s262
    $region4: #{tpu_custom_call.1} parent=1 // loop_header_branch
      %28 = sbr.rel (%p26) target = $region8
    $region5: #{tpu_custom_call.1} parent=1 // loop_body
      %s30 = ssub.s32 %s25, 1
      %s31 = ssub.s32 %s25, 2
      %s38 = sadd.s32 1, %s33
      %p39 = scmp.ge.s32.totalorder %s38, 1
      %s40 = scalar_select %p39, 0, %s38
      %s41 = sadd.s32 1, %s32
      %s42 = scalar_select %p39, %s41, %s32
      %p43 = scmp.ge.s32.totalorder %s42, 2
      %s44 = scalar_select %p43, 0, %s42
      %s45 = ssub.s32 %s33, %s40
      %p46 = scmp.eq.s32.totalorder %s45, 0
      %s48 = sadd.s32 %s47, 1
      %s49 = scalar_select %p46, %s47, %s48
      %p52 = pneg %p46
      %p53 = scmp.eq.s32.totalorder %s25, 1
      %p54 = por %p52, %p53
      %p55 = scmp.ne.s32.totalorder %s47, %s50
      %p56 = scmp.eq.s32.totalorder %s25, 0
      %p57 = por %p55, %p56
      %p58 = scmp.ne.s32.totalorder %s47, %s50
      %p59 = scmp.eq.s32.totalorder %s30, 1
      %p60 = por %p58, %p59
      %p61 = scmp.ne.s32.totalorder %s50, %s51
      %p62 = scmp.eq.s32.totalorder %s30, 0
      %p63 = por %p61, %p62
      %p64 = scmp.ne.s32.totalorder %s50, %s51
      %p65 = scmp.eq.s32.totalorder %s31, 1
      %p66 = por %p64, %p65
      %p68 = scmp.ne.s32.totalorder %s51, %s67
      %p69 = scmp.eq.s32.totalorder %s31, 0
      %p70 = por %p68, %p69
      %s71 = ssub.s32 %s33, %s40
      %p72 = scmp.eq.s32.totalorder %s71, 0
      %s74 = sadd.s32 %s73, 1
      %s75 = scalar_select %p72, %s73, %s74
      %p78 = pneg %p72
      %p79 = scmp.eq.s32.totalorder %s25, 1
      %p80 = por %p78, %p79
      %p81 = scmp.ne.s32.totalorder %s73, %s76
      %p82 = scmp.eq.s32.totalorder %s25, 0
      %p83 = por %p81, %p82
      %p84 = scmp.ne.s32.totalorder %s73, %s76
      %p85 = scmp.eq.s32.totalorder %s30, 1
      %p86 = por %p84, %p85
      %p87 = scmp.ne.s32.totalorder %s76, %s77
      %p88 = scmp.eq.s32.totalorder %s30, 0
      %p89 = por %p87, %p88
      %p90 = scmp.ne.s32.totalorder %s76, %s77
      %p91 = scmp.eq.s32.totalorder %s31, 1
      %p92 = por %p90, %p91
      %p94 = scmp.ne.s32.totalorder %s77, %s93
      %p95 = scmp.eq.s32.totalorder %s31, 0
      %p96 = por %p94, %p95
      %s98 = sadd.s32 %s97, 1
      %p101 = scmp.eq.s32.totalorder %s25, 1
      %p102 = scmp.ne.s32.totalorder %s97, %s99
      %p103 = scmp.eq.s32.totalorder %s25, 0
      %p104 = por %p102, %p103
      %p105 = scmp.ne.s32.totalorder %s97, %s99
      %p106 = scmp.eq.s32.totalorder %s30, 1
      %p107 = por %p105, %p106
      %p108 = scmp.ne.s32.totalorder %s99, %s100
      %p109 = scmp.eq.s32.totalorder %s30, 0
      %p110 = por %p108, %p109
      %p111 = scmp.ne.s32.totalorder %s99, %s100
      %p112 = scmp.eq.s32.totalorder %s31, 1
      %p113 = por %p111, %p112
      %p115 = scmp.ne.s32.totalorder %s100, %s114
      %p116 = scmp.eq.s32.totalorder %s31, 0
      %p117 = por %p115, %p116
      %s119 = sadd.s32 %s118, 1
      %p122 = scmp.eq.s32.totalorder %s25, 1
      %p123 = scmp.ne.s32.totalorder %s118, %s120
      %p124 = scmp.eq.s32.totalorder %s25, 0
      %p125 = por %p123, %p124
      %p126 = scmp.ne.s32.totalorder %s118, %s120
      %p127 = scmp.eq.s32.totalorder %s30, 1
      %p128 = por %p126, %p127
      %p129 = scmp.ne.s32.totalorder %s120, %s121
      %p130 = scmp.eq.s32.totalorder %s30, 0
      %p131 = por %p129, %p130
      %p132 = scmp.ne.s32.totalorder %s120, %s121
      %p133 = scmp.eq.s32.totalorder %s31, 1
      %p134 = por %p132, %p133
      %p136 = scmp.ne.s32.totalorder %s121, %s135
      %p137 = scmp.eq.s32.totalorder %s31, 0
      %p138 = por %p136, %p137
      %s140 = sadd.s32 %s139, 1
      %p143 = scmp.eq.s32.totalorder %s25, 1
      %p144 = scmp.ne.s32.totalorder %s139, %s141
      %p145 = scmp.eq.s32.totalorder %s25, 0
      %p146 = por %p144, %p145
      %p147 = scmp.ne.s32.totalorder %s139, %s141
      %p148 = scmp.eq.s32.totalorder %s30, 1
      %p149 = por %p147, %p148
      %p150 = scmp.ne.s32.totalorder %s141, %s142
      %p151 = scmp.eq.s32.totalorder %s30, 0
      %p152 = por %p150, %p151
      %p153 = scmp.ne.s32.totalorder %s141, %s142
      %p154 = scmp.eq.s32.totalorder %s31, 1
      %p155 = por %p153, %p154
      %p157 = scmp.ne.s32.totalorder %s142, %s156
      %p158 = scmp.eq.s32.totalorder %s31, 0
      %p159 = por %p157, %p158
      %s161 = sadd.s32 %s160, 1
      %p164 = scmp.eq.s32.totalorder %s25, 1
      %p165 = scmp.ne.s32.totalorder %s160, %s162
      %p166 = scmp.eq.s32.totalorder %s25, 0
      %p167 = por %p165, %p166
      %p168 = scmp.ne.s32.totalorder %s160, %s162
      %p169 = scmp.eq.s32.totalorder %s30, 1
      %p170 = por %p168, %p169
      %p171 = scmp.ne.s32.totalorder %s162, %s163
      %p172 = scmp.eq.s32.totalorder %s30, 0
      %p173 = por %p171, %p172
      %p174 = scmp.ne.s32.totalorder %s162, %s163
      %p175 = scmp.eq.s32.totalorder %s31, 1
      %p176 = por %p174, %p175
      %p178 = scmp.ne.s32.totalorder %s163, %s177
      %p179 = scmp.eq.s32.totalorder %s31, 0
      %p180 = por %p178, %p179
      %s182 = sadd.s32 %s181, 1
      %p185 = scmp.eq.s32.totalorder %s25, 1
      %p186 = scmp.ne.s32.totalorder %s181, %s183
      %p187 = scmp.eq.s32.totalorder %s25, 0
      %p188 = por %p186, %p187
      %p189 = scmp.ne.s32.totalorder %s181, %s183
      %p190 = scmp.eq.s32.totalorder %s30, 1
      %p191 = por %p189, %p190
      %p192 = scmp.ne.s32.totalorder %s183, %s184
      %p193 = scmp.eq.s32.totalorder %s30, 0
      %p194 = por %p192, %p193
      %p195 = scmp.ne.s32.totalorder %s183, %s184
      %p196 = scmp.eq.s32.totalorder %s31, 1
      %p197 = por %p195, %p196
      %p199 = scmp.ne.s32.totalorder %s184, %s198
      %p200 = scmp.eq.s32.totalorder %s31, 0
      %p201 = por %p199, %p200
      %s202 = ssub.s32 %s32, %s44
      %p203 = scmp.eq.s32.totalorder %s202, 0
      %s205 = sadd.s32 %s204, 1
      %s206 = scalar_select %p203, %s204, %s205
      %p209 = pneg %p203
      %p210 = scmp.eq.s32.totalorder %s25, 1
      %p211 = por %p209, %p210
      %p212 = scmp.ne.s32.totalorder %s204, %s207
      %p213 = scmp.eq.s32.totalorder %s25, 0
      %p214 = por %p212, %p213
      %p215 = scmp.ne.s32.totalorder %s204, %s207
      %p216 = scmp.eq.s32.totalorder %s30, 1
      %p217 = por %p215, %p216
      %p218 = scmp.ne.s32.totalorder %s207, %s208
      %p219 = scmp.eq.s32.totalorder %s30, 0
      %p220 = por %p218, %p219
      %p221 = scmp.ne.s32.totalorder %s207, %s208
      %p222 = scmp.eq.s32.totalorder %s31, 1
      %p223 = por %p221, %p222
      %p225 = scmp.ne.s32.totalorder %s208, %s224
      %p226 = scmp.eq.s32.totalorder %s31, 0
      %p227 = por %p225, %p226
      %s228 = ssub.s32 %s32, %s44
      %p229 = scmp.eq.s32.totalorder %s228, 0
      %s231 = sadd.s32 %s230, 1
      %s232 = scalar_select %p229, %s230, %s231
      %p235 = pneg %p229
      %p236 = scmp.eq.s32.totalorder %s25, 1
      %p237 = por %p235, %p236
      %p238 = scmp.ne.s32.totalorder %s230, %s233
      %p239 = scmp.eq.s32.totalorder %s25, 0
      %p240 = por %p238, %p239
      %p241 = scmp.ne.s32.totalorder %s230, %s233
      %p242 = scmp.eq.s32.totalorder %s30, 1
      %p243 = por %p241, %p242
      %p244 = scmp.ne.s32.totalorder %s233, %s234
      %p245 = scmp.eq.s32.totalorder %s30, 0
      %p246 = por %p244, %p245
      %p247 = scmp.ne.s32.totalorder %s233, %s234
      %p248 = scmp.eq.s32.totalorder %s31, 1
      %p249 = por %p247, %p248
      %p251 = scmp.ne.s32.totalorder %s234, %s250
      %p252 = scmp.eq.s32.totalorder %s31, 0
      %p253 = por %p251, %p252
      %s254 = ssub.s32 %s33, %s40
      %s255 = ssub.s32 %s32, %s44
      %s256 = sor.u32 %s254, %s255
      %p257 = scmp.eq.s32.totalorder %s256, 0
      %s259 = sadd.s32 %s258, 1
      %s260 = scalar_select %p257, %s258, %s259
      %p263 = pneg %p257
      %p264 = scmp.eq.s32.totalorder %s25, 1
      %p265 = por %p263, %p264
      %p266 = scmp.ne.s32.totalorder %s258, %s261
      %p267 = scmp.eq.s32.totalorder %s25, 0
      %p268 = por %p266, %p267
      %p269 = scmp.ne.s32.totalorder %s258, %s261
      %p270 = scmp.eq.s32.totalorder %s30, 1
      %p271 = por %p269, %p270
      %p272 = scmp.ne.s32.totalorder %s261, %s262
      %p273 = scmp.eq.s32.totalorder %s30, 0
      %p274 = por %p272, %p273
      %p275 = scmp.ne.s32.totalorder %s261, %s262
      %p276 = scmp.eq.s32.totalorder %s31, 1
      %p277 = por %p275, %p276
      %p279 = scmp.ne.s32.totalorder %s262, %s278
      %p280 = scmp.eq.s32.totalorder %s31, 0
      %p281 = por %p279, %p280
      %p282 = scmp.le.s32.totalorder 1, %s25
      %p283 = scmp.lt.s32.totalorder %s25, 3
      %p284 = pnand %p282, %p283
      %p285 = pneg %p284
      // Predicated region
      $region9: #{tpu_custom_call.1} parent=5 // pred_check
        _
      $region10: #{tpu_custom_call.1} parent=5 // pred_check_branch
        %287 = sbr.rel (%p284) target = $region12
      $region11: #{tpu_custom_call.1} parent=5 // pred_region
        %s288 = ssub.s32 %s25, 1
        // Predicated region
        $region13: #{tpu_custom_call.1} parent=11 // pred_check
          %p289 = pneg %p63
        $region14: #{tpu_custom_call.1} parent=11 // pred_check_branch
          %291 = sbr.rel (%p289) target = $region16
        $region15: #{tpu_custom_call.1} parent=11 // pred_region
          %s292 = smul.u32 2, %s35
          %s294 = ssub.s32 128, 128
          %295 = vsyncadd [#allocation3], %s294
          %s296 = smul.addr %s292, 64
          %s297 = scalar_lea.hbm %s0, %s296
          %s298 = sshll.u32 [#allocation2], 4
          %s299 = int_to_ptr.vmem [resolvable:$true] %s298
          %304 = dma.hbm_to_vmem [thread:$0]  %s297, 128, %s299, [#allocation3], 64, 64, 4
        $region16: #{tpu_custom_call.1} parent=11 // pred_fallthru
          _
        // Predicated region
        $region17: #{tpu_custom_call.1} parent=11 // pred_check
          %p305 = pneg %p89
        $region18: #{tpu_custom_call.1} parent=11 // pred_check_branch
          %307 = sbr.rel (%p305) target = $region20
        $region19: #{tpu_custom_call.1} parent=11 // pred_region
          %s308 = smul.u32 2, %s35
          %s310 = ssub.s32 768, 768
          %311 = vsyncadd [#allocation6], %s310
          %s312 = smul.addr %s308, 6
          %s313 = smul.addr %s312, 64
          %s314 = scalar_lea.hbm %s1, %s313
          %s315 = sshll.u32 [#allocation5], 4
          %s316 = int_to_ptr.vmem [resolvable:$true] %s315
          %321 = dma.hbm_to_vmem [thread:$0]  %s314, 768, %s316, [#allocation6], 384, 384, 24
        $region20: #{tpu_custom_call.1} parent=11 // pred_fallthru
          _
        // Predicated region
        $region21: #{tpu_custom_call.1} parent=11 // pred_check
          %p322 = pneg %p110
        $region22: #{tpu_custom_call.1} parent=11 // pred_check_branch
          %324 = sbr.rel (%p322) target = $region24
        $region23: #{tpu_custom_call.1} parent=11 // pred_region
          %s326 = ssub.s32 2048, 2048
          %327 = vsyncadd [#allocation6], %s326
          %s328 = sshll.u32 [#allocation7], 4
          %s329 = int_to_ptr.vmem [resolvable:$true] %s328
          %334 = dma.hbm_to_vmem [thread:$0]  %s2, 2048, %s329, [#allocation6], 128, 128, 8
        $region24: #{tpu_custom_call.1} parent=11 // pred_fallthru
          _
        // Predicated region
        $region25: #{tpu_custom_call.1} parent=11 // pred_check
          %p335 = pneg %p131
        $region26: #{tpu_custom_call.1} parent=11 // pred_check_branch
          %337 = sbr.rel (%p335) target = $region28
        $region27: #{tpu_custom_call.1} parent=11 // pred_region
          %s339 = ssub.s32 12288, 12288
          %340 = vsyncadd [#allocation9], %s339
          %s341 = sshll.u32 [#allocation8], 4
          %s342 = int_to_ptr.vmem [resolvable:$true] %s341
          %347 = dma.hbm_to_vmem [thread:$0]  %s3, 12288, %s342, [#allocation9], 128, 128, 8
        $region28: #{tpu_custom_call.1} parent=11 // pred_fallthru
          _
        // Predicated region
        $region29: #{tpu_custom_call.1} parent=11 // pred_check
          %p348 = pneg %p152
        $region30: #{tpu_custom_call.1} parent=11 // pred_check_branch
          %350 = sbr.rel (%p348) target = $region32
        $region31: #{tpu_custom_call.1} parent=11 // pred_region
          %s352 = ssub.s32 32, 32
          %353 = vsyncadd [#allocation9], %s352
          %s355 = sshll.u32 [#allocation10], 4
          %s356 = int_to_ptr.vmem [resolvable:$true] %s355
          %358 = dma.hbm_to_vmem [thread:$0]  %s4, 32, %s356, [#allocation9]
        $region32: #{tpu_custom_call.1} parent=11 // pred_fallthru
          _
        // Predicated region
        $region33: #{tpu_custom_call.1} parent=11 // pred_check
          %p359 = pneg %p173
        $region34: #{tpu_custom_call.1} parent=11 // pred_check_branch
          %361 = sbr.rel (%p359) target = $region36
        $region35: #{tpu_custom_call.1} parent=11 // pred_region
          %s363 = ssub.s32 8192, 8192
          %364 = vsyncadd [#allocation12], %s363
          %s365 = sshll.u32 [#allocation11], 4
          %s366 = int_to_ptr.vmem [resolvable:$true] %s365
          %371 = dma.hbm_to_vmem [thread:$0]  %s5, 8192, %s366, [#allocation12], 256, 256, 16
        $region36: #{tpu_custom_call.1} parent=11 // pred_fallthru
          _
        // Predicated region
        $region37: #{tpu_custom_call.1} parent=11 // pred_check
          %p372 = pneg %p194
        $region38: #{tpu_custom_call.1} parent=11 // pred_check_branch
          %374 = sbr.rel (%p372) target = $region40
        $region39: #{tpu_custom_call.1} parent=11 // pred_region
          %s376 = ssub.s32 64, 64
          %377 = vsyncadd [#allocation12], %s376
          %s379 = sshll.u32 [#allocation13], 4
          %s380 = int_to_ptr.vmem [resolvable:$true] %s379
          %382 = dma.hbm_to_vmem [thread:$0]  %s6, 64, %s380, [#allocation12]
        $region40: #{tpu_custom_call.1} parent=11 // pred_fallthru
          _
      $region12: #{tpu_custom_call.1} parent=5 // pred_fallthru
        _
      %p383 = scmp.lt.s32.totalorder %s25, 2
      // Predicated region
      $region41: #{tpu_custom_call.1} parent=5 // pred_check
        %p384 = pneg %p383
      $region42: #{tpu_custom_call.1} parent=5 // pred_check_branch
        %386 = sbr.rel (%p384) target = $region44
      $region43: #{tpu_custom_call.1} parent=5 // pred_region
        // Predicated region
        $region45: #{tpu_custom_call.1} parent=43 // pred_check
          %p387 = pneg %p214
        $region46: #{tpu_custom_call.1} parent=43 // pred_check_branch
          %389 = sbr.rel (%p387) target = $region48
        $region47: #{tpu_custom_call.1} parent=43 // pred_region
          %s390 = sand.u32 %s25, 1
          %s391 = scalar_lea.sflag [#allocation15], %s390
          %s392 = sand.u32 %s204, 1
          %s393 = smul.addr %s392, 4096
          %s394 = scalar_lea.vmem [#allocation14], %s393
          %s395 = smul.u32 16, %s32
          %s397 = ssub.s32 65536, 65536
          %398 = vsyncadd %s391, %s397
          %s399 = smul.addr %s395, 64
          %s400 = scalar_lea.hbm %s7, %s399
          %s401 = sshll.u32 %s394, 4
          %s402 = int_to_ptr.vmem [resolvable:$true] %s401
          %407 = dma.hbm_to_vmem [thread:$0]  %s400, 65536, %s402, %s391, 2048, 1024, 64
        $region48: #{tpu_custom_call.1} parent=43 // pred_fallthru
          _
        // Predicated region
        $region49: #{tpu_custom_call.1} parent=43 // pred_check
          %p408 = pneg %p240
        $region50: #{tpu_custom_call.1} parent=43 // pred_check_branch
          %410 = sbr.rel (%p408) target = $region52
        $region51: #{tpu_custom_call.1} parent=43 // pred_region
          %s411 = sand.u32 %s25, 1
          %s412 = scalar_lea.sflag [#allocation15], %s411
          %s413 = sand.u32 %s230, 1
          %s414 = smul.addr %s413, 16
          %s415 = scalar_lea.vmem [#allocation16], %s414
          %s416 = smul.u32 16, %s32
          %s418 = ssub.s32 256, 256
          %419 = vsyncadd %s412, %s418
          %s420 = smul.addr %s416, 16
          %s421 = scalar_lea.hbm %s8, %s420
          %s423 = sshll.u32 %s415, 4
          %s424 = int_to_ptr.vmem [resolvable:$true] %s423
          %426 = dma.hbm_to_vmem [thread:$0]  %s421, 256, %s424, %s412
        $region52: #{tpu_custom_call.1} parent=43 // pred_fallthru
          _
      $region44: #{tpu_custom_call.1} parent=5 // pred_fallthru
        _
      %p427 = scmp.le.s32.totalorder 1, %s25
      %p428 = scmp.lt.s32.totalorder %s25, 3
      %p429 = pnand %p427, %p428
      %p430 = pneg %p429
      // Predicated region
      $region53: #{tpu_custom_call.1} parent=5 // pred_check
        _
      $region54: #{tpu_custom_call.1} parent=5 // pred_check_branch
        %432 = sbr.rel (%p429) target = $region56
      $region55: #{tpu_custom_call.1} parent=5 // pred_region
        %s433 = ssub.s32 %s25, 1
        // Predicated region
        $region57: #{tpu_custom_call.1} parent=55 // pred_check
          %p434 = pneg %p63
        $region58: #{tpu_custom_call.1} parent=55 // pred_check_branch
          %436 = sbr.rel (%p434) target = $region60
        $region59: #{tpu_custom_call.1} parent=55 // pred_region
          %437 = dma.done [#allocation3], 128
        $region60: #{tpu_custom_call.1} parent=55 // pred_fallthru
          _
        // Predicated region
        $region61: #{tpu_custom_call.1} parent=55 // pred_check
          %p438 = pneg %p89
        $region62: #{tpu_custom_call.1} parent=55 // pred_check_branch
          %440 = sbr.rel (%p438) target = $region64
        $region63: #{tpu_custom_call.1} parent=55 // pred_region
          %441 = dma.done [#allocation6], 768
        $region64: #{tpu_custom_call.1} parent=55 // pred_fallthru
          _
        // Predicated region
        $region65: #{tpu_custom_call.1} parent=55 // pred_check
          %p442 = pneg %p110
        $region66: #{tpu_custom_call.1} parent=55 // pred_check_branch
          %444 = sbr.rel (%p442) target = $region68
        $region67: #{tpu_custom_call.1} parent=55 // pred_region
          %445 = dma.done [#allocation6], 2048
        $region68: #{tpu_custom_call.1} parent=55 // pred_fallthru
          _
        // Predicated region
        $region69: #{tpu_custom_call.1} parent=55 // pred_check
          %p446 = pneg %p131
        $region70: #{tpu_custom_call.1} parent=55 // pred_check_branch
          %448 = sbr.rel (%p446) target = $region72
        $region71: #{tpu_custom_call.1} parent=55 // pred_region
          %449 = dma.done [#allocation9], 12288
        $region72: #{tpu_custom_call.1} parent=55 // pred_fallthru
          _
        // Predicated region
        $region73: #{tpu_custom_call.1} parent=55 // pred_check
          %p450 = pneg %p152
        $region74: #{tpu_custom_call.1} parent=55 // pred_check_branch
          %452 = sbr.rel (%p450) target = $region76
        $region75: #{tpu_custom_call.1} parent=55 // pred_region
          %453 = dma.done [#allocation9], 32
        $region76: #{tpu_custom_call.1} parent=55 // pred_fallthru
          _
        // Predicated region
        $region77: #{tpu_custom_call.1} parent=55 // pred_check
          %p454 = pneg %p173
        $region78: #{tpu_custom_call.1} parent=55 // pred_check_branch
          %456 = sbr.rel (%p454) target = $region80
        $region79: #{tpu_custom_call.1} parent=55 // pred_region
          %457 = dma.done [#allocation12], 8192
        $region80: #{tpu_custom_call.1} parent=55 // pred_fallthru
          _
        // Predicated region
        $region81: #{tpu_custom_call.1} parent=55 // pred_check
          %p458 = pneg %p194
        $region82: #{tpu_custom_call.1} parent=55 // pred_check_branch
          %460 = sbr.rel (%p458) target = $region84
        $region83: #{tpu_custom_call.1} parent=55 // pred_region
          %461 = dma.done [#allocation12], 64
        $region84: #{tpu_custom_call.1} parent=55 // pred_fallthru
          _
        %s462 = sand.u32 %s30, 1
        %s463 = scalar_lea.sflag [#allocation15], %s462
        %s464 = sand.u32 %s207, 1
        %s465 = smul.addr %s464, 4096
        %s466 = scalar_lea.vmem [#allocation14], %s465
        // Predicated region
        $region85: #{tpu_custom_call.1} parent=55 // pred_check
          %p467 = pneg %p220
        $region86: #{tpu_custom_call.1} parent=55 // pred_check_branch
          %469 = sbr.rel (%p467) target = $region88
        $region87: #{tpu_custom_call.1} parent=55 // pred_region
          %470 = dma.done %s463, 65536
        $region88: #{tpu_custom_call.1} parent=55 // pred_fallthru
          _
        %s471 = sand.u32 %s30, 1
        %s472 = scalar_lea.sflag [#allocation15], %s471
        %s473 = sand.u32 %s233, 1
        %s474 = smul.addr %s473, 16
        %s475 = scalar_lea.vmem [#allocation16], %s474
        // Predicated region
        $region89: #{tpu_custom_call.1} parent=55 // pred_check
          %p476 = pneg %p246
        $region90: #{tpu_custom_call.1} parent=55 // pred_check_branch
          %478 = sbr.rel (%p476) target = $region92
        $region91: #{tpu_custom_call.1} parent=55 // pred_region
          %479 = dma.done %s472, 256
        $region92: #{tpu_custom_call.1} parent=55 // pred_fallthru
          _
        %p480 = pneg %p63
        %p481 = pneg %p60
        %p482 = pneg %p89
        %p483 = pneg %p86
        %p484 = pneg %p110
        %p485 = pneg %p107
        %p486 = pneg %p131
        %p487 = pneg %p128
        %p488 = pneg %p152
        %p489 = pneg %p149
        %p490 = pneg %p173
        %p491 = pneg %p170
        %p492 = pneg %p194
        %p493 = pneg %p191
        %s494 = sand.u32 %s30, 1
        %s495 = scalar_lea.sflag [#allocation15], %s494
        %s496 = sand.u32 %s207, 1
        %s497 = smul.addr %s496, 4096
        %s498 = scalar_lea.vmem [#allocation14], %s497
        %p499 = pneg %p220
        %p500 = pneg %p217
        %s501 = sand.u32 %s30, 1
        %s502 = scalar_lea.sflag [#allocation15], %s501
        %s503 = sand.u32 %s233, 1
        %s504 = smul.addr %s503, 16
        %s505 = scalar_lea.vmem [#allocation16], %s504
        %p506 = pneg %p246
        %p507 = pneg %p243
        %p508 = pneg %p274
        %p509 = pneg %p271
        %s510 = sand.u32 %s261, 1
        %s511 = scalar_lea.sflag [#allocation4], %s510
        %s512 = sand.u32 %s261, 1
        %s513 = smul.addr %s512, 256
        %s514 = scalar_lea.vmem [#allocation17], %s513
        %s515 = smul.u32 2, %s35
        %s516 = smul.u32 2, %s35
        %s517 = smul.u32 16, %s34
        %s518 = smul.u32 16, %s34
        %s519 = smul.u32 2, %s35
        %s520 = smul.u32 16, %s34
        %v522 = vld [vmem:[#allocation5] sm:$0xff]
        %v523 = vld [vmem:[#allocation5 + $0x8] sm:$0xff]
        %v524 = vld [vmem:[#allocation5 + $0x10] sm:$0xff]
        %v525 = vld [vmem:[#allocation5 + $0x18] sm:$0xff]
        %v526 = vld [vmem:[#allocation5 + $0x20] sm:$0xff]
        %v527 = vld [vmem:[#allocation5 + $0x28] sm:$0xff]
        %v528 = vunpack.c.l.bf16 %v522
        %v529 = vunpack.c.h.bf16 %v522
        %v530 = vunpack.c.l.bf16 %v523
        %v531 = vunpack.c.h.bf16 %v523
        %v532 = vunpack.c.l.bf16 %v524
        %v533 = vunpack.c.h.bf16 %v524
        %v534 = vunpack.c.l.bf16 %v525
        %v535 = vunpack.c.h.bf16 %v525
        %v536 = vunpack.c.l.bf16 %v526
        %v537 = vunpack.c.h.bf16 %v526
        %v538 = vunpack.c.l.bf16 %v527
        %v539 = vunpack.c.h.bf16 %v527
        %v540 = vmul.f32 %v528, %v528
        %v541 = vmul.f32 %v529, %v529
        %v542 = vmul.f32 %v530, %v530
        %v543 = vmul.f32 %v531, %v531
        %v544 = vmul.f32 %v532, %v532
        %v545 = vmul.f32 %v533, %v533
        %v546 = vmul.f32 %v534, %v534
        %v547 = vmul.f32 %v535, %v535
        %v548 = vmul.f32 %v536, %v536
        %v549 = vmul.f32 %v537, %v537
        %v550 = vmul.f32 %v538, %v538
        %v551 = vmul.f32 %v539, %v539
        %v552 = vadd.f32 %v540, %v541
        %v553 = vadd.f32 %v552, %v542
        %v554 = vadd.f32 %v553, %v543
        %v555 = vadd.f32 %v554, %v544
        %v556 = vadd.f32 %v555, %v545
        %557 = vadd.xlane.f32.xlu0 %v556
        %v558 = vpop.xlane.xlu0 %557
        %v559 = vadd.f32 %v546, %v547
        %v560 = vadd.f32 %v559, %v548
        %v561 = vadd.f32 %v560, %v549
        %v562 = vadd.f32 %v561, %v550
        %v563 = vadd.f32 %v562, %v551
        %564 = vadd.xlane.f32.xlu0 %v563
        %v565 = vpop.xlane.xlu0 %564
        %v566 = vrsqrt.pop %v558
        %v567 = vrsqrt.pop %v565
        %v568 = vmul.f32 %v528, %v566
        %v569 = vmul.f32 %v529, %v566
        %v570 = vmul.f32 %v530, %v566
        %v571 = vmul.f32 %v531, %v566
        %v572 = vmul.f32 %v532, %v566
        %v573 = vmul.f32 %v533, %v566
        %v574 = vmul.f32 %v534, %v567
        %v575 = vmul.f32 %v535, %v567
        %v576 = vmul.f32 %v536, %v567
        %v577 = vmul.f32 %v537, %v567
        %v578 = vmul.f32 %v538, %v567
        %v579 = vmul.f32 %v539, %v567
        %v580 = vpack.c.bf16 %v574, %v568
        %v581 = vpack.c.bf16 %v575, %v569
        %v582 = vpack.c.bf16 %v576, %v570
        %v583 = vpack.c.bf16 %v577, %v571
        %v584 = vpack.c.bf16 %v578, %v572
        %v585 = vpack.c.bf16 %v579, %v573
        %v586 = vld [vmem:[#allocation2] sm:$0xf]
        %v587 = vld [vmem:[#allocation2 + $0x4] sm:$0xf]
        %v588 = vld [vmem:[#allocation7] sm:$0xff]
        %v589 = vld [vmem:[#allocation7 + $0x8] sm:$0xff]
        %v590 = vld [vmem:[#allocation7 + $0x10] sm:$0xff]
        %v591 = vld [vmem:[#allocation7 + $0x18] sm:$0xff]
        %v592 = vld [vmem:[#allocation7 + $0x20] sm:$0xff]
        %v593 = vld [vmem:[#allocation7 + $0x28] sm:$0xff]
        %v594 = vld [vmem:[#allocation7 + $0x30] sm:$0xff]
        %v595 = vld [vmem:[#allocation7 + $0x38] sm:$0xff]
        %v596 = vld [vmem:[#allocation7 + $0x40] sm:$0xff]
        %v597 = vld [vmem:[#allocation7 + $0x48] sm:$0xff]
        %v598 = vld [vmem:[#allocation7 + $0x50] sm:$0xff]
        %v599 = vld [vmem:[#allocation7 + $0x58] sm:$0xff]
        %v600 = vld [vmem:[#allocation7 + $0x60] sm:$0xff]
        %v601 = vld [vmem:[#allocation7 + $0x68] sm:$0xff]
        %v602 = vld [vmem:[#allocation7 + $0x70] sm:$0xff]
        %v603 = vld [vmem:[#allocation7 + $0x78] sm:$0xff]
        %v604 = vld [vmem:[#allocation8] sm:$0xff]
        %v605 = vld [vmem:[#allocation8 + $0x8] sm:$0xff]
        %v606 = vld [vmem:[#allocation8 + $0x10] sm:$0xff]
        %v607 = vld [vmem:[#allocation8 + $0x18] sm:$0xff]
        %v608 = vld [vmem:[#allocation8 + $0x20] sm:$0xff]
        %v609 = vld [vmem:[#allocation8 + $0x28] sm:$0xff]
        %v610 = vld [vmem:[#allocation8 + $0x30] sm:$0xff]
        %v611 = vld [vmem:[#allocation8 + $0x38] sm:$0xff]
        %v612 = vld [vmem:[#allocation8 + $0x40] sm:$0xff]
        %v613 = vld [vmem:[#allocation8 + $0x48] sm:$0xff]
        %v614 = vld [vmem:[#allocation8 + $0x50] sm:$0xff]
        %v615 = vld [vmem:[#allocation8 + $0x58] sm:$0xff]
        %v616 = vld [vmem:[#allocation8 + $0x60] sm:$0xff]
        %v617 = vld [vmem:[#allocation8 + $0x68] sm:$0xff]
        %v618 = vld [vmem:[#allocation8 + $0x70] sm:$0xff]
        %v619 = vld [vmem:[#allocation8 + $0x78] sm:$0xff]
        %v620 = vld [vmem:[#allocation8 + $0x80] sm:$0xff]
        %v621 = vld [vmem:[#allocation8 + $0x88] sm:$0xff]
        %v622 = vld [vmem:[#allocation8 + $0x90] sm:$0xff]
        %v623 = vld [vmem:[#allocation8 + $0x98] sm:$0xff]
        %v624 = vld [vmem:[#allocation8 + $0xa0] sm:$0xff]
        %v625 = vld [vmem:[#allocation8 + $0xa8] sm:$0xff]
        %v626 = vld [vmem:[#allocation8 + $0xb0] sm:$0xff]
        %v627 = vld [vmem:[#allocation8 + $0xb8] sm:$0xff]
        %v628 = vld [vmem:[#allocation8 + $0xc0] sm:$0xff]
        %v629 = vld [vmem:[#allocation8 + $0xc8] sm:$0xff]
        %v630 = vld [vmem:[#allocation8 + $0xd0] sm:$0xff]
        %v631 = vld [vmem:[#allocation8 + $0xd8] sm:$0xff]
        %v632 = vld [vmem:[#allocation8 + $0xe0] sm:$0xff]
        %v633 = vld [vmem:[#allocation8 + $0xe8] sm:$0xff]
        %v634 = vld [vmem:[#allocation8 + $0xf0] sm:$0xff]
        %v635 = vld [vmem:[#allocation8 + $0xf8] sm:$0xff]
        %v636 = vld [vmem:[#allocation8 + $0x100] sm:$0xff]
        %v637 = vld [vmem:[#allocation8 + $0x108] sm:$0xff]
        %v638 = vld [vmem:[#allocation8 + $0x110] sm:$0xff]
        %v639 = vld [vmem:[#allocation8 + $0x118] sm:$0xff]
        %v640 = vld [vmem:[#allocation8 + $0x120] sm:$0xff]
        %v641 = vld [vmem:[#allocation8 + $0x128] sm:$0xff]
        %v642 = vld [vmem:[#allocation8 + $0x130] sm:$0xff]
        %v643 = vld [vmem:[#allocation8 + $0x138] sm:$0xff]
        %v644 = vld [vmem:[#allocation8 + $0x140] sm:$0xff]
        %v645 = vld [vmem:[#allocation8 + $0x148] sm:$0xff]
        %v646 = vld [vmem:[#allocation8 + $0x150] sm:$0xff]
        %v647 = vld [vmem:[#allocation8 + $0x158] sm:$0xff]
        %v648 = vld [vmem:[#allocation8 + $0x160] sm:$0xff]
        %v649 = vld [vmem:[#allocation8 + $0x168] sm:$0xff]
        %v650 = vld [vmem:[#allocation8 + $0x170] sm:$0xff]
        %v651 = vld [vmem:[#allocation8 + $0x178] sm:$0xff]
        %v652 = vld [vmem:[#allocation8 + $0x180] sm:$0xff]
        %v653 = vld [vmem:[#allocation8 + $0x188] sm:$0xff]
        %v654 = vld [vmem:[#allocation8 + $0x190] sm:$0xff]
        %v655 = vld [vmem:[#allocation8 + $0x198] sm:$0xff]
        %v656 = vld [vmem:[#allocation8 + $0x1a0] sm:$0xff]
        %v657 = vld [vmem:[#allocation8 + $0x1a8] sm:$0xff]
        %v658 = vld [vmem:[#allocation8 + $0x1b0] sm:$0xff]
        %v659 = vld [vmem:[#allocation8 + $0x1b8] sm:$0xff]
        %v660 = vld [vmem:[#allocation8 + $0x1c0] sm:$0xff]
        %v661 = vld [vmem:[#allocation8 + $0x1c8] sm:$0xff]
        %v662 = vld [vmem:[#allocation8 + $0x1d0] sm:$0xff]
        %v663 = vld [vmem:[#allocation8 + $0x1d8] sm:$0xff]
        %v664 = vld [vmem:[#allocation8 + $0x1e0] sm:$0xff]
        %v665 = vld [vmem:[#allocation8 + $0x1e8] sm:$0xff]
        %v666 = vld [vmem:[#allocation8 + $0x1f0] sm:$0xff]
        %v667 = vld [vmem:[#allocation8 + $0x1f8] sm:$0xff]
        %v668 = vld [vmem:[#allocation8 + $0x200] sm:$0xff]
        %v669 = vld [vmem:[#allocation8 + $0x208] sm:$0xff]
        %v670 = vld [vmem:[#allocation8 + $0x210] sm:$0xff]
        %v671 = vld [vmem:[#allocation8 + $0x218] sm:$0xff]
        %v672 = vld [vmem:[#allocation8 + $0x220] sm:$0xff]
        %v673 = vld [vmem:[#allocation8 + $0x228] sm:$0xff]
        %v674 = vld [vmem:[#allocation8 + $0x230] sm:$0xff]
        %v675 = vld [vmem:[#allocation8 + $0x238] sm:$0xff]
        %v676 = vld [vmem:[#allocation8 + $0x240] sm:$0xff]
        %v677 = vld [vmem:[#allocation8 + $0x248] sm:$0xff]
        %v678 = vld [vmem:[#allocation8 + $0x250] sm:$0xff]
        %v679 = vld [vmem:[#allocation8 + $0x258] sm:$0xff]
        %v680 = vld [vmem:[#allocation8 + $0x260] sm:$0xff]
        %v681 = vld [vmem:[#allocation8 + $0x268] sm:$0xff]
        %v682 = vld [vmem:[#allocation8 + $0x270] sm:$0xff]
        %v683 = vld [vmem:[#allocation8 + $0x278] sm:$0xff]
        %v684 = vld [vmem:[#allocation8 + $0x280] sm:$0xff]
        %v685 = vld [vmem:[#allocation8 + $0x288] sm:$0xff]
        %v686 = vld [vmem:[#allocation8 + $0x290] sm:$0xff]
        %v687 = vld [vmem:[#allocation8 + $0x298] sm:$0xff]
        %v688 = vld [vmem:[#allocation8 + $0x2a0] sm:$0xff]
        %v689 = vld [vmem:[#allocation8 + $0x2a8] sm:$0xff]
        %v690 = vld [vmem:[#allocation8 + $0x2b0] sm:$0xff]
        %v691 = vld [vmem:[#allocation8 + $0x2b8] sm:$0xff]
        %v692 = vld [vmem:[#allocation8 + $0x2c0] sm:$0xff]
        %v693 = vld [vmem:[#allocation8 + $0x2c8] sm:$0xff]
        %v694 = vld [vmem:[#allocation8 + $0x2d0] sm:$0xff]
        %v695 = vld [vmem:[#allocation8 + $0x2d8] sm:$0xff]
        %v696 = vld [vmem:[#allocation8 + $0x2e0] sm:$0xff]
        %v697 = vld [vmem:[#allocation8 + $0x2e8] sm:$0xff]
        %v698 = vld [vmem:[#allocation8 + $0x2f0] sm:$0xff]
        %v699 = vld [vmem:[#allocation8 + $0x2f8] sm:$0xff]
        %v796 = vunpack.c.l.b16 %v604
        %v797 = vunpack.c.h.b16 %v604
        %v798 = vunpack.c.l.b16 %v605
        %v799 = vunpack.c.h.b16 %v605
        %v800 = vunpack.c.l.b16 %v606
        %v801 = vunpack.c.h.b16 %v606
        %v802 = vunpack.c.l.b16 %v607
        %v803 = vunpack.c.h.b16 %v607
        %v804 = vunpack.c.l.b16 %v608
        %v805 = vunpack.c.h.b16 %v608
        %v806 = vunpack.c.l.b16 %v609
        %v807 = vunpack.c.h.b16 %v609
        %v808 = vunpack.c.l.b16 %v610
        %v809 = vunpack.c.h.b16 %v610
        %v810 = vunpack.c.l.b16 %v611
        %v811 = vunpack.c.h.b16 %v611
        %v812 = vunpack.c.l.b16 %v612
        %v813 = vunpack.c.h.b16 %v612
        %v814 = vunpack.c.l.b16 %v613
        %v815 = vunpack.c.h.b16 %v613
        %v816 = vunpack.c.l.b16 %v614
        %v817 = vunpack.c.h.b16 %v614
        %v818 = vunpack.c.l.b16 %v615
        %v819 = vunpack.c.h.b16 %v615
        %v820 = vunpack.c.l.b16 %v616
        %v821 = vunpack.c.h.b16 %v616
        %v822 = vunpack.c.l.b16 %v617
        %v823 = vunpack.c.h.b16 %v617
        %v824 = vunpack.c.l.b16 %v618
        %v825 = vunpack.c.h.b16 %v618
        %v826 = vunpack.c.l.b16 %v619
        %v827 = vunpack.c.h.b16 %v619
        %v828 = vunpack.c.l.b16 %v620
        %v829 = vunpack.c.h.b16 %v620
        %v830 = vunpack.c.l.b16 %v621
        %v831 = vunpack.c.h.b16 %v621
        %v832 = vunpack.c.l.b16 %v622
        %v833 = vunpack.c.h.b16 %v622
        %v834 = vunpack.c.l.b16 %v623
        %v835 = vunpack.c.h.b16 %v623
        %v836 = vunpack.c.l.b16 %v624
        %v837 = vunpack.c.h.b16 %v624
        %v838 = vunpack.c.l.b16 %v625
        %v839 = vunpack.c.h.b16 %v625
        %v840 = vunpack.c.l.b16 %v626
        %v841 = vunpack.c.h.b16 %v626
        %v842 = vunpack.c.l.b16 %v627
        %v843 = vunpack.c.h.b16 %v627
        %v844 = vunpack.c.l.b16 %v628
        %v845 = vunpack.c.h.b16 %v628
        %v846 = vunpack.c.l.b16 %v629
        %v847 = vunpack.c.h.b16 %v629
        %v848 = vunpack.c.l.b16 %v630
        %v849 = vunpack.c.h.b16 %v630
        %v850 = vunpack.c.l.b16 %v631
        %v851 = vunpack.c.h.b16 %v631
        %v852 = vunpack.c.l.b16 %v632
        %v853 = vunpack.c.h.b16 %v632
        %v854 = vunpack.c.l.b16 %v633
        %v855 = vunpack.c.h.b16 %v633
        %v856 = vunpack.c.l.b16 %v634
        %v857 = vunpack.c.h.b16 %v634
        %v858 = vunpack.c.l.b16 %v635
        %v859 = vunpack.c.h.b16 %v635
        %v860 = vunpack.c.l.b16 %v636
        %v861 = vunpack.c.h.b16 %v636
        %v862 = vunpack.c.l.b16 %v637
        %v863 = vunpack.c.h.b16 %v637
        %v864 = vunpack.c.l.b16 %v638
        %v865 = vunpack.c.h.b16 %v638
        %v866 = vunpack.c.l.b16 %v639
        %v867 = vunpack.c.h.b16 %v639
        %v868 = vunpack.c.l.b16 %v640
        %v869 = vunpack.c.h.b16 %v640
        %v870 = vunpack.c.l.b16 %v641
        %v871 = vunpack.c.h.b16 %v641
        %v872 = vunpack.c.l.b16 %v642
        %v873 = vunpack.c.h.b16 %v642
        %v874 = vunpack.c.l.b16 %v643
        %v875 = vunpack.c.h.b16 %v643
        %v876 = vunpack.c.l.b16 %v644
        %v877 = vunpack.c.h.b16 %v644
        %v878 = vunpack.c.l.b16 %v645
        %v879 = vunpack.c.h.b16 %v645
        %v880 = vunpack.c.l.b16 %v646
        %v881 = vunpack.c.h.b16 %v646
        %v882 = vunpack.c.l.b16 %v647
        %v883 = vunpack.c.h.b16 %v647
        %v884 = vunpack.c.l.b16 %v648
        %v885 = vunpack.c.h.b16 %v648
        %v886 = vunpack.c.l.b16 %v649
        %v887 = vunpack.c.h.b16 %v649
        %v888 = vunpack.c.l.b16 %v650
        %v889 = vunpack.c.h.b16 %v650
        %v890 = vunpack.c.l.b16 %v651
        %v891 = vunpack.c.h.b16 %v651
        %v892 = vunpack.c.l.b16 %v652
        %v893 = vunpack.c.h.b16 %v652
        %v894 = vunpack.c.l.b16 %v653
        %v895 = vunpack.c.h.b16 %v653
        %v896 = vunpack.c.l.b16 %v654
        %v897 = vunpack.c.h.b16 %v654
        %v898 = vunpack.c.l.b16 %v655
        %v899 = vunpack.c.h.b16 %v655
        %v900 = vunpack.c.l.b16 %v656
        %v901 = vunpack.c.h.b16 %v656
        %v902 = vunpack.c.l.b16 %v657
        %v903 = vunpack.c.h.b16 %v657
        %v904 = vunpack.c.l.b16 %v658
        %v905 = vunpack.c.h.b16 %v658
        %v906 = vunpack.c.l.b16 %v659
        %v907 = vunpack.c.h.b16 %v659
        %v908 = vunpack.c.l.b16 %v660
        %v909 = vunpack.c.h.b16 %v660
        %v910 = vunpack.c.l.b16 %v661
        %v911 = vunpack.c.h.b16 %v661
        %v912 = vunpack.c.l.b16 %v662
        %v913 = vunpack.c.h.b16 %v662
        %v914 = vunpack.c.l.b16 %v663
        %v915 = vunpack.c.h.b16 %v663
        %v916 = vunpack.c.l.b16 %v664
        %v917 = vunpack.c.h.b16 %v664
        %v918 = vunpack.c.l.b16 %v665
        %v919 = vunpack.c.h.b16 %v665
        %v920 = vunpack.c.l.b16 %v666
        %v921 = vunpack.c.h.b16 %v666
        %v922 = vunpack.c.l.b16 %v667
        %v923 = vunpack.c.h.b16 %v667
        %v924 = vunpack.c.l.b16 %v668
        %v925 = vunpack.c.h.b16 %v668
        %v926 = vunpack.c.l.b16 %v669
        %v927 = vunpack.c.h.b16 %v669
        %v928 = vunpack.c.l.b16 %v670
        %v929 = vunpack.c.h.b16 %v670
        %v930 = vunpack.c.l.b16 %v671
        %v931 = vunpack.c.h.b16 %v671
        %v932 = vunpack.c.l.b16 %v672
        %v933 = vunpack.c.h.b16 %v672
        %v934 = vunpack.c.l.b16 %v673
        %v935 = vunpack.c.h.b16 %v673
        %v936 = vunpack.c.l.b16 %v674
        %v937 = vunpack.c.h.b16 %v674
        %v938 = vunpack.c.l.b16 %v675
        %v939 = vunpack.c.h.b16 %v675
        %v940 = vunpack.c.l.b16 %v676
        %v941 = vunpack.c.h.b16 %v676
        %v942 = vunpack.c.l.b16 %v677
        %v943 = vunpack.c.h.b16 %v677
        %v944 = vunpack.c.l.b16 %v678
        %v945 = vunpack.c.h.b16 %v678
        %v946 = vunpack.c.l.b16 %v679
        %v947 = vunpack.c.h.b16 %v679
        %v948 = vunpack.c.l.b16 %v680
        %v949 = vunpack.c.h.b16 %v680
        %v950 = vunpack.c.l.b16 %v681
        %v951 = vunpack.c.h.b16 %v681
        %v952 = vunpack.c.l.b16 %v682
        %v953 = vunpack.c.h.b16 %v682
        %v954 = vunpack.c.l.b16 %v683
        %v955 = vunpack.c.h.b16 %v683
        %v956 = vunpack.c.l.b16 %v684
        %v957 = vunpack.c.h.b16 %v684
        %v958 = vunpack.c.l.b16 %v685
        %v959 = vunpack.c.h.b16 %v685
        %v960 = vunpack.c.l.b16 %v686
        %v961 = vunpack.c.h.b16 %v686
        %v962 = vunpack.c.l.b16 %v687
        %v963 = vunpack.c.h.b16 %v687
        %v964 = vunpack.c.l.b16 %v688
        %v965 = vunpack.c.h.b16 %v688
        %v966 = vunpack.c.l.b16 %v689
        %v967 = vunpack.c.h.b16 %v689
        %v968 = vunpack.c.l.b16 %v690
        %v969 = vunpack.c.h.b16 %v690
        %v970 = vunpack.c.l.b16 %v691
        %v971 = vunpack.c.h.b16 %v691
        %v972 = vunpack.c.l.b16 %v692
        %v973 = vunpack.c.h.b16 %v692
        %v974 = vunpack.c.l.b16 %v693
        %v975 = vunpack.c.h.b16 %v693
        %v976 = vunpack.c.l.b16 %v694
        %v977 = vunpack.c.h.b16 %v694
        %v978 = vunpack.c.l.b16 %v695
        %v979 = vunpack.c.h.b16 %v695
        %v980 = vunpack.c.l.b16 %v696
        %v981 = vunpack.c.h.b16 %v696
        %v982 = vunpack.c.l.b16 %v697
        %v983 = vunpack.c.h.b16 %v697
        %v984 = vunpack.c.l.b16 %v698
        %v985 = vunpack.c.h.b16 %v698
        %v986 = vunpack.c.l.b16 %v699
        %v987 = vunpack.c.h.b16 %v699
        %v988 = vpack.c.b16 %v798, %v796
        %v989 = vpack.c.b16 %v799, %v797
        %v990 = vpack.c.b16 %v802, %v800
        %v991 = vpack.c.b16 %v803, %v801
        %v992 = vpack.c.b16 %v806, %v804
        %v993 = vpack.c.b16 %v807, %v805
        %v994 = vpack.c.b16 %v810, %v808
        %v995 = vpack.c.b16 %v811, %v809
        %v996 = vpack.c.b16 %v814, %v812
        %v997 = vpack.c.b16 %v815, %v813
        %v998 = vpack.c.b16 %v818, %v816
        %v999 = vpack.c.b16 %v819, %v817
        %v1000 = vpack.c.b16 %v822, %v820
        %v1001 = vpack.c.b16 %v823, %v821
        %v1002 = vpack.c.b16 %v826, %v824
        %v1003 = vpack.c.b16 %v827, %v825
        %v1004 = vpack.c.b16 %v830, %v828
        %v1005 = vpack.c.b16 %v831, %v829
        %v1006 = vpack.c.b16 %v834, %v832
        %v1007 = vpack.c.b16 %v835, %v833
        %v1008 = vpack.c.b16 %v838, %v836
        %v1009 = vpack.c.b16 %v839, %v837
        %v1010 = vpack.c.b16 %v842, %v840
        %v1011 = vpack.c.b16 %v843, %v841
        %v1012 = vpack.c.b16 %v846, %v844
        %v1013 = vpack.c.b16 %v847, %v845
        %v1014 = vpack.c.b16 %v850, %v848
        %v1015 = vpack.c.b16 %v851, %v849
        %v1016 = vpack.c.b16 %v854, %v852
        %v1017 = vpack.c.b16 %v855, %v853
        %v1018 = vpack.c.b16 %v858, %v856
        %v1019 = vpack.c.b16 %v859, %v857
        %v1020 = vpack.c.b16 %v862, %v860
        %v1021 = vpack.c.b16 %v863, %v861
        %v1022 = vpack.c.b16 %v866, %v864
        %v1023 = vpack.c.b16 %v867, %v865
        %v1024 = vpack.c.b16 %v870, %v868
        %v1025 = vpack.c.b16 %v871, %v869
        %v1026 = vpack.c.b16 %v874, %v872
        %v1027 = vpack.c.b16 %v875, %v873
        %v1028 = vpack.c.b16 %v878, %v876
        %v1029 = vpack.c.b16 %v879, %v877
        %v1030 = vpack.c.b16 %v882, %v880
        %v1031 = vpack.c.b16 %v883, %v881
        %v1032 = vpack.c.b16 %v886, %v884
        %v1033 = vpack.c.b16 %v887, %v885
        %v1034 = vpack.c.b16 %v890, %v888
        %v1035 = vpack.c.b16 %v891, %v889
        %v1036 = vpack.c.b16 %v894, %v892
        %v1037 = vpack.c.b16 %v895, %v893
        %v1038 = vpack.c.b16 %v898, %v896
        %v1039 = vpack.c.b16 %v899, %v897
        %v1040 = vpack.c.b16 %v902, %v900
        %v1041 = vpack.c.b16 %v903, %v901
        %v1042 = vpack.c.b16 %v906, %v904
        %v1043 = vpack.c.b16 %v907, %v905
        %v1044 = vpack.c.b16 %v910, %v908
        %v1045 = vpack.c.b16 %v911, %v909
        %v1046 = vpack.c.b16 %v914, %v912
        %v1047 = vpack.c.b16 %v915, %v913
        %v1048 = vpack.c.b16 %v918, %v916
        %v1049 = vpack.c.b16 %v919, %v917
        %v1050 = vpack.c.b16 %v922, %v920
        %v1051 = vpack.c.b16 %v923, %v921
        %v1052 = vpack.c.b16 %v926, %v924
        %v1053 = vpack.c.b16 %v927, %v925
        %v1054 = vpack.c.b16 %v930, %v928
        %v1055 = vpack.c.b16 %v931, %v929
        %v1056 = vpack.c.b16 %v934, %v932
        %v1057 = vpack.c.b16 %v935, %v933
        %v1058 = vpack.c.b16 %v938, %v936
        %v1059 = vpack.c.b16 %v939, %v937
        %v1060 = vpack.c.b16 %v942, %v940
        %v1061 = vpack.c.b16 %v943, %v941
        %v1062 = vpack.c.b16 %v946, %v944
        %v1063 = vpack.c.b16 %v947, %v945
        %v1064 = vpack.c.b16 %v950, %v948
        %v1065 = vpack.c.b16 %v951, %v949
        %v1066 = vpack.c.b16 %v954, %v952
        %v1067 = vpack.c.b16 %v955, %v953
        %v1068 = vpack.c.b16 %v958, %v956
        %v1069 = vpack.c.b16 %v959, %v957
        %v1070 = vpack.c.b16 %v962, %v960
        %v1071 = vpack.c.b16 %v963, %v961
        %v1072 = vpack.c.b16 %v966, %v964
        %v1073 = vpack.c.b16 %v967, %v965
        %v1074 = vpack.c.b16 %v970, %v968
        %v1075 = vpack.c.b16 %v971, %v969
        %v1076 = vpack.c.b16 %v974, %v972
        %v1077 = vpack.c.b16 %v975, %v973
        %v1078 = vpack.c.b16 %v978, %v976
        %v1079 = vpack.c.b16 %v979, %v977
        %v1080 = vpack.c.b16 %v982, %v980
        %v1081 = vpack.c.b16 %v983, %v981
        %v1082 = vpack.c.b16 %v986, %v984
        %v1083 = vpack.c.b16 %v987, %v985
        %1180 = vmatprep.subr.bf16.mxu0 %v1003
        %1181 = vmatpush1.bf16.msra.mxu0 %v1002
        %1182 = vmatprep.subr.bf16.mxu0 %v1001
        %1183 = vmatpush1.bf16.msra.mxu0 %v1000
        %1184 = vmatprep.subr.bf16.mxu0 %v999
        %1185 = vmatpush1.bf16.msra.mxu0 %v998
        %1186 = vmatprep.subr.bf16.mxu0 %v997
        %1187 = vmatpush1.bf16.msra.mxu0 %v996
        %1188 = vmatprep.subr.bf16.mxu0 %v995
        %1189 = vmatpush1.bf16.msra.mxu0 %v994
        %1190 = vmatprep.subr.bf16.mxu0 %v993
        %1191 = vmatpush1.bf16.msra.mxu0 %v992
        %1192 = vmatprep.subr.bf16.mxu0 %v991
        %1193 = vmatpush1.bf16.msra.mxu0 %v990
        %1194 = vmatprep.subr.bf16.mxu0 %v989
        %1195 = vmatpush1.bf16.msra.mxu0 %v988
        %1196 = vmatprep.subr.bf16.mxu0 %v1019
        %1197 = vmatpush2.bf16.msra.mxu0 %v1018
        %1198 = vmatprep.subr.bf16.mxu0 %v1017
        %1199 = vmatpush2.bf16.msra.mxu0 %v1016
        %1200 = vmatprep.subr.bf16.mxu0 %v1015
        %1201 = vmatpush2.bf16.msra.mxu0 %v1014
        %1202 = vmatprep.subr.bf16.mxu0 %v1013
        %1203 = vmatpush2.bf16.msra.mxu0 %v1012
        %1204 = vmatprep.subr.bf16.mxu0 %v1011
        %1205 = vmatpush2.bf16.msra.mxu0 %v1010
        %1206 = vmatprep.subr.bf16.mxu0 %v1009
        %1207 = vmatpush2.bf16.msra.mxu0 %v1008
        %1208 = vmatprep.subr.bf16.mxu0 %v1007
        %1209 = vmatpush2.bf16.msra.mxu0 %v1006
        %1210 = vmatprep.subr.bf16.mxu0 %v1005
        %1211 = vmatpush2.bf16.msra.mxu0 %v1004
        %1212 = vmatprep.mubr.bf16.mxu0 %v581
        %1213 = vmatmul.mubr.bf16.gmra.mxu0 %v580
        %v1214 = vpop.f32.mrf.mxu0
        %v1215 = vadd.f32 0.0, %v1214
        %v1216 = vpop.f32.mrf.mxu0
        %v1217 = vadd.f32 0.0, %v1216
        %v1218 = vpop.f32.mrf.mxu0
        %v1219 = vadd.f32 0.0, %v1218
        %v1220 = vpop.f32.mrf.mxu0
        %v1221 = vadd.f32 0.0, %v1220
        %1222 = vdwg.mxu0
        %1223 = vmatprep.subr.bf16.mxu0 %v1035
        %1224 = vmatpush1.bf16.msra.mxu0 %v1034
        %1225 = vmatprep.subr.bf16.mxu0 %v1033
        %1226 = vmatpush1.bf16.msra.mxu0 %v1032
        %1227 = vmatprep.subr.bf16.mxu0 %v1031
        %1228 = vmatpush1.bf16.msra.mxu0 %v1030
        %1229 = vmatprep.subr.bf16.mxu0 %v1029
        %1230 = vmatpush1.bf16.msra.mxu0 %v1028
        %1231 = vmatprep.subr.bf16.mxu0 %v1027
        %1232 = vmatpush1.bf16.msra.mxu0 %v1026
        %1233 = vmatprep.subr.bf16.mxu0 %v1025
        %1234 = vmatpush1.bf16.msra.mxu0 %v1024
        %1235 = vmatprep.subr.bf16.mxu0 %v1023
        %1236 = vmatpush1.bf16.msra.mxu0 %v1022
        %1237 = vmatprep.subr.bf16.mxu0 %v1021
        %1238 = vmatpush1.bf16.msra.mxu0 %v1020
        %1239 = vmatprep.subr.bf16.mxu0 %v1051
        %1240 = vmatpush2.bf16.msra.mxu0 %v1050
        %1241 = vmatprep.subr.bf16.mxu0 %v1049
        %1242 = vmatpush2.bf16.msra.mxu0 %v1048
        %1243 = vmatprep.subr.bf16.mxu0 %v1047
        %1244 = vmatpush2.bf16.msra.mxu0 %v1046
        %1245 = vmatprep.subr.bf16.mxu0 %v1045
        %1246 = vmatpush2.bf16.msra.mxu0 %v1044
        %1247 = vmatprep.subr.bf16.mxu0 %v1043
        %1248 = vmatpush2.bf16.msra.mxu0 %v1042
        %1249 = vmatprep.subr.bf16.mxu0 %v1041
        %1250 = vmatpush2.bf16.msra.mxu0 %v1040
        %1251 = vmatprep.subr.bf16.mxu0 %v1039
        %1252 = vmatpush2.bf16.msra.mxu0 %v1038
        %1253 = vmatprep.subr.bf16.mxu0 %v1037
        %1254 = vmatpush2.bf16.msra.mxu0 %v1036
        %1255 = vmatprep.mubr.bf16.mxu0 %v583
        %1256 = vmatmul.mubr.bf16.gmra.mxu0 %v582
        %v1257 = vpop.f32.mrf.mxu0
        %v1258 = vadd.f32 %v1215, %v1257
        %v1259 = vpop.f32.mrf.mxu0
        %v1260 = vadd.f32 %v1217, %v1259
        %v1261 = vpop.f32.mrf.mxu0
        %v1262 = vadd.f32 %v1219, %v1261
        %v1263 = vpop.f32.mrf.mxu0
        %v1264 = vadd.f32 %v1221, %v1263
        %1265 = vdwg.mxu0
        %1266 = vmatprep.subr.bf16.mxu0 %v1067
        %1267 = vmatpush1.bf16.msra.mxu0 %v1066
        %1268 = vmatprep.subr.bf16.mxu0 %v1065
        %1269 = vmatpush1.bf16.msra.mxu0 %v1064
        %1270 = vmatprep.subr.bf16.mxu0 %v1063
        %1271 = vmatpush1.bf16.msra.mxu0 %v1062
        %1272 = vmatprep.subr.bf16.mxu0 %v1061
        %1273 = vmatpush1.bf16.msra.mxu0 %v1060
        %1274 = vmatprep.subr.bf16.mxu0 %v1059
        %1275 = vmatpush1.bf16.msra.mxu0 %v1058
        %1276 = vmatprep.subr.bf16.mxu0 %v1057
        %1277 = vmatpush1.bf16.msra.mxu0 %v1056
        %1278 = vmatprep.subr.bf16.mxu0 %v1055
        %1279 = vmatpush1.bf16.msra.mxu0 %v1054
        %1280 = vmatprep.subr.bf16.mxu0 %v1053
        %1281 = vmatpush1.bf16.msra.mxu0 %v1052
        %1282 = vmatprep.subr.bf16.mxu0 %v1083
        %1283 = vmatpush2.bf16.msra.mxu0 %v1082
        %1284 = vmatprep.subr.bf16.mxu0 %v1081
        %1285 = vmatpush2.bf16.msra.mxu0 %v1080
        %1286 = vmatprep.subr.bf16.mxu0 %v1079
        %1287 = vmatpush2.bf16.msra.mxu0 %v1078
        %1288 = vmatprep.subr.bf16.mxu0 %v1077
        %1289 = vmatpush2.bf16.msra.mxu0 %v1076
        %1290 = vmatprep.subr.bf16.mxu0 %v1075
        %1291 = vmatpush2.bf16.msra.mxu0 %v1074
        %1292 = vmatprep.subr.bf16.mxu0 %v1073
        %1293 = vmatpush2.bf16.msra.mxu0 %v1072
        %1294 = vmatprep.subr.bf16.mxu0 %v1071
        %1295 = vmatpush2.bf16.msra.mxu0 %v1070
        %1296 = vmatprep.subr.bf16.mxu0 %v1069
        %1297 = vmatpush2.bf16.msra.mxu0 %v1068
        %1298 = vmatprep.mubr.bf16.mxu0 %v585
        %1299 = vmatmul.mubr.bf16.gmra.mxu0 %v584
        %v1300 = vpop.f32.mrf.mxu0
        %v1301 = vadd.f32 %v1258, %v1300
        %v1302 = vpop.f32.mrf.mxu0
        %v1303 = vadd.f32 %v1260, %v1302
        %v1304 = vpop.f32.mrf.mxu0
        %v1305 = vadd.f32 %v1262, %v1304
        %v1306 = vpop.f32.mrf.mxu0
        %v1307 = vadd.f32 %v1264, %v1306
        %1308 = vdwg.mxu0
        %v1311 = vunpack.c.l.b16 %v586
        %v1312 = vunpack.c.l.b16 %v587
        %v1313 = vpack.c.b16 %v1312, %v1311
        %v1331 = vunpack.c.l.b16 %v588
        %v1332 = vunpack.c.h.b16 %v588
        %v1333 = vunpack.c.l.b16 %v589
        %v1334 = vunpack.c.h.b16 %v589
        %v1335 = vunpack.c.l.b16 %v590
        %v1336 = vunpack.c.h.b16 %v590
        %v1337 = vunpack.c.l.b16 %v591
        %v1338 = vunpack.c.h.b16 %v591
        %v1339 = vunpack.c.l.b16 %v592
        %v1340 = vunpack.c.h.b16 %v592
        %v1341 = vunpack.c.l.b16 %v593
        %v1342 = vunpack.c.h.b16 %v593
        %v1343 = vunpack.c.l.b16 %v594
        %v1344 = vunpack.c.h.b16 %v594
        %v1345 = vunpack.c.l.b16 %v595
        %v1346 = vunpack.c.h.b16 %v595
        %v1347 = vunpack.c.l.b16 %v596
        %v1348 = vunpack.c.h.b16 %v596
        %v1349 = vunpack.c.l.b16 %v597
        %v1350 = vunpack.c.h.b16 %v597
        %v1351 = vunpack.c.l.b16 %v598
        %v1352 = vunpack.c.h.b16 %v598
        %v1353 = vunpack.c.l.b16 %v599
        %v1354 = vunpack.c.h.b16 %v599
        %v1355 = vunpack.c.l.b16 %v600
        %v1356 = vunpack.c.h.b16 %v600
        %v1357 = vunpack.c.l.b16 %v601
        %v1358 = vunpack.c.h.b16 %v601
        %v1359 = vunpack.c.l.b16 %v602
        %v1360 = vunpack.c.h.b16 %v602
        %v1361 = vunpack.c.l.b16 %v603
        %v1362 = vunpack.c.h.b16 %v603
        %v1363 = vpack.c.b16 %v1333, %v1331
        %v1364 = vpack.c.b16 %v1334, %v1332
        %v1365 = vpack.c.b16 %v1337, %v1335
        %v1366 = vpack.c.b16 %v1338, %v1336
        %v1367 = vpack.c.b16 %v1341, %v1339
        %v1368 = vpack.c.b16 %v1342, %v1340
        %v1369 = vpack.c.b16 %v1345, %v1343
        %v1370 = vpack.c.b16 %v1346, %v1344
        %v1371 = vpack.c.b16 %v1349, %v1347
        %v1372 = vpack.c.b16 %v1350, %v1348
        %v1373 = vpack.c.b16 %v1353, %v1351
        %v1374 = vpack.c.b16 %v1354, %v1352
        %v1375 = vpack.c.b16 %v1357, %v1355
        %v1376 = vpack.c.b16 %v1358, %v1356
        %v1377 = vpack.c.b16 %v1361, %v1359
        %v1378 = vpack.c.b16 %v1362, %v1360
        %1395 = vmatprep.subr.bf16.mxu0 %v1378
        %1396 = vmatpush1.bf16.msra.mxu0 %v1377
        %1397 = vmatprep.subr.bf16.mxu0 %v1376
        %1398 = vmatpush1.bf16.msra.mxu0 %v1375
        %1399 = vmatprep.subr.bf16.mxu0 %v1374
        %1400 = vmatpush1.bf16.msra.mxu0 %v1373
        %1401 = vmatprep.subr.bf16.mxu0 %v1372
        %1402 = vmatpush1.bf16.msra.mxu0 %v1371
        %1403 = vmatprep.subr.bf16.mxu0 %v1370
        %1404 = vmatpush1.bf16.msra.mxu0 %v1369
        %1405 = vmatprep.subr.bf16.mxu0 %v1368
        %1406 = vmatpush1.bf16.msra.mxu0 %v1367
        %1407 = vmatprep.subr.bf16.mxu0 %v1366
        %1408 = vmatpush1.bf16.msra.mxu0 %v1365
        %1409 = vmatprep.subr.bf16.mxu0 %v1364
        %1410 = vmatpush1.bf16.msra.mxu0 %v1363
        %1411 = vmatprep.subr.bf16.mxu0 0
        %1412 = vmatpush2.bf16.msra.mxu0 0
        %1413 = vmatprep.subr.bf16.mxu0 0
        %1414 = vmatpush2.bf16.msra.mxu0 0
        %1415 = vmatprep.subr.bf16.mxu0 0
        %1416 = vmatpush2.bf16.msra.mxu0 0
        %1417 = vmatprep.subr.bf16.mxu0 0
        %1418 = vmatpush2.bf16.msra.mxu0 0
        %1419 = vmatprep.subr.bf16.mxu0 0
        %1420 = vmatpush2.bf16.msra.mxu0 0
        %1421 = vmatprep.subr.bf16.mxu0 0
        %1422 = vmatpush2.bf16.msra.mxu0 0
        %1423 = vmatprep.subr.bf16.mxu0 0
        %1424 = vmatpush2.bf16.msra.mxu0 0
        %1425 = vmatprep.subr.bf16.mxu0 0
        %1426 = vmatpush2.bf16.msra.mxu0 0
        %1427 = vmatprep.mubr.bf16.mxu0 0
        %1428 = vmatmul.mubr.bf16.gmra.mxu0 %v1313
        %v1429 = vpop.f32.mrf.mxu0
        %v1430 = vadd.f32 %v1301, %v1429
        %v1431 = vpop.f32.mrf.mxu0
        %v1432 = vadd.f32 %v1303, %v1431
        %v1433 = vpop.f32.mrf.mxu0
        %v1434 = vadd.f32 %v1305, %v1433
        %v1435 = vpop.f32.mrf.mxu0
        %v1436 = vadd.f32 %v1307, %v1435
        %1437 = vdwg.mxu0
        %v1438 = vld [vmem:[#allocation10] sm:$0x3]
        %v1440 = vlaneseq
        %v1441 = vshrl.u32 %v1440, 7
        %v1442 = vsub.s32 0, %v1441
        %v1443 = vrot.slane %v1438, %v1442
        %v1444 = vlaneseq
        %v1445 = vshrl.u32 %v1444, 7
        %v1446 = vsub.s32 1, %v1445
        %v1447 = vrot.slane %v1438, %v1446
        %v1450 = vadd.f32 %v1430, %v1443
        %v1451 = vadd.f32 %v1432, %v1447
        %v1452 = vadd.f32 %v1434, %v1443
        %v1453 = vadd.f32 %v1436, %v1447
        %v1454 = vmax.f32 %v1450, 0.0
        %v1455 = vmax.f32 %v1451, 0.0
        %v1456 = vmax.f32 %v1452, 0.0
        %v1457 = vmax.f32 %v1453, 0.0
        %v1458 = vpack.c.bf16 %v1456, %v1454
        %v1459 = vpack.c.bf16 %v1457, %v1455
        %v1460 = vld [vmem:[#allocation11] sm:$0xff]
        %v1461 = vld [vmem:[#allocation11 + $0x8] sm:$0xff]
        %v1462 = vld [vmem:[#allocation11 + $0x10] sm:$0xff]
        %v1463 = vld [vmem:[#allocation11 + $0x18] sm:$0xff]
        %v1464 = vld [vmem:[#allocation11 + $0x20] sm:$0xff]
        %v1465 = vld [vmem:[#allocation11 + $0x28] sm:$0xff]
        %v1466 = vld [vmem:[#allocation11 + $0x30] sm:$0xff]
        %v1467 = vld [vmem:[#allocation11 + $0x38] sm:$0xff]
        %v1468 = vld [vmem:[#allocation11 + $0x40] sm:$0xff]
        %v1469 = vld [vmem:[#allocation11 + $0x48] sm:$0xff]
        %v1470 = vld [vmem:[#allocation11 + $0x50] sm:$0xff]
        %v1471 = vld [vmem:[#allocation11 + $0x58] sm:$0xff]
        %v1472 = vld [vmem:[#allocation11 + $0x60] sm:$0xff]
        %v1473 = vld [vmem:[#allocation11 + $0x68] sm:$0xff]
        %v1474 = vld [vmem:[#allocation11 + $0x70] sm:$0xff]
        %v1475 = vld [vmem:[#allocation11 + $0x78] sm:$0xff]
        %v1476 = vld [vmem:[#allocation11 + $0x80] sm:$0xff]
        %v1477 = vld [vmem:[#allocation11 + $0x88] sm:$0xff]
        %v1478 = vld [vmem:[#allocation11 + $0x90] sm:$0xff]
        %v1479 = vld [vmem:[#allocation11 + $0x98] sm:$0xff]
        %v1480 = vld [vmem:[#allocation11 + $0xa0] sm:$0xff]
        %v1481 = vld [vmem:[#allocation11 + $0xa8] sm:$0xff]
        %v1482 = vld [vmem:[#allocation11 + $0xb0] sm:$0xff]
        %v1483 = vld [vmem:[#allocation11 + $0xb8] sm:$0xff]
        %v1484 = vld [vmem:[#allocation11 + $0xc0] sm:$0xff]
        %v1485 = vld [vmem:[#allocation11 + $0xc8] sm:$0xff]
        %v1486 = vld [vmem:[#allocation11 + $0xd0] sm:$0xff]
        %v1487 = vld [vmem:[#allocation11 + $0xd8] sm:$0xff]
        %v1488 = vld [vmem:[#allocation11 + $0xe0] sm:$0xff]
        %v1489 = vld [vmem:[#allocation11 + $0xe8] sm:$0xff]
        %v1490 = vld [vmem:[#allocation11 + $0xf0] sm:$0xff]
        %v1491 = vld [vmem:[#allocation11 + $0xf8] sm:$0xff]
        %v1492 = vld [vmem:[#allocation11 + $0x100] sm:$0xff]
        %v1493 = vld [vmem:[#allocation11 + $0x108] sm:$0xff]
        %v1494 = vld [vmem:[#allocation11 + $0x110] sm:$0xff]
        %v1495 = vld [vmem:[#allocation11 + $0x118] sm:$0xff]
        %v1496 = vld [vmem:[#allocation11 + $0x120] sm:$0xff]
        %v1497 = vld [vmem:[#allocation11 + $0x128] sm:$0xff]
        %v1498 = vld [vmem:[#allocation11 + $0x130] sm:$0xff]
        %v1499 = vld [vmem:[#allocation11 + $0x138] sm:$0xff]
        %v1500 = vld [vmem:[#allocation11 + $0x140] sm:$0xff]
        %v1501 = vld [vmem:[#allocation11 + $0x148] sm:$0xff]
        %v1502 = vld [vmem:[#allocation11 + $0x150] sm:$0xff]
        %v1503 = vld [vmem:[#allocation11 + $0x158] sm:$0xff]
        %v1504 = vld [vmem:[#allocation11 + $0x160] sm:$0xff]
        %v1505 = vld [vmem:[#allocation11 + $0x168] sm:$0xff]
        %v1506 = vld [vmem:[#allocation11 + $0x170] sm:$0xff]
        %v1507 = vld [vmem:[#allocation11 + $0x178] sm:$0xff]
        %v1508 = vld [vmem:[#allocation11 + $0x180] sm:$0xff]
        %v1509 = vld [vmem:[#allocation11 + $0x188] sm:$0xff]
        %v1510 = vld [vmem:[#allocation11 + $0x190] sm:$0xff]
        %v1511 = vld [vmem:[#allocation11 + $0x198] sm:$0xff]
        %v1512 = vld [vmem:[#allocation11 + $0x1a0] sm:$0xff]
        %v1513 = vld [vmem:[#allocation11 + $0x1a8] sm:$0xff]
        %v1514 = vld [vmem:[#allocation11 + $0x1b0] sm:$0xff]
        %v1515 = vld [vmem:[#allocation11 + $0x1b8] sm:$0xff]
        %v1516 = vld [vmem:[#allocation11 + $0x1c0] sm:$0xff]
        %v1517 = vld [vmem:[#allocation11 + $0x1c8] sm:$0xff]
        %v1518 = vld [vmem:[#allocation11 + $0x1d0] sm:$0xff]
        %v1519 = vld [vmem:[#allocation11 + $0x1d8] sm:$0xff]
        %v1520 = vld [vmem:[#allocation11 + $0x1e0] sm:$0xff]
        %v1521 = vld [vmem:[#allocation11 + $0x1e8] sm:$0xff]
        %v1522 = vld [vmem:[#allocation11 + $0x1f0] sm:$0xff]
        %v1523 = vld [vmem:[#allocation11 + $0x1f8] sm:$0xff]
        %v1524 = vld [vmem:[#allocation13] sm:$0xf]
        %v1526 = vlaneseq
        %v1527 = vshrl.u32 %v1526, 7
        %v1528 = vsub.s32 0, %v1527
        %v1529 = vrot.slane %v1524, %v1528
        %v1530 = vlaneseq
        %v1531 = vshrl.u32 %v1530, 7
        %v1532 = vsub.s32 1, %v1531
        %v1533 = vrot.slane %v1524, %v1532
        %v1534 = vlaneseq
        %v1535 = vshrl.u32 %v1534, 7
        %v1536 = vsub.s32 2, %v1535
        %v1537 = vrot.slane %v1524, %v1536
        %v1538 = vlaneseq
        %v1539 = vshrl.u32 %v1538, 7
        %v1540 = vsub.s32 3, %v1539
        %v1541 = vrot.slane %v1524, %v1540
        %v1610 = vunpack.c.l.b16 %v1460
        %v1611 = vunpack.c.h.b16 %v1460
        %v1612 = vunpack.c.l.b16 %v1461
        %v1613 = vunpack.c.h.b16 %v1461
        %v1614 = vunpack.c.l.b16 %v1462
        %v1615 = vunpack.c.h.b16 %v1462
        %v1616 = vunpack.c.l.b16 %v1463
        %v1617 = vunpack.c.h.b16 %v1463
        %v1618 = vunpack.c.l.b16 %v1464
        %v1619 = vunpack.c.h.b16 %v1464
        %v1620 = vunpack.c.l.b16 %v1465
        %v1621 = vunpack.c.h.b16 %v1465
        %v1622 = vunpack.c.l.b16 %v1466
        %v1623 = vunpack.c.h.b16 %v1466
        %v1624 = vunpack.c.l.b16 %v1467
        %v1625 = vunpack.c.h.b16 %v1467
        %v1626 = vunpack.c.l.b16 %v1468
        %v1627 = vunpack.c.h.b16 %v1468
        %v1628 = vunpack.c.l.b16 %v1469
        %v1629 = vunpack.c.h.b16 %v1469
        %v1630 = vunpack.c.l.b16 %v1470
        %v1631 = vunpack.c.h.b16 %v1470
        %v1632 = vunpack.c.l.b16 %v1471
        %v1633 = vunpack.c.h.b16 %v1471
        %v1634 = vunpack.c.l.b16 %v1472
        %v1635 = vunpack.c.h.b16 %v1472
        %v1636 = vunpack.c.l.b16 %v1473
        %v1637 = vunpack.c.h.b16 %v1473
        %v1638 = vunpack.c.l.b16 %v1474
        %v1639 = vunpack.c.h.b16 %v1474
        %v1640 = vunpack.c.l.b16 %v1475
        %v1641 = vunpack.c.h.b16 %v1475
        %v1642 = vunpack.c.l.b16 %v1476
        %v1643 = vunpack.c.h.b16 %v1476
        %v1644 = vunpack.c.l.b16 %v1477
        %v1645 = vunpack.c.h.b16 %v1477
        %v1646 = vunpack.c.l.b16 %v1478
        %v1647 = vunpack.c.h.b16 %v1478
        %v1648 = vunpack.c.l.b16 %v1479
        %v1649 = vunpack.c.h.b16 %v1479
        %v1650 = vunpack.c.l.b16 %v1480
        %v1651 = vunpack.c.h.b16 %v1480
        %v1652 = vunpack.c.l.b16 %v1481
        %v1653 = vunpack.c.h.b16 %v1481
        %v1654 = vunpack.c.l.b16 %v1482
        %v1655 = vunpack.c.h.b16 %v1482
        %v1656 = vunpack.c.l.b16 %v1483
        %v1657 = vunpack.c.h.b16 %v1483
        %v1658 = vunpack.c.l.b16 %v1484
        %v1659 = vunpack.c.h.b16 %v1484
        %v1660 = vunpack.c.l.b16 %v1485
        %v1661 = vunpack.c.h.b16 %v1485
        %v1662 = vunpack.c.l.b16 %v1486
        %v1663 = vunpack.c.h.b16 %v1486
        %v1664 = vunpack.c.l.b16 %v1487
        %v1665 = vunpack.c.h.b16 %v1487
        %v1666 = vunpack.c.l.b16 %v1488
        %v1667 = vunpack.c.h.b16 %v1488
        %v1668 = vunpack.c.l.b16 %v1489
        %v1669 = vunpack.c.h.b16 %v1489
        %v1670 = vunpack.c.l.b16 %v1490
        %v1671 = vunpack.c.h.b16 %v1490
        %v1672 = vunpack.c.l.b16 %v1491
        %v1673 = vunpack.c.h.b16 %v1491
        %v1674 = vunpack.c.l.b16 %v1492
        %v1675 = vunpack.c.h.b16 %v1492
        %v1676 = vunpack.c.l.b16 %v1493
        %v1677 = vunpack.c.h.b16 %v1493
        %v1678 = vunpack.c.l.b16 %v1494
        %v1679 = vunpack.c.h.b16 %v1494
        %v1680 = vunpack.c.l.b16 %v1495
        %v1681 = vunpack.c.h.b16 %v1495
        %v1682 = vunpack.c.l.b16 %v1496
        %v1683 = vunpack.c.h.b16 %v1496
        %v1684 = vunpack.c.l.b16 %v1497
        %v1685 = vunpack.c.h.b16 %v1497
        %v1686 = vunpack.c.l.b16 %v1498
        %v1687 = vunpack.c.h.b16 %v1498
        %v1688 = vunpack.c.l.b16 %v1499
        %v1689 = vunpack.c.h.b16 %v1499
        %v1690 = vunpack.c.l.b16 %v1500
        %v1691 = vunpack.c.h.b16 %v1500
        %v1692 = vunpack.c.l.b16 %v1501
        %v1693 = vunpack.c.h.b16 %v1501
        %v1694 = vunpack.c.l.b16 %v1502
        %v1695 = vunpack.c.h.b16 %v1502
        %v1696 = vunpack.c.l.b16 %v1503
        %v1697 = vunpack.c.h.b16 %v1503
        %v1698 = vunpack.c.l.b16 %v1504
        %v1699 = vunpack.c.h.b16 %v1504
        %v1700 = vunpack.c.l.b16 %v1505
        %v1701 = vunpack.c.h.b16 %v1505
        %v1702 = vunpack.c.l.b16 %v1506
        %v1703 = vunpack.c.h.b16 %v1506
        %v1704 = vunpack.c.l.b16 %v1507
        %v1705 = vunpack.c.h.b16 %v1507
        %v1706 = vunpack.c.l.b16 %v1508
        %v1707 = vunpack.c.h.b16 %v1508
        %v1708 = vunpack.c.l.b16 %v1509
        %v1709 = vunpack.c.h.b16 %v1509
        %v1710 = vunpack.c.l.b16 %v1510
        %v1711 = vunpack.c.h.b16 %v1510
        %v1712 = vunpack.c.l.b16 %v1511
        %v1713 = vunpack.c.h.b16 %v1511
        %v1714 = vunpack.c.l.b16 %v1512
        %v1715 = vunpack.c.h.b16 %v1512
        %v1716 = vunpack.c.l.b16 %v1513
        %v1717 = vunpack.c.h.b16 %v1513
        %v1718 = vunpack.c.l.b16 %v1514
        %v1719 = vunpack.c.h.b16 %v1514
        %v1720 = vunpack.c.l.b16 %v1515
        %v1721 = vunpack.c.h.b16 %v1515
        %v1722 = vunpack.c.l.b16 %v1516
        %v1723 = vunpack.c.h.b16 %v1516
        %v1724 = vunpack.c.l.b16 %v1517
        %v1725 = vunpack.c.h.b16 %v1517
        %v1726 = vunpack.c.l.b16 %v1518
        %v1727 = vunpack.c.h.b16 %v1518
        %v1728 = vunpack.c.l.b16 %v1519
        %v1729 = vunpack.c.h.b16 %v1519
        %v1730 = vunpack.c.l.b16 %v1520
        %v1731 = vunpack.c.h.b16 %v1520
        %v1732 = vunpack.c.l.b16 %v1521
        %v1733 = vunpack.c.h.b16 %v1521
        %v1734 = vunpack.c.l.b16 %v1522
        %v1735 = vunpack.c.h.b16 %v1522
        %v1736 = vunpack.c.l.b16 %v1523
        %v1737 = vunpack.c.h.b16 %v1523
        %v1738 = vpack.c.b16 %v1614, %v1610
        %v1739 = vpack.c.b16 %v1615, %v1611
        %v1740 = vpack.c.b16 %v1616, %v1612
        %v1741 = vpack.c.b16 %v1617, %v1613
        %v1742 = vpack.c.b16 %v1622, %v1618
        %v1743 = vpack.c.b16 %v1623, %v1619
        %v1744 = vpack.c.b16 %v1624, %v1620
        %v1745 = vpack.c.b16 %v1625, %v1621
        %v1746 = vpack.c.b16 %v1630, %v1626
        %v1747 = vpack.c.b16 %v1631, %v1627
        %v1748 = vpack.c.b16 %v1632, %v1628
        %v1749 = vpack.c.b16 %v1633, %v1629
        %v1750 = vpack.c.b16 %v1638, %v1634
        %v1751 = vpack.c.b16 %v1639, %v1635
        %v1752 = vpack.c.b16 %v1640, %v1636
        %v1753 = vpack.c.b16 %v1641, %v1637
        %v1754 = vpack.c.b16 %v1646, %v1642
        %v1755 = vpack.c.b16 %v1647, %v1643
        %v1756 = vpack.c.b16 %v1648, %v1644
        %v1757 = vpack.c.b16 %v1649, %v1645
        %v1758 = vpack.c.b16 %v1654, %v1650
        %v1759 = vpack.c.b16 %v1655, %v1651
        %v1760 = vpack.c.b16 %v1656, %v1652
        %v1761 = vpack.c.b16 %v1657, %v1653
        %v1762 = vpack.c.b16 %v1662, %v1658
        %v1763 = vpack.c.b16 %v1663, %v1659
        %v1764 = vpack.c.b16 %v1664, %v1660
        %v1765 = vpack.c.b16 %v1665, %v1661
        %v1766 = vpack.c.b16 %v1670, %v1666
        %v1767 = vpack.c.b16 %v1671, %v1667
        %v1768 = vpack.c.b16 %v1672, %v1668
        %v1769 = vpack.c.b16 %v1673, %v1669
        %v1770 = vpack.c.b16 %v1678, %v1674
        %v1771 = vpack.c.b16 %v1679, %v1675
        %v1772 = vpack.c.b16 %v1680, %v1676
        %v1773 = vpack.c.b16 %v1681, %v1677
        %v1774 = vpack.c.b16 %v1686, %v1682
        %v1775 = vpack.c.b16 %v1687, %v1683
        %v1776 = vpack.c.b16 %v1688, %v1684
        %v1777 = vpack.c.b16 %v1689, %v1685
        %v1778 = vpack.c.b16 %v1694, %v1690
        %v1779 = vpack.c.b16 %v1695, %v1691
        %v1780 = vpack.c.b16 %v1696, %v1692
        %v1781 = vpack.c.b16 %v1697, %v1693
        %v1782 = vpack.c.b16 %v1702, %v1698
        %v1783 = vpack.c.b16 %v1703, %v1699
        %v1784 = vpack.c.b16 %v1704, %v1700
        %v1785 = vpack.c.b16 %v1705, %v1701
        %v1786 = vpack.c.b16 %v1710, %v1706
        %v1787 = vpack.c.b16 %v1711, %v1707
        %v1788 = vpack.c.b16 %v1712, %v1708
        %v1789 = vpack.c.b16 %v1713, %v1709
        %v1790 = vpack.c.b16 %v1718, %v1714
        %v1791 = vpack.c.b16 %v1719, %v1715
        %v1792 = vpack.c.b16 %v1720, %v1716
        %v1793 = vpack.c.b16 %v1721, %v1717
        %v1794 = vpack.c.b16 %v1726, %v1722
        %v1795 = vpack.c.b16 %v1727, %v1723
        %v1796 = vpack.c.b16 %v1728, %v1724
        %v1797 = vpack.c.b16 %v1729, %v1725
        %v1798 = vpack.c.b16 %v1734, %v1730
        %v1799 = vpack.c.b16 %v1735, %v1731
        %v1800 = vpack.c.b16 %v1736, %v1732
        %v1801 = vpack.c.b16 %v1737, %v1733
        %1866 = vmatprep.subr.bf16.mxu0 %v1767
        %1867 = vmatpush1.bf16.msra.mxu0 %v1766
        %1868 = vmatprep.subr.bf16.mxu0 %v1763
        %1869 = vmatpush1.bf16.msra.mxu0 %v1762
        %1870 = vmatprep.subr.bf16.mxu0 %v1759
        %1871 = vmatpush1.bf16.msra.mxu0 %v1758
        %1872 = vmatprep.subr.bf16.mxu0 %v1755
        %1873 = vmatpush1.bf16.msra.mxu0 %v1754
        %1874 = vmatprep.subr.bf16.mxu0 %v1751
        %1875 = vmatpush1.bf16.msra.mxu0 %v1750
        %1876 = vmatprep.subr.bf16.mxu0 %v1747
        %1877 = vmatpush1.bf16.msra.mxu0 %v1746
        %1878 = vmatprep.subr.bf16.mxu0 %v1743
        %1879 = vmatpush1.bf16.msra.mxu0 %v1742
        %1880 = vmatprep.subr.bf16.mxu0 %v1739
        %1881 = vmatpush1.bf16.msra.mxu0 %v1738
        %1882 = vmatprep.subr.bf16.mxu0 %v1799
        %1883 = vmatpush2.bf16.msra.mxu0 %v1798
        %1884 = vmatprep.subr.bf16.mxu0 %v1795
        %1885 = vmatpush2.bf16.msra.mxu0 %v1794
        %1886 = vmatprep.subr.bf16.mxu0 %v1791
        %1887 = vmatpush2.bf16.msra.mxu0 %v1790
        %1888 = vmatprep.subr.bf16.mxu0 %v1787
        %1889 = vmatpush2.bf16.msra.mxu0 %v1786
        %1890 = vmatprep.subr.bf16.mxu0 %v1783
        %1891 = vmatpush2.bf16.msra.mxu0 %v1782
        %1892 = vmatprep.subr.bf16.mxu0 %v1779
        %1893 = vmatpush2.bf16.msra.mxu0 %v1778
        %1894 = vmatprep.subr.bf16.mxu0 %v1775
        %1895 = vmatpush2.bf16.msra.mxu0 %v1774
        %1896 = vmatprep.subr.bf16.mxu0 %v1771
        %1897 = vmatpush2.bf16.msra.mxu0 %v1770
        %1898 = vmatprep.mubr.bf16.mxu0 %v1459
        %1899 = vmatmul.mubr.bf16.gmra.mxu0 %v1458
        %v1900 = vpop.f32.mrf.mxu0
        %v1901 = vadd.f32 %v1529, %v1900
        %v1902 = vpop.f32.mrf.mxu0
        %v1903 = vadd.f32 %v1533, %v1902
        %v1904 = vpop.f32.mrf.mxu0
        %v1905 = vadd.f32 %v1529, %v1904
        %v1906 = vpop.f32.mrf.mxu0
        %v1907 = vadd.f32 %v1533, %v1906
        %1908 = vdwg.mxu0
        %1909 = vmatprep.subr.bf16.mxu0 %v1769
        %1910 = vmatpush1.bf16.msra.mxu0 %v1768
        %1911 = vmatprep.subr.bf16.mxu0 %v1765
        %1912 = vmatpush1.bf16.msra.mxu0 %v1764
        %1913 = vmatprep.subr.bf16.mxu0 %v1761
        %1914 = vmatpush1.bf16.msra.mxu0 %v1760
        %1915 = vmatprep.subr.bf16.mxu0 %v1757
        %1916 = vmatpush1.bf16.msra.mxu0 %v1756
        %1917 = vmatprep.subr.bf16.mxu0 %v1753
        %1918 = vmatpush1.bf16.msra.mxu0 %v1752
        %1919 = vmatprep.subr.bf16.mxu0 %v1749
        %1920 = vmatpush1.bf16.msra.mxu0 %v1748
        %1921 = vmatprep.subr.bf16.mxu0 %v1745
        %1922 = vmatpush1.bf16.msra.mxu0 %v1744
        %1923 = vmatprep.subr.bf16.mxu0 %v1741
        %1924 = vmatpush1.bf16.msra.mxu0 %v1740
        %1925 = vmatprep.subr.bf16.mxu0 %v1801
        %1926 = vmatpush2.bf16.msra.mxu0 %v1800
        %1927 = vmatprep.subr.bf16.mxu0 %v1797
        %1928 = vmatpush2.bf16.msra.mxu0 %v1796
        %1929 = vmatprep.subr.bf16.mxu0 %v1793
        %1930 = vmatpush2.bf16.msra.mxu0 %v1792
        %1931 = vmatprep.subr.bf16.mxu0 %v1789
        %1932 = vmatpush2.bf16.msra.mxu0 %v1788
        %1933 = vmatprep.subr.bf16.mxu0 %v1785
        %1934 = vmatpush2.bf16.msra.mxu0 %v1784
        %1935 = vmatprep.subr.bf16.mxu0 %v1781
        %1936 = vmatpush2.bf16.msra.mxu0 %v1780
        %1937 = vmatprep.subr.bf16.mxu0 %v1777
        %1938 = vmatpush2.bf16.msra.mxu0 %v1776
        %1939 = vmatprep.subr.bf16.mxu0 %v1773
        %1940 = vmatpush2.bf16.msra.mxu0 %v1772
        %1941 = vmatprep.mubr.bf16.mxu0 %v1459
        %1942 = vmatmul.mubr.bf16.gmra.mxu0 %v1458
        %v1943 = vpop.f32.mrf.mxu0
        %v1944 = vadd.f32 %v1537, %v1943
        %v1945 = vpop.f32.mrf.mxu0
        %v1946 = vadd.f32 %v1541, %v1945
        %v1947 = vpop.f32.mrf.mxu0
        %v1948 = vadd.f32 %v1537, %v1947
        %v1949 = vpop.f32.mrf.mxu0
        %v1950 = vadd.f32 %v1541, %v1949
        %1951 = vdwg.mxu0
        %v1952 = vmax.f32 %v1901, 0.0
        %v1953 = vmax.f32 %v1903, 0.0
        %v1954 = vmax.f32 %v1944, 0.0
        %v1955 = vmax.f32 %v1946, 0.0
        %v1956 = vmax.f32 %v1905, 0.0
        %v1957 = vmax.f32 %v1907, 0.0
        %v1958 = vmax.f32 %v1948, 0.0
        %v1959 = vmax.f32 %v1950, 0.0
        %v1960 = vpack.c.bf16 %v1956, %v1952
        %v1961 = vpack.c.bf16 %v1957, %v1953
        %v1962 = vpack.c.bf16 %v1958, %v1954
        %v1963 = vpack.c.bf16 %v1959, %v1955
        %v1964 = vld [vmem:[%s466] sm:$0xff]
        %v1965 = vld [vmem:[%s466 + $0x8] sm:$0xff]
        %v1966 = vld [vmem:[%s466 + $0x10] sm:$0xff]
        %v1967 = vld [vmem:[%s466 + $0x18] sm:$0xff]
        %v1968 = vld [vmem:[%s466 + $0x20] sm:$0xff]
        %v1969 = vld [vmem:[%s466 + $0x28] sm:$0xff]
        %v1970 = vld [vmem:[%s466 + $0x30] sm:$0xff]
        %v1971 = vld [vmem:[%s466 + $0x38] sm:$0xff]
        %v1972 = vld [vmem:[%s466 + $0x40] sm:$0xff]
        %v1973 = vld [vmem:[%s466 + $0x48] sm:$0xff]
        %v1974 = vld [vmem:[%s466 + $0x50] sm:$0xff]
        %v1975 = vld [vmem:[%s466 + $0x58] sm:$0xff]
        %v1976 = vld [vmem:[%s466 + $0x60] sm:$0xff]
        %v1977 = vld [vmem:[%s466 + $0x68] sm:$0xff]
        %v1978 = vld [vmem:[%s466 + $0x70] sm:$0xff]
        %v1979 = vld [vmem:[%s466 + $0x78] sm:$0xff]
        %v1980 = vld [vmem:[%s466 + $0x80] sm:$0xff]
        %v1981 = vld [vmem:[%s466 + $0x88] sm:$0xff]
        %v1982 = vld [vmem:[%s466 + $0x90] sm:$0xff]
        %v1983 = vld [vmem:[%s466 + $0x98] sm:$0xff]
        %v1984 = vld [vmem:[%s466 + $0xa0] sm:$0xff]
        %v1985 = vld [vmem:[%s466 + $0xa8] sm:$0xff]
        %v1986 = vld [vmem:[%s466 + $0xb0] sm:$0xff]
        %v1987 = vld [vmem:[%s466 + $0xb8] sm:$0xff]
        %v1988 = vld [vmem:[%s466 + $0xc0] sm:$0xff]
        %v1989 = vld [vmem:[%s466 + $0xc8] sm:$0xff]
        %v1990 = vld [vmem:[%s466 + $0xd0] sm:$0xff]
        %v1991 = vld [vmem:[%s466 + $0xd8] sm:$0xff]
        %v1992 = vld [vmem:[%s466 + $0xe0] sm:$0xff]
        %v1993 = vld [vmem:[%s466 + $0xe8] sm:$0xff]
        %v1994 = vld [vmem:[%s466 + $0xf0] sm:$0xff]
        %v1995 = vld [vmem:[%s466 + $0xf8] sm:$0xff]
        %v1996 = vld [vmem:[%s466 + $0x100] sm:$0xff]
        %v1997 = vld [vmem:[%s466 + $0x108] sm:$0xff]
        %v1998 = vld [vmem:[%s466 + $0x110] sm:$0xff]
        %v1999 = vld [vmem:[%s466 + $0x118] sm:$0xff]
        %v2000 = vld [vmem:[%s466 + $0x120] sm:$0xff]
        %v2001 = vld [vmem:[%s466 + $0x128] sm:$0xff]
        %v2002 = vld [vmem:[%s466 + $0x130] sm:$0xff]
        %v2003 = vld [vmem:[%s466 + $0x138] sm:$0xff]
        %v2004 = vld [vmem:[%s466 + $0x140] sm:$0xff]
        %v2005 = vld [vmem:[%s466 + $0x148] sm:$0xff]
        %v2006 = vld [vmem:[%s466 + $0x150] sm:$0xff]
        %v2007 = vld [vmem:[%s466 + $0x158] sm:$0xff]
        %v2008 = vld [vmem:[%s466 + $0x160] sm:$0xff]
        %v2009 = vld [vmem:[%s466 + $0x168] sm:$0xff]
        %v2010 = vld [vmem:[%s466 + $0x170] sm:$0xff]
        %v2011 = vld [vmem:[%s466 + $0x178] sm:$0xff]
        %v2012 = vld [vmem:[%s466 + $0x180] sm:$0xff]
        %v2013 = vld [vmem:[%s466 + $0x188] sm:$0xff]
        %v2014 = vld [vmem:[%s466 + $0x190] sm:$0xff]
        %v2015 = vld [vmem:[%s466 + $0x198] sm:$0xff]
        %v2016 = vld [vmem:[%s466 + $0x1a0] sm:$0xff]
        %v2017 = vld [vmem:[%s466 + $0x1a8] sm:$0xff]
        %v2018 = vld [vmem:[%s466 + $0x1b0] sm:$0xff]
        %v2019 = vld [vmem:[%s466 + $0x1b8] sm:$0xff]
        %v2020 = vld [vmem:[%s466 + $0x1c0] sm:$0xff]
        %v2021 = vld [vmem:[%s466 + $0x1c8] sm:$0xff]
        %v2022 = vld [vmem:[%s466 + $0x1d0] sm:$0xff]
        %v2023 = vld [vmem:[%s466 + $0x1d8] sm:$0xff]
        %v2024 = vld [vmem:[%s466 + $0x1e0] sm:$0xff]
        %v2025 = vld [vmem:[%s466 + $0x1e8] sm:$0xff]
        %v2026 = vld [vmem:[%s466 + $0x1f0] sm:$0xff]
        %v2027 = vld [vmem:[%s466 + $0x1f8] sm:$0xff]
        %v2028 = vld [vmem:[%s466 + $0x200] sm:$0xff]
        %v2029 = vld [vmem:[%s466 + $0x208] sm:$0xff]
        %v2030 = vld [vmem:[%s466 + $0x210] sm:$0xff]
        %v2031 = vld [vmem:[%s466 + $0x218] sm:$0xff]
        %v2032 = vld [vmem:[%s466 + $0x220] sm:$0xff]
        %v2033 = vld [vmem:[%s466 + $0x228] sm:$0xff]
        %v2034 = vld [vmem:[%s466 + $0x230] sm:$0xff]
        %v2035 = vld [vmem:[%s466 + $0x238] sm:$0xff]
        %v2036 = vld [vmem:[%s466 + $0x240] sm:$0xff]
        %v2037 = vld [vmem:[%s466 + $0x248] sm:$0xff]
        %v2038 = vld [vmem:[%s466 + $0x250] sm:$0xff]
        %v2039 = vld [vmem:[%s466 + $0x258] sm:$0xff]
        %v2040 = vld [vmem:[%s466 + $0x260] sm:$0xff]
        %v2041 = vld [vmem:[%s466 + $0x268] sm:$0xff]
        %v2042 = vld [vmem:[%s466 + $0x270] sm:$0xff]
        %v2043 = vld [vmem:[%s466 + $0x278] sm:$0xff]
        %v2044 = vld [vmem:[%s466 + $0x280] sm:$0xff]
        %v2045 = vld [vmem:[%s466 + $0x288] sm:$0xff]
        %v2046 = vld [vmem:[%s466 + $0x290] sm:$0xff]
        %v2047 = vld [vmem:[%s466 + $0x298] sm:$0xff]
        %v2048 = vld [vmem:[%s466 + $0x2a0] sm:$0xff]
        %v2049 = vld [vmem:[%s466 + $0x2a8] sm:$0xff]
        %v2050 = vld [vmem:[%s466 + $0x2b0] sm:$0xff]
        %v2051 = vld [vmem:[%s466 + $0x2b8] sm:$0xff]
        %v2052 = vld [vmem:[%s466 + $0x2c0] sm:$0xff]
        %v2053 = vld [vmem:[%s466 + $0x2c8] sm:$0xff]
        %v2054 = vld [vmem:[%s466 + $0x2d0] sm:$0xff]
        %v2055 = vld [vmem:[%s466 + $0x2d8] sm:$0xff]
        %v2056 = vld [vmem:[%s466 + $0x2e0] sm:$0xff]
        %v2057 = vld [vmem:[%s466 + $0x2e8] sm:$0xff]
        %v2058 = vld [vmem:[%s466 + $0x2f0] sm:$0xff]
        %v2059 = vld [vmem:[%s466 + $0x2f8] sm:$0xff]
        %v2060 = vld [vmem:[%s466 + $0x300] sm:$0xff]
        %v2061 = vld [vmem:[%s466 + $0x308] sm:$0xff]
        %v2062 = vld [vmem:[%s466 + $0x310] sm:$0xff]
        %v2063 = vld [vmem:[%s466 + $0x318] sm:$0xff]
        %v2064 = vld [vmem:[%s466 + $0x320] sm:$0xff]
        %v2065 = vld [vmem:[%s466 + $0x328] sm:$0xff]
        %v2066 = vld [vmem:[%s466 + $0x330] sm:$0xff]
        %v2067 = vld [vmem:[%s466 + $0x338] sm:$0xff]
        %v2068 = vld [vmem:[%s466 + $0x340] sm:$0xff]
        %v2069 = vld [vmem:[%s466 + $0x348] sm:$0xff]
        %v2070 = vld [vmem:[%s466 + $0x350] sm:$0xff]
        %v2071 = vld [vmem:[%s466 + $0x358] sm:$0xff]
        %v2072 = vld [vmem:[%s466 + $0x360] sm:$0xff]
        %v2073 = vld [vmem:[%s466 + $0x368] sm:$0xff]
        %v2074 = vld [vmem:[%s466 + $0x370] sm:$0xff]
        %v2075 = vld [vmem:[%s466 + $0x378] sm:$0xff]
        %v2076 = vld [vmem:[%s466 + $0x380] sm:$0xff]
        %v2077 = vld [vmem:[%s466 + $0x388] sm:$0xff]
        %v2078 = vld [vmem:[%s466 + $0x390] sm:$0xff]
        %v2079 = vld [vmem:[%s466 + $0x398] sm:$0xff]
        %v2080 = vld [vmem:[%s466 + $0x3a0] sm:$0xff]
        %v2081 = vld [vmem:[%s466 + $0x3a8] sm:$0xff]
        %v2082 = vld [vmem:[%s466 + $0x3b0] sm:$0xff]
        %v2083 = vld [vmem:[%s466 + $0x3b8] sm:$0xff]
        %v2084 = vld [vmem:[%s466 + $0x3c0] sm:$0xff]
        %v2085 = vld [vmem:[%s466 + $0x3c8] sm:$0xff]
        %v2086 = vld [vmem:[%s466 + $0x3d0] sm:$0xff]
        %v2087 = vld [vmem:[%s466 + $0x3d8] sm:$0xff]
        %v2088 = vld [vmem:[%s466 + $0x3e0] sm:$0xff]
        %v2089 = vld [vmem:[%s466 + $0x3e8] sm:$0xff]
        %v2090 = vld [vmem:[%s466 + $0x3f0] sm:$0xff]
        %v2091 = vld [vmem:[%s466 + $0x3f8] sm:$0xff]
        %v2092 = vld [vmem:[%s466 + $0x400] sm:$0xff]
        %v2093 = vld [vmem:[%s466 + $0x408] sm:$0xff]
        %v2094 = vld [vmem:[%s466 + $0x410] sm:$0xff]
        %v2095 = vld [vmem:[%s466 + $0x418] sm:$0xff]
        %v2096 = vld [vmem:[%s466 + $0x420] sm:$0xff]
        %v2097 = vld [vmem:[%s466 + $0x428] sm:$0xff]
        %v2098 = vld [vmem:[%s466 + $0x430] sm:$0xff]
        %v2099 = vld [vmem:[%s466 + $0x438] sm:$0xff]
        %v2100 = vld [vmem:[%s466 + $0x440] sm:$0xff]
        %v2101 = vld [vmem:[%s466 + $0x448] sm:$0xff]
        %v2102 = vld [vmem:[%s466 + $0x450] sm:$0xff]
        %v2103 = vld [vmem:[%s466 + $0x458] sm:$0xff]
        %v2104 = vld [vmem:[%s466 + $0x460] sm:$0xff]
        %v2105 = vld [vmem:[%s466 + $0x468] sm:$0xff]
        %v2106 = vld [vmem:[%s466 + $0x470] sm:$0xff]
        %v2107 = vld [vmem:[%s466 + $0x478] sm:$0xff]
        %v2108 = vld [vmem:[%s466 + $0x480] sm:$0xff]
        %v2109 = vld [vmem:[%s466 + $0x488] sm:$0xff]
        %v2110 = vld [vmem:[%s466 + $0x490] sm:$0xff]
        %v2111 = vld [vmem:[%s466 + $0x498] sm:$0xff]
        %v2112 = vld [vmem:[%s466 + $0x4a0] sm:$0xff]
        %v2113 = vld [vmem:[%s466 + $0x4a8] sm:$0xff]
        %v2114 = vld [vmem:[%s466 + $0x4b0] sm:$0xff]
        %v2115 = vld [vmem:[%s466 + $0x4b8] sm:$0xff]
        %v2116 = vld [vmem:[%s466 + $0x4c0] sm:$0xff]
        %v2117 = vld [vmem:[%s466 + $0x4c8] sm:$0xff]
        %v2118 = vld [vmem:[%s466 + $0x4d0] sm:$0xff]
        %v2119 = vld [vmem:[%s466 + $0x4d8] sm:$0xff]
        %v2120 = vld [vmem:[%s466 + $0x4e0] sm:$0xff]
        %v2121 = vld [vmem:[%s466 + $0x4e8] sm:$0xff]
        %v2122 = vld [vmem:[%s466 + $0x4f0] sm:$0xff]
        %v2123 = vld [vmem:[%s466 + $0x4f8] sm:$0xff]
        %v2124 = vld [vmem:[%s466 + $0x500] sm:$0xff]
        %v2125 = vld [vmem:[%s466 + $0x508] sm:$0xff]
        %v2126 = vld [vmem:[%s466 + $0x510] sm:$0xff]
        %v2127 = vld [vmem:[%s466 + $0x518] sm:$0xff]
        %v2128 = vld [vmem:[%s466 + $0x520] sm:$0xff]
        %v2129 = vld [vmem:[%s466 + $0x528] sm:$0xff]
        %v2130 = vld [vmem:[%s466 + $0x530] sm:$0xff]
        %v2131 = vld [vmem:[%s466 + $0x538] sm:$0xff]
        %v2132 = vld [vmem:[%s466 + $0x540] sm:$0xff]
        %v2133 = vld [vmem:[%s466 + $0x548] sm:$0xff]
        %v2134 = vld [vmem:[%s466 + $0x550] sm:$0xff]
        %v2135 = vld [vmem:[%s466 + $0x558] sm:$0xff]
        %v2136 = vld [vmem:[%s466 + $0x560] sm:$0xff]
        %v2137 = vld [vmem:[%s466 + $0x568] sm:$0xff]
        %v2138 = vld [vmem:[%s466 + $0x570] sm:$0xff]
        %v2139 = vld [vmem:[%s466 + $0x578] sm:$0xff]
        %v2140 = vld [vmem:[%s466 + $0x580] sm:$0xff]
        %v2141 = vld [vmem:[%s466 + $0x588] sm:$0xff]
        %v2142 = vld [vmem:[%s466 + $0x590] sm:$0xff]
        %v2143 = vld [vmem:[%s466 + $0x598] sm:$0xff]
        %v2144 = vld [vmem:[%s466 + $0x5a0] sm:$0xff]
        %v2145 = vld [vmem:[%s466 + $0x5a8] sm:$0xff]
        %v2146 = vld [vmem:[%s466 + $0x5b0] sm:$0xff]
        %v2147 = vld [vmem:[%s466 + $0x5b8] sm:$0xff]
        %v2148 = vld [vmem:[%s466 + $0x5c0] sm:$0xff]
        %v2149 = vld [vmem:[%s466 + $0x5c8] sm:$0xff]
        %v2150 = vld [vmem:[%s466 + $0x5d0] sm:$0xff]
        %v2151 = vld [vmem:[%s466 + $0x5d8] sm:$0xff]
        %v2152 = vld [vmem:[%s466 + $0x5e0] sm:$0xff]
        %v2153 = vld [vmem:[%s466 + $0x5e8] sm:$0xff]
        %v2154 = vld [vmem:[%s466 + $0x5f0] sm:$0xff]
        %v2155 = vld [vmem:[%s466 + $0x5f8] sm:$0xff]
        %v2156 = vld [vmem:[%s466 + $0x600] sm:$0xff]
        %v2157 = vld [vmem:[%s466 + $0x608] sm:$0xff]
        %v2158 = vld [vmem:[%s466 + $0x610] sm:$0xff]
        %v2159 = vld [vmem:[%s466 + $0x618] sm:$0xff]
        %v2160 = vld [vmem:[%s466 + $0x620] sm:$0xff]
        %v2161 = vld [vmem:[%s466 + $0x628] sm:$0xff]
        %v2162 = vld [vmem:[%s466 + $0x630] sm:$0xff]
        %v2163 = vld [vmem:[%s466 + $0x638] sm:$0xff]
        %v2164 = vld [vmem:[%s466 + $0x640] sm:$0xff]
        %v2165 = vld [vmem:[%s466 + $0x648] sm:$0xff]
        %v2166 = vld [vmem:[%s466 + $0x650] sm:$0xff]
        %v2167 = vld [vmem:[%s466 + $0x658] sm:$0xff]
        %v2168 = vld [vmem:[%s466 + $0x660] sm:$0xff]
        %v2169 = vld [vmem:[%s466 + $0x668] sm:$0xff]
        %v2170 = vld [vmem:[%s466 + $0x670] sm:$0xff]
        %v2171 = vld [vmem:[%s466 + $0x678] sm:$0xff]
        %v2172 = vld [vmem:[%s466 + $0x680] sm:$0xff]
        %v2173 = vld [vmem:[%s466 + $0x688] sm:$0xff]
        %v2174 = vld [vmem:[%s466 + $0x690] sm:$0xff]
        %v2175 = vld [vmem:[%s466 + $0x698] sm:$0xff]
        %v2176 = vld [vmem:[%s466 + $0x6a0] sm:$0xff]
        %v2177 = vld [vmem:[%s466 + $0x6a8] sm:$0xff]
        %v2178 = vld [vmem:[%s466 + $0x6b0] sm:$0xff]
        %v2179 = vld [vmem:[%s466 + $0x6b8] sm:$0xff]
        %v2180 = vld [vmem:[%s466 + $0x6c0] sm:$0xff]
        %v2181 = vld [vmem:[%s466 + $0x6c8] sm:$0xff]
        %v2182 = vld [vmem:[%s466 + $0x6d0] sm:$0xff]
        %v2183 = vld [vmem:[%s466 + $0x6d8] sm:$0xff]
        %v2184 = vld [vmem:[%s466 + $0x6e0] sm:$0xff]
        %v2185 = vld [vmem:[%s466 + $0x6e8] sm:$0xff]
        %v2186 = vld [vmem:[%s466 + $0x6f0] sm:$0xff]
        %v2187 = vld [vmem:[%s466 + $0x6f8] sm:$0xff]
        %v2188 = vld [vmem:[%s466 + $0x700] sm:$0xff]
        %v2189 = vld [vmem:[%s466 + $0x708] sm:$0xff]
        %v2190 = vld [vmem:[%s466 + $0x710] sm:$0xff]
        %v2191 = vld [vmem:[%s466 + $0x718] sm:$0xff]
        %v2192 = vld [vmem:[%s466 + $0x720] sm:$0xff]
        %v2193 = vld [vmem:[%s466 + $0x728] sm:$0xff]
        %v2194 = vld [vmem:[%s466 + $0x730] sm:$0xff]
        %v2195 = vld [vmem:[%s466 + $0x738] sm:$0xff]
        %v2196 = vld [vmem:[%s466 + $0x740] sm:$0xff]
        %v2197 = vld [vmem:[%s466 + $0x748] sm:$0xff]
        %v2198 = vld [vmem:[%s466 + $0x750] sm:$0xff]
        %v2199 = vld [vmem:[%s466 + $0x758] sm:$0xff]
        %v2200 = vld [vmem:[%s466 + $0x760] sm:$0xff]
        %v2201 = vld [vmem:[%s466 + $0x768] sm:$0xff]
        %v2202 = vld [vmem:[%s466 + $0x770] sm:$0xff]
        %v2203 = vld [vmem:[%s466 + $0x778] sm:$0xff]
        %v2204 = vld [vmem:[%s466 + $0x780] sm:$0xff]
        %v2205 = vld [vmem:[%s466 + $0x788] sm:$0xff]
        %v2206 = vld [vmem:[%s466 + $0x790] sm:$0xff]
        %v2207 = vld [vmem:[%s466 + $0x798] sm:$0xff]
        %v2208 = vld [vmem:[%s466 + $0x7a0] sm:$0xff]
        %v2209 = vld [vmem:[%s466 + $0x7a8] sm:$0xff]
        %v2210 = vld [vmem:[%s466 + $0x7b0] sm:$0xff]
        %v2211 = vld [vmem:[%s466 + $0x7b8] sm:$0xff]
        %v2212 = vld [vmem:[%s466 + $0x7c0] sm:$0xff]
        %v2213 = vld [vmem:[%s466 + $0x7c8] sm:$0xff]
        %v2214 = vld [vmem:[%s466 + $0x7d0] sm:$0xff]
        %v2215 = vld [vmem:[%s466 + $0x7d8] sm:$0xff]
        %v2216 = vld [vmem:[%s466 + $0x7e0] sm:$0xff]
        %v2217 = vld [vmem:[%s466 + $0x7e8] sm:$0xff]
        %v2218 = vld [vmem:[%s466 + $0x7f0] sm:$0xff]
        %v2219 = vld [vmem:[%s466 + $0x7f8] sm:$0xff]
        %v2220 = vld [vmem:[%s466 + $0x800] sm:$0xff]
        %v2221 = vld [vmem:[%s466 + $0x808] sm:$0xff]
        %v2222 = vld [vmem:[%s466 + $0x810] sm:$0xff]
        %v2223 = vld [vmem:[%s466 + $0x818] sm:$0xff]
        %v2224 = vld [vmem:[%s466 + $0x820] sm:$0xff]
        %v2225 = vld [vmem:[%s466 + $0x828] sm:$0xff]
        %v2226 = vld [vmem:[%s466 + $0x830] sm:$0xff]
        %v2227 = vld [vmem:[%s466 + $0x838] sm:$0xff]
        %v2228 = vld [vmem:[%s466 + $0x840] sm:$0xff]
        %v2229 = vld [vmem:[%s466 + $0x848] sm:$0xff]
        %v2230 = vld [vmem:[%s466 + $0x850] sm:$0xff]
        %v2231 = vld [vmem:[%s466 + $0x858] sm:$0xff]
        %v2232 = vld [vmem:[%s466 + $0x860] sm:$0xff]
        %v2233 = vld [vmem:[%s466 + $0x868] sm:$0xff]
        %v2234 = vld [vmem:[%s466 + $0x870] sm:$0xff]
        %v2235 = vld [vmem:[%s466 + $0x878] sm:$0xff]
        %v2236 = vld [vmem:[%s466 + $0x880] sm:$0xff]
        %v2237 = vld [vmem:[%s466 + $0x888] sm:$0xff]
        %v2238 = vld [vmem:[%s466 + $0x890] sm:$0xff]
        %v2239 = vld [vmem:[%s466 + $0x898] sm:$0xff]
        %v2240 = vld [vmem:[%s466 + $0x8a0] sm:$0xff]
        %v2241 = vld [vmem:[%s466 + $0x8a8] sm:$0xff]
        %v2242 = vld [vmem:[%s466 + $0x8b0] sm:$0xff]
        %v2243 = vld [vmem:[%s466 + $0x8b8] sm:$0xff]
        %v2244 = vld [vmem:[%s466 + $0x8c0] sm:$0xff]
        %v2245 = vld [vmem:[%s466 + $0x8c8] sm:$0xff]
        %v2246 = vld [vmem:[%s466 + $0x8d0] sm:$0xff]
        %v2247 = vld [vmem:[%s466 + $0x8d8] sm:$0xff]
        %v2248 = vld [vmem:[%s466 + $0x8e0] sm:$0xff]
        %v2249 = vld [vmem:[%s466 + $0x8e8] sm:$0xff]
        %v2250 = vld [vmem:[%s466 + $0x8f0] sm:$0xff]
        %v2251 = vld [vmem:[%s466 + $0x8f8] sm:$0xff]
        %v2252 = vld [vmem:[%s466 + $0x900] sm:$0xff]
        %v2253 = vld [vmem:[%s466 + $0x908] sm:$0xff]
        %v2254 = vld [vmem:[%s466 + $0x910] sm:$0xff]
        %v2255 = vld [vmem:[%s466 + $0x918] sm:$0xff]
        %v2256 = vld [vmem:[%s466 + $0x920] sm:$0xff]
        %v2257 = vld [vmem:[%s466 + $0x928] sm:$0xff]
        %v2258 = vld [vmem:[%s466 + $0x930] sm:$0xff]
        %v2259 = vld [vmem:[%s466 + $0x938] sm:$0xff]
        %v2260 = vld [vmem:[%s466 + $0x940] sm:$0xff]
        %v2261 = vld [vmem:[%s466 + $0x948] sm:$0xff]
        %v2262 = vld [vmem:[%s466 + $0x950] sm:$0xff]
        %v2263 = vld [vmem:[%s466 + $0x958] sm:$0xff]
        %v2264 = vld [vmem:[%s466 + $0x960] sm:$0xff]
        %v2265 = vld [vmem:[%s466 + $0x968] sm:$0xff]
        %v2266 = vld [vmem:[%s466 + $0x970] sm:$0xff]
        %v2267 = vld [vmem:[%s466 + $0x978] sm:$0xff]
        %v2268 = vld [vmem:[%s466 + $0x980] sm:$0xff]
        %v2269 = vld [vmem:[%s466 + $0x988] sm:$0xff]
        %v2270 = vld [vmem:[%s466 + $0x990] sm:$0xff]
        %v2271 = vld [vmem:[%s466 + $0x998] sm:$0xff]
        %v2272 = vld [vmem:[%s466 + $0x9a0] sm:$0xff]
        %v2273 = vld [vmem:[%s466 + $0x9a8] sm:$0xff]
        %v2274 = vld [vmem:[%s466 + $0x9b0] sm:$0xff]
        %v2275 = vld [vmem:[%s466 + $0x9b8] sm:$0xff]
        %v2276 = vld [vmem:[%s466 + $0x9c0] sm:$0xff]
        %v2277 = vld [vmem:[%s466 + $0x9c8] sm:$0xff]
        %v2278 = vld [vmem:[%s466 + $0x9d0] sm:$0xff]
        %v2279 = vld [vmem:[%s466 + $0x9d8] sm:$0xff]
        %v2280 = vld [vmem:[%s466 + $0x9e0] sm:$0xff]
        %v2281 = vld [vmem:[%s466 + $0x9e8] sm:$0xff]
        %v2282 = vld [vmem:[%s466 + $0x9f0] sm:$0xff]
        %v2283 = vld [vmem:[%s466 + $0x9f8] sm:$0xff]
        %v2284 = vld [vmem:[%s466 + $0xa00] sm:$0xff]
        %v2285 = vld [vmem:[%s466 + $0xa08] sm:$0xff]
        %v2286 = vld [vmem:[%s466 + $0xa10] sm:$0xff]
        %v2287 = vld [vmem:[%s466 + $0xa18] sm:$0xff]
        %v2288 = vld [vmem:[%s466 + $0xa20] sm:$0xff]
        %v2289 = vld [vmem:[%s466 + $0xa28] sm:$0xff]
        %v2290 = vld [vmem:[%s466 + $0xa30] sm:$0xff]
        %v2291 = vld [vmem:[%s466 + $0xa38] sm:$0xff]
        %v2292 = vld [vmem:[%s466 + $0xa40] sm:$0xff]
        %v2293 = vld [vmem:[%s466 + $0xa48] sm:$0xff]
        %v2294 = vld [vmem:[%s466 + $0xa50] sm:$0xff]
        %v2295 = vld [vmem:[%s466 + $0xa58] sm:$0xff]
        %v2296 = vld [vmem:[%s466 + $0xa60] sm:$0xff]
        %v2297 = vld [vmem:[%s466 + $0xa68] sm:$0xff]
        %v2298 = vld [vmem:[%s466 + $0xa70] sm:$0xff]
        %v2299 = vld [vmem:[%s466 + $0xa78] sm:$0xff]
        %v2300 = vld [vmem:[%s466 + $0xa80] sm:$0xff]
        %v2301 = vld [vmem:[%s466 + $0xa88] sm:$0xff]
        %v2302 = vld [vmem:[%s466 + $0xa90] sm:$0xff]
        %v2303 = vld [vmem:[%s466 + $0xa98] sm:$0xff]
        %v2304 = vld [vmem:[%s466 + $0xaa0] sm:$0xff]
        %v2305 = vld [vmem:[%s466 + $0xaa8] sm:$0xff]
        %v2306 = vld [vmem:[%s466 + $0xab0] sm:$0xff]
        %v2307 = vld [vmem:[%s466 + $0xab8] sm:$0xff]
        %v2308 = vld [vmem:[%s466 + $0xac0] sm:$0xff]
        %v2309 = vld [vmem:[%s466 + $0xac8] sm:$0xff]
        %v2310 = vld [vmem:[%s466 + $0xad0] sm:$0xff]
        %v2311 = vld [vmem:[%s466 + $0xad8] sm:$0xff]
        %v2312 = vld [vmem:[%s466 + $0xae0] sm:$0xff]
        %v2313 = vld [vmem:[%s466 + $0xae8] sm:$0xff]
        %v2314 = vld [vmem:[%s466 + $0xaf0] sm:$0xff]
        %v2315 = vld [vmem:[%s466 + $0xaf8] sm:$0xff]
        %v2316 = vld [vmem:[%s466 + $0xb00] sm:$0xff]
        %v2317 = vld [vmem:[%s466 + $0xb08] sm:$0xff]
        %v2318 = vld [vmem:[%s466 + $0xb10] sm:$0xff]
        %v2319 = vld [vmem:[%s466 + $0xb18] sm:$0xff]
        %v2320 = vld [vmem:[%s466 + $0xb20] sm:$0xff]
        %v2321 = vld [vmem:[%s466 + $0xb28] sm:$0xff]
        %v2322 = vld [vmem:[%s466 + $0xb30] sm:$0xff]
        %v2323 = vld [vmem:[%s466 + $0xb38] sm:$0xff]
        %v2324 = vld [vmem:[%s466 + $0xb40] sm:$0xff]
        %v2325 = vld [vmem:[%s466 + $0xb48] sm:$0xff]
        %v2326 = vld [vmem:[%s466 + $0xb50] sm:$0xff]
        %v2327 = vld [vmem:[%s466 + $0xb58] sm:$0xff]
        %v2328 = vld [vmem:[%s466 + $0xb60] sm:$0xff]
        %v2329 = vld [vmem:[%s466 + $0xb68] sm:$0xff]
        %v2330 = vld [vmem:[%s466 + $0xb70] sm:$0xff]
        %v2331 = vld [vmem:[%s466 + $0xb78] sm:$0xff]
        %v2332 = vld [vmem:[%s466 + $0xb80] sm:$0xff]
        %v2333 = vld [vmem:[%s466 + $0xb88] sm:$0xff]
        %v2334 = vld [vmem:[%s466 + $0xb90] sm:$0xff]
        %v2335 = vld [vmem:[%s466 + $0xb98] sm:$0xff]
        %v2336 = vld [vmem:[%s466 + $0xba0] sm:$0xff]
        %v2337 = vld [vmem:[%s466 + $0xba8] sm:$0xff]
        %v2338 = vld [vmem:[%s466 + $0xbb0] sm:$0xff]
        %v2339 = vld [vmem:[%s466 + $0xbb8] sm:$0xff]
        %v2340 = vld [vmem:[%s466 + $0xbc0] sm:$0xff]
        %v2341 = vld [vmem:[%s466 + $0xbc8] sm:$0xff]
        %v2342 = vld [vmem:[%s466 + $0xbd0] sm:$0xff]
        %v2343 = vld [vmem:[%s466 + $0xbd8] sm:$0xff]
        %v2344 = vld [vmem:[%s466 + $0xbe0] sm:$0xff]
        %v2345 = vld [vmem:[%s466 + $0xbe8] sm:$0xff]
        %v2346 = vld [vmem:[%s466 + $0xbf0] sm:$0xff]
        %v2347 = vld [vmem:[%s466 + $0xbf8] sm:$0xff]
        %v2348 = vld [vmem:[%s466 + $0xc00] sm:$0xff]
        %v2349 = vld [vmem:[%s466 + $0xc08] sm:$0xff]
        %v2350 = vld [vmem:[%s466 + $0xc10] sm:$0xff]
        %v2351 = vld [vmem:[%s466 + $0xc18] sm:$0xff]
        %v2352 = vld [vmem:[%s466 + $0xc20] sm:$0xff]
        %v2353 = vld [vmem:[%s466 + $0xc28] sm:$0xff]
        %v2354 = vld [vmem:[%s466 + $0xc30] sm:$0xff]
        %v2355 = vld [vmem:[%s466 + $0xc38] sm:$0xff]
        %v2356 = vld [vmem:[%s466 + $0xc40] sm:$0xff]
        %v2357 = vld [vmem:[%s466 + $0xc48] sm:$0xff]
        %v2358 = vld [vmem:[%s466 + $0xc50] sm:$0xff]
        %v2359 = vld [vmem:[%s466 + $0xc58] sm:$0xff]
        %v2360 = vld [vmem:[%s466 + $0xc60] sm:$0xff]
        %v2361 = vld [vmem:[%s466 + $0xc68] sm:$0xff]
        %v2362 = vld [vmem:[%s466 + $0xc70] sm:$0xff]
        %v2363 = vld [vmem:[%s466 + $0xc78] sm:$0xff]
        %v2364 = vld [vmem:[%s466 + $0xc80] sm:$0xff]
        %v2365 = vld [vmem:[%s466 + $0xc88] sm:$0xff]
        %v2366 = vld [vmem:[%s466 + $0xc90] sm:$0xff]
        %v2367 = vld [vmem:[%s466 + $0xc98] sm:$0xff]
        %v2368 = vld [vmem:[%s466 + $0xca0] sm:$0xff]
        %v2369 = vld [vmem:[%s466 + $0xca8] sm:$0xff]
        %v2370 = vld [vmem:[%s466 + $0xcb0] sm:$0xff]
        %v2371 = vld [vmem:[%s466 + $0xcb8] sm:$0xff]
        %v2372 = vld [vmem:[%s466 + $0xcc0] sm:$0xff]
        %v2373 = vld [vmem:[%s466 + $0xcc8] sm:$0xff]
        %v2374 = vld [vmem:[%s466 + $0xcd0] sm:$0xff]
        %v2375 = vld [vmem:[%s466 + $0xcd8] sm:$0xff]
        %v2376 = vld [vmem:[%s466 + $0xce0] sm:$0xff]
        %v2377 = vld [vmem:[%s466 + $0xce8] sm:$0xff]
        %v2378 = vld [vmem:[%s466 + $0xcf0] sm:$0xff]
        %v2379 = vld [vmem:[%s466 + $0xcf8] sm:$0xff]
        %v2380 = vld [vmem:[%s466 + $0xd00] sm:$0xff]
        %v2381 = vld [vmem:[%s466 + $0xd08] sm:$0xff]
        %v2382 = vld [vmem:[%s466 + $0xd10] sm:$0xff]
        %v2383 = vld [vmem:[%s466 + $0xd18] sm:$0xff]
        %v2384 = vld [vmem:[%s466 + $0xd20] sm:$0xff]
        %v2385 = vld [vmem:[%s466 + $0xd28] sm:$0xff]
        %v2386 = vld [vmem:[%s466 + $0xd30] sm:$0xff]
        %v2387 = vld [vmem:[%s466 + $0xd38] sm:$0xff]
        %v2388 = vld [vmem:[%s466 + $0xd40] sm:$0xff]
        %v2389 = vld [vmem:[%s466 + $0xd48] sm:$0xff]
        %v2390 = vld [vmem:[%s466 + $0xd50] sm:$0xff]
        %v2391 = vld [vmem:[%s466 + $0xd58] sm:$0xff]
        %v2392 = vld [vmem:[%s466 + $0xd60] sm:$0xff]
        %v2393 = vld [vmem:[%s466 + $0xd68] sm:$0xff]
        %v2394 = vld [vmem:[%s466 + $0xd70] sm:$0xff]
        %v2395 = vld [vmem:[%s466 + $0xd78] sm:$0xff]
        %v2396 = vld [vmem:[%s466 + $0xd80] sm:$0xff]
        %v2397 = vld [vmem:[%s466 + $0xd88] sm:$0xff]
        %v2398 = vld [vmem:[%s466 + $0xd90] sm:$0xff]
        %v2399 = vld [vmem:[%s466 + $0xd98] sm:$0xff]
        %v2400 = vld [vmem:[%s466 + $0xda0] sm:$0xff]
        %v2401 = vld [vmem:[%s466 + $0xda8] sm:$0xff]
        %v2402 = vld [vmem:[%s466 + $0xdb0] sm:$0xff]
        %v2403 = vld [vmem:[%s466 + $0xdb8] sm:$0xff]
        %v2404 = vld [vmem:[%s466 + $0xdc0] sm:$0xff]
        %v2405 = vld [vmem:[%s466 + $0xdc8] sm:$0xff]
        %v2406 = vld [vmem:[%s466 + $0xdd0] sm:$0xff]
        %v2407 = vld [vmem:[%s466 + $0xdd8] sm:$0xff]
        %v2408 = vld [vmem:[%s466 + $0xde0] sm:$0xff]
        %v2409 = vld [vmem:[%s466 + $0xde8] sm:$0xff]
        %v2410 = vld [vmem:[%s466 + $0xdf0] sm:$0xff]
        %v2411 = vld [vmem:[%s466 + $0xdf8] sm:$0xff]
        %v2412 = vld [vmem:[%s466 + $0xe00] sm:$0xff]
        %v2413 = vld [vmem:[%s466 + $0xe08] sm:$0xff]
        %v2414 = vld [vmem:[%s466 + $0xe10] sm:$0xff]
        %v2415 = vld [vmem:[%s466 + $0xe18] sm:$0xff]
        %v2416 = vld [vmem:[%s466 + $0xe20] sm:$0xff]
        %v2417 = vld [vmem:[%s466 + $0xe28] sm:$0xff]
        %v2418 = vld [vmem:[%s466 + $0xe30] sm:$0xff]
        %v2419 = vld [vmem:[%s466 + $0xe38] sm:$0xff]
        %v2420 = vld [vmem:[%s466 + $0xe40] sm:$0xff]
        %v2421 = vld [vmem:[%s466 + $0xe48] sm:$0xff]
        %v2422 = vld [vmem:[%s466 + $0xe50] sm:$0xff]
        %v2423 = vld [vmem:[%s466 + $0xe58] sm:$0xff]
        %v2424 = vld [vmem:[%s466 + $0xe60] sm:$0xff]
        %v2425 = vld [vmem:[%s466 + $0xe68] sm:$0xff]
        %v2426 = vld [vmem:[%s466 + $0xe70] sm:$0xff]
        %v2427 = vld [vmem:[%s466 + $0xe78] sm:$0xff]
        %v2428 = vld [vmem:[%s466 + $0xe80] sm:$0xff]
        %v2429 = vld [vmem:[%s466 + $0xe88] sm:$0xff]
        %v2430 = vld [vmem:[%s466 + $0xe90] sm:$0xff]
        %v2431 = vld [vmem:[%s466 + $0xe98] sm:$0xff]
        %v2432 = vld [vmem:[%s466 + $0xea0] sm:$0xff]
        %v2433 = vld [vmem:[%s466 + $0xea8] sm:$0xff]
        %v2434 = vld [vmem:[%s466 + $0xeb0] sm:$0xff]
        %v2435 = vld [vmem:[%s466 + $0xeb8] sm:$0xff]
        %v2436 = vld [vmem:[%s466 + $0xec0] sm:$0xff]
        %v2437 = vld [vmem:[%s466 + $0xec8] sm:$0xff]
        %v2438 = vld [vmem:[%s466 + $0xed0] sm:$0xff]
        %v2439 = vld [vmem:[%s466 + $0xed8] sm:$0xff]
        %v2440 = vld [vmem:[%s466 + $0xee0] sm:$0xff]
        %v2441 = vld [vmem:[%s466 + $0xee8] sm:$0xff]
        %v2442 = vld [vmem:[%s466 + $0xef0] sm:$0xff]
        %v2443 = vld [vmem:[%s466 + $0xef8] sm:$0xff]
        %v2444 = vld [vmem:[%s466 + $0xf00] sm:$0xff]
        %v2445 = vld [vmem:[%s466 + $0xf08] sm:$0xff]
        %v2446 = vld [vmem:[%s466 + $0xf10] sm:$0xff]
        %v2447 = vld [vmem:[%s466 + $0xf18] sm:$0xff]
        %v2448 = vld [vmem:[%s466 + $0xf20] sm:$0xff]
        %v2449 = vld [vmem:[%s466 + $0xf28] sm:$0xff]
        %v2450 = vld [vmem:[%s466 + $0xf30] sm:$0xff]
        %v2451 = vld [vmem:[%s466 + $0xf38] sm:$0xff]
        %v2452 = vld [vmem:[%s466 + $0xf40] sm:$0xff]
        %v2453 = vld [vmem:[%s466 + $0xf48] sm:$0xff]
        %v2454 = vld [vmem:[%s466 + $0xf50] sm:$0xff]
        %v2455 = vld [vmem:[%s466 + $0xf58] sm:$0xff]
        %v2456 = vld [vmem:[%s466 + $0xf60] sm:$0xff]
        %v2457 = vld [vmem:[%s466 + $0xf68] sm:$0xff]
        %v2458 = vld [vmem:[%s466 + $0xf70] sm:$0xff]
        %v2459 = vld [vmem:[%s466 + $0xf78] sm:$0xff]
        %v2460 = vld [vmem:[%s466 + $0xf80] sm:$0xff]
        %v2461 = vld [vmem:[%s466 + $0xf88] sm:$0xff]
        %v2462 = vld [vmem:[%s466 + $0xf90] sm:$0xff]
        %v2463 = vld [vmem:[%s466 + $0xf98] sm:$0xff]
        %v2464 = vld [vmem:[%s466 + $0xfa0] sm:$0xff]
        %v2465 = vld [vmem:[%s466 + $0xfa8] sm:$0xff]
        %v2466 = vld [vmem:[%s466 + $0xfb0] sm:$0xff]
        %v2467 = vld [vmem:[%s466 + $0xfb8] sm:$0xff]
        %v2468 = vld [vmem:[%s466 + $0xfc0] sm:$0xff]
        %v2469 = vld [vmem:[%s466 + $0xfc8] sm:$0xff]
        %v2470 = vld [vmem:[%s466 + $0xfd0] sm:$0xff]
        %v2471 = vld [vmem:[%s466 + $0xfd8] sm:$0xff]
        %v2472 = vld [vmem:[%s466 + $0xfe0] sm:$0xff]
        %v2473 = vld [vmem:[%s466 + $0xfe8] sm:$0xff]
        %v2474 = vld [vmem:[%s466 + $0xff0] sm:$0xff]
        %v2475 = vld [vmem:[%s466 + $0xff8] sm:$0xff]
        %v2476 = vld [vmem:[%s475] sm:$0xff]
        %v2477 = vld [vmem:[%s475 + $0x8] sm:$0xff]
        %v2480 = vlaneseq
        %v2481 = vshrl.u32 %v2480, 7
        %v2482 = vsub.s32 0, %v2481
        %v2483 = vrot.slane %v2476, %v2482
        %v2484 = vlaneseq
        %v2485 = vshrl.u32 %v2484, 7
        %v2486 = vsub.s32 1, %v2485
        %v2487 = vrot.slane %v2476, %v2486
        %v2488 = vlaneseq
        %v2489 = vshrl.u32 %v2488, 7
        %v2490 = vsub.s32 2, %v2489
        %v2491 = vrot.slane %v2476, %v2490
        %v2492 = vlaneseq
        %v2493 = vshrl.u32 %v2492, 7
        %v2494 = vsub.s32 3, %v2493
        %v2495 = vrot.slane %v2476, %v2494
        %v2496 = vlaneseq
        %v2497 = vshrl.u32 %v2496, 7
        %v2498 = vsub.s32 4, %v2497
        %v2499 = vrot.slane %v2476, %v2498
        %v2500 = vlaneseq
        %v2501 = vshrl.u32 %v2500, 7
        %v2502 = vsub.s32 5, %v2501
        %v2503 = vrot.slane %v2476, %v2502
        %v2504 = vlaneseq
        %v2505 = vshrl.u32 %v2504, 7
        %v2506 = vsub.s32 6, %v2505
        %v2507 = vrot.slane %v2476, %v2506
        %v2508 = vlaneseq
        %v2509 = vshrl.u32 %v2508, 7
        %v2510 = vsub.s32 7, %v2509
        %v2511 = vrot.slane %v2476, %v2510
        %v2512 = vlaneseq
        %v2513 = vshrl.u32 %v2512, 7
        %v2514 = vsub.s32 0, %v2513
        %v2515 = vrot.slane %v2477, %v2514
        %v2516 = vlaneseq
        %v2517 = vshrl.u32 %v2516, 7
        %v2518 = vsub.s32 1, %v2517
        %v2519 = vrot.slane %v2477, %v2518
        %v2520 = vlaneseq
        %v2521 = vshrl.u32 %v2520, 7
        %v2522 = vsub.s32 2, %v2521
        %v2523 = vrot.slane %v2477, %v2522
        %v2524 = vlaneseq
        %v2525 = vshrl.u32 %v2524, 7
        %v2526 = vsub.s32 3, %v2525
        %v2527 = vrot.slane %v2477, %v2526
        %v2528 = vlaneseq
        %v2529 = vshrl.u32 %v2528, 7
        %v2530 = vsub.s32 4, %v2529
        %v2531 = vrot.slane %v2477, %v2530
        %v2532 = vlaneseq
        %v2533 = vshrl.u32 %v2532, 7
        %v2534 = vsub.s32 5, %v2533
        %v2535 = vrot.slane %v2477, %v2534
        %v2536 = vlaneseq
        %v2537 = vshrl.u32 %v2536, 7
        %v2538 = vsub.s32 6, %v2537
        %v2539 = vrot.slane %v2477, %v2538
        %v2540 = vlaneseq
        %v2541 = vshrl.u32 %v2540, 7
        %v2542 = vsub.s32 7, %v2541
        %v2543 = vrot.slane %v2477, %v2542
        %v3072 = vunpack.c.l.b16 %v1964
        %v3073 = vunpack.c.h.b16 %v1964
        %v3074 = vunpack.c.l.b16 %v1965
        %v3075 = vunpack.c.h.b16 %v1965
        %v3076 = vunpack.c.l.b16 %v1966
        %v3077 = vunpack.c.h.b16 %v1966
        %v3078 = vunpack.c.l.b16 %v1967
        %v3079 = vunpack.c.h.b16 %v1967
        %v3080 = vunpack.c.l.b16 %v1968
        %v3081 = vunpack.c.h.b16 %v1968
        %v3082 = vunpack.c.l.b16 %v1969
        %v3083 = vunpack.c.h.b16 %v1969
        %v3084 = vunpack.c.l.b16 %v1970
        %v3085 = vunpack.c.h.b16 %v1970
        %v3086 = vunpack.c.l.b16 %v1971
        %v3087 = vunpack.c.h.b16 %v1971
        %v3088 = vunpack.c.l.b16 %v1972
        %v3089 = vunpack.c.h.b16 %v1972
        %v3090 = vunpack.c.l.b16 %v1973
        %v3091 = vunpack.c.h.b16 %v1973
        %v3092 = vunpack.c.l.b16 %v1974
        %v3093 = vunpack.c.h.b16 %v1974
        %v3094 = vunpack.c.l.b16 %v1975
        %v3095 = vunpack.c.h.b16 %v1975
        %v3096 = vunpack.c.l.b16 %v1976
        %v3097 = vunpack.c.h.b16 %v1976
        %v3098 = vunpack.c.l.b16 %v1977
        %v3099 = vunpack.c.h.b16 %v1977
        %v3100 = vunpack.c.l.b16 %v1978
        %v3101 = vunpack.c.h.b16 %v1978
        %v3102 = vunpack.c.l.b16 %v1979
        %v3103 = vunpack.c.h.b16 %v1979
        %v3104 = vunpack.c.l.b16 %v1980
        %v3105 = vunpack.c.h.b16 %v1980
        %v3106 = vunpack.c.l.b16 %v1981
        %v3107 = vunpack.c.h.b16 %v1981
        %v3108 = vunpack.c.l.b16 %v1982
        %v3109 = vunpack.c.h.b16 %v1982
        %v3110 = vunpack.c.l.b16 %v1983
        %v3111 = vunpack.c.h.b16 %v1983
        %v3112 = vunpack.c.l.b16 %v1984
        %v3113 = vunpack.c.h.b16 %v1984
        %v3114 = vunpack.c.l.b16 %v1985
        %v3115 = vunpack.c.h.b16 %v1985
        %v3116 = vunpack.c.l.b16 %v1986
        %v3117 = vunpack.c.h.b16 %v1986
        %v3118 = vunpack.c.l.b16 %v1987
        %v3119 = vunpack.c.h.b16 %v1987
        %v3120 = vunpack.c.l.b16 %v1988
        %v3121 = vunpack.c.h.b16 %v1988
        %v3122 = vunpack.c.l.b16 %v1989
        %v3123 = vunpack.c.h.b16 %v1989
        %v3124 = vunpack.c.l.b16 %v1990
        %v3125 = vunpack.c.h.b16 %v1990
        %v3126 = vunpack.c.l.b16 %v1991
        %v3127 = vunpack.c.h.b16 %v1991
        %v3128 = vunpack.c.l.b16 %v1992
        %v3129 = vunpack.c.h.b16 %v1992
        %v3130 = vunpack.c.l.b16 %v1993
        %v3131 = vunpack.c.h.b16 %v1993
        %v3132 = vunpack.c.l.b16 %v1994
        %v3133 = vunpack.c.h.b16 %v1994
        %v3134 = vunpack.c.l.b16 %v1995
        %v3135 = vunpack.c.h.b16 %v1995
        %v3136 = vunpack.c.l.b16 %v1996
        %v3137 = vunpack.c.h.b16 %v1996
        %v3138 = vunpack.c.l.b16 %v1997
        %v3139 = vunpack.c.h.b16 %v1997
        %v3140 = vunpack.c.l.b16 %v1998
        %v3141 = vunpack.c.h.b16 %v1998
        %v3142 = vunpack.c.l.b16 %v1999
        %v3143 = vunpack.c.h.b16 %v1999
        %v3144 = vunpack.c.l.b16 %v2000
        %v3145 = vunpack.c.h.b16 %v2000
        %v3146 = vunpack.c.l.b16 %v2001
        %v3147 = vunpack.c.h.b16 %v2001
        %v3148 = vunpack.c.l.b16 %v2002
        %v3149 = vunpack.c.h.b16 %v2002
        %v3150 = vunpack.c.l.b16 %v2003
        %v3151 = vunpack.c.h.b16 %v2003
        %v3152 = vunpack.c.l.b16 %v2004
        %v3153 = vunpack.c.h.b16 %v2004
        %v3154 = vunpack.c.l.b16 %v2005
        %v3155 = vunpack.c.h.b16 %v2005
        %v3156 = vunpack.c.l.b16 %v2006
        %v3157 = vunpack.c.h.b16 %v2006
        %v3158 = vunpack.c.l.b16 %v2007
        %v3159 = vunpack.c.h.b16 %v2007
        %v3160 = vunpack.c.l.b16 %v2008
        %v3161 = vunpack.c.h.b16 %v2008
        %v3162 = vunpack.c.l.b16 %v2009
        %v3163 = vunpack.c.h.b16 %v2009
        %v3164 = vunpack.c.l.b16 %v2010
        %v3165 = vunpack.c.h.b16 %v2010
        %v3166 = vunpack.c.l.b16 %v2011
        %v3167 = vunpack.c.h.b16 %v2011
        %v3168 = vunpack.c.l.b16 %v2012
        %v3169 = vunpack.c.h.b16 %v2012
        %v3170 = vunpack.c.l.b16 %v2013
        %v3171 = vunpack.c.h.b16 %v2013
        %v3172 = vunpack.c.l.b16 %v2014
        %v3173 = vunpack.c.h.b16 %v2014
        %v3174 = vunpack.c.l.b16 %v2015
        %v3175 = vunpack.c.h.b16 %v2015
        %v3176 = vunpack.c.l.b16 %v2016
        %v3177 = vunpack.c.h.b16 %v2016
        %v3178 = vunpack.c.l.b16 %v2017
        %v3179 = vunpack.c.h.b16 %v2017
        %v3180 = vunpack.c.l.b16 %v2018
        %v3181 = vunpack.c.h.b16 %v2018
        %v3182 = vunpack.c.l.b16 %v2019
        %v3183 = vunpack.c.h.b16 %v2019
        %v3184 = vunpack.c.l.b16 %v2020
        %v3185 = vunpack.c.h.b16 %v2020
        %v3186 = vunpack.c.l.b16 %v2021
        %v3187 = vunpack.c.h.b16 %v2021
        %v3188 = vunpack.c.l.b16 %v2022
        %v3189 = vunpack.c.h.b16 %v2022
        %v3190 = vunpack.c.l.b16 %v2023
        %v3191 = vunpack.c.h.b16 %v2023
        %v3192 = vunpack.c.l.b16 %v2024
        %v3193 = vunpack.c.h.b16 %v2024
        %v3194 = vunpack.c.l.b16 %v2025
        %v3195 = vunpack.c.h.b16 %v2025
        %v3196 = vunpack.c.l.b16 %v2026
        %v3197 = vunpack.c.h.b16 %v2026
        %v3198 = vunpack.c.l.b16 %v2027
        %v3199 = vunpack.c.h.b16 %v2027
        %v3200 = vunpack.c.l.b16 %v2028
        %v3201 = vunpack.c.h.b16 %v2028
        %v3202 = vunpack.c.l.b16 %v2029
        %v3203 = vunpack.c.h.b16 %v2029
        %v3204 = vunpack.c.l.b16 %v2030
        %v3205 = vunpack.c.h.b16 %v2030
        %v3206 = vunpack.c.l.b16 %v2031
        %v3207 = vunpack.c.h.b16 %v2031
        %v3208 = vunpack.c.l.b16 %v2032
        %v3209 = vunpack.c.h.b16 %v2032
        %v3210 = vunpack.c.l.b16 %v2033
        %v3211 = vunpack.c.h.b16 %v2033
        %v3212 = vunpack.c.l.b16 %v2034
        %v3213 = vunpack.c.h.b16 %v2034
        %v3214 = vunpack.c.l.b16 %v2035
        %v3215 = vunpack.c.h.b16 %v2035
        %v3216 = vunpack.c.l.b16 %v2036
        %v3217 = vunpack.c.h.b16 %v2036
        %v3218 = vunpack.c.l.b16 %v2037
        %v3219 = vunpack.c.h.b16 %v2037
        %v3220 = vunpack.c.l.b16 %v2038
        %v3221 = vunpack.c.h.b16 %v2038
        %v3222 = vunpack.c.l.b16 %v2039
        %v3223 = vunpack.c.h.b16 %v2039
        %v3224 = vunpack.c.l.b16 %v2040
        %v3225 = vunpack.c.h.b16 %v2040
        %v3226 = vunpack.c.l.b16 %v2041
        %v3227 = vunpack.c.h.b16 %v2041
        %v3228 = vunpack.c.l.b16 %v2042
        %v3229 = vunpack.c.h.b16 %v2042
        %v3230 = vunpack.c.l.b16 %v2043
        %v3231 = vunpack.c.h.b16 %v2043
        %v3232 = vunpack.c.l.b16 %v2044
        %v3233 = vunpack.c.h.b16 %v2044
        %v3234 = vunpack.c.l.b16 %v2045
        %v3235 = vunpack.c.h.b16 %v2045
        %v3236 = vunpack.c.l.b16 %v2046
        %v3237 = vunpack.c.h.b16 %v2046
        %v3238 = vunpack.c.l.b16 %v2047
        %v3239 = vunpack.c.h.b16 %v2047
        %v3240 = vunpack.c.l.b16 %v2048
        %v3241 = vunpack.c.h.b16 %v2048
        %v3242 = vunpack.c.l.b16 %v2049
        %v3243 = vunpack.c.h.b16 %v2049
        %v3244 = vunpack.c.l.b16 %v2050
        %v3245 = vunpack.c.h.b16 %v2050
        %v3246 = vunpack.c.l.b16 %v2051
        %v3247 = vunpack.c.h.b16 %v2051
        %v3248 = vunpack.c.l.b16 %v2052
        %v3249 = vunpack.c.h.b16 %v2052
        %v3250 = vunpack.c.l.b16 %v2053
        %v3251 = vunpack.c.h.b16 %v2053
        %v3252 = vunpack.c.l.b16 %v2054
        %v3253 = vunpack.c.h.b16 %v2054
        %v3254 = vunpack.c.l.b16 %v2055
        %v3255 = vunpack.c.h.b16 %v2055
        %v3256 = vunpack.c.l.b16 %v2056
        %v3257 = vunpack.c.h.b16 %v2056
        %v3258 = vunpack.c.l.b16 %v2057
        %v3259 = vunpack.c.h.b16 %v2057
        %v3260 = vunpack.c.l.b16 %v2058
        %v3261 = vunpack.c.h.b16 %v2058
        %v3262 = vunpack.c.l.b16 %v2059
        %v3263 = vunpack.c.h.b16 %v2059
        %v3264 = vunpack.c.l.b16 %v2060
        %v3265 = vunpack.c.h.b16 %v2060
        %v3266 = vunpack.c.l.b16 %v2061
        %v3267 = vunpack.c.h.b16 %v2061
        %v3268 = vunpack.c.l.b16 %v2062
        %v3269 = vunpack.c.h.b16 %v2062
        %v3270 = vunpack.c.l.b16 %v2063
        %v3271 = vunpack.c.h.b16 %v2063
        %v3272 = vunpack.c.l.b16 %v2064
        %v3273 = vunpack.c.h.b16 %v2064
        %v3274 = vunpack.c.l.b16 %v2065
        %v3275 = vunpack.c.h.b16 %v2065
        %v3276 = vunpack.c.l.b16 %v2066
        %v3277 = vunpack.c.h.b16 %v2066
        %v3278 = vunpack.c.l.b16 %v2067
        %v3279 = vunpack.c.h.b16 %v2067
        %v3280 = vunpack.c.l.b16 %v2068
        %v3281 = vunpack.c.h.b16 %v2068
        %v3282 = vunpack.c.l.b16 %v2069
        %v3283 = vunpack.c.h.b16 %v2069
        %v3284 = vunpack.c.l.b16 %v2070
        %v3285 = vunpack.c.h.b16 %v2070
        %v3286 = vunpack.c.l.b16 %v2071
        %v3287 = vunpack.c.h.b16 %v2071
        %v3288 = vunpack.c.l.b16 %v2072
        %v3289 = vunpack.c.h.b16 %v2072
        %v3290 = vunpack.c.l.b16 %v2073
        %v3291 = vunpack.c.h.b16 %v2073
        %v3292 = vunpack.c.l.b16 %v2074
        %v3293 = vunpack.c.h.b16 %v2074
        %v3294 = vunpack.c.l.b16 %v2075
        %v3295 = vunpack.c.h.b16 %v2075
        %v3296 = vunpack.c.l.b16 %v2076
        %v3297 = vunpack.c.h.b16 %v2076
        %v3298 = vunpack.c.l.b16 %v2077
        %v3299 = vunpack.c.h.b16 %v2077
        %v3300 = vunpack.c.l.b16 %v2078
        %v3301 = vunpack.c.h.b16 %v2078
        %v3302 = vunpack.c.l.b16 %v2079
        %v3303 = vunpack.c.h.b16 %v2079
        %v3304 = vunpack.c.l.b16 %v2080
        %v3305 = vunpack.c.h.b16 %v2080
        %v3306 = vunpack.c.l.b16 %v2081
        %v3307 = vunpack.c.h.b16 %v2081
        %v3308 = vunpack.c.l.b16 %v2082
        %v3309 = vunpack.c.h.b16 %v2082
        %v3310 = vunpack.c.l.b16 %v2083
        %v3311 = vunpack.c.h.b16 %v2083
        %v3312 = vunpack.c.l.b16 %v2084
        %v3313 = vunpack.c.h.b16 %v2084
        %v3314 = vunpack.c.l.b16 %v2085
        %v3315 = vunpack.c.h.b16 %v2085
        %v3316 = vunpack.c.l.b16 %v2086
        %v3317 = vunpack.c.h.b16 %v2086
        %v3318 = vunpack.c.l.b16 %v2087
        %v3319 = vunpack.c.h.b16 %v2087
        %v3320 = vunpack.c.l.b16 %v2088
        %v3321 = vunpack.c.h.b16 %v2088
        %v3322 = vunpack.c.l.b16 %v2089
        %v3323 = vunpack.c.h.b16 %v2089
        %v3324 = vunpack.c.l.b16 %v2090
        %v3325 = vunpack.c.h.b16 %v2090
        %v3326 = vunpack.c.l.b16 %v2091
        %v3327 = vunpack.c.h.b16 %v2091
        %v3328 = vunpack.c.l.b16 %v2092
        %v3329 = vunpack.c.h.b16 %v2092
        %v3330 = vunpack.c.l.b16 %v2093
        %v3331 = vunpack.c.h.b16 %v2093
        %v3332 = vunpack.c.l.b16 %v2094
        %v3333 = vunpack.c.h.b16 %v2094
        %v3334 = vunpack.c.l.b16 %v2095
        %v3335 = vunpack.c.h.b16 %v2095
        %v3336 = vunpack.c.l.b16 %v2096
        %v3337 = vunpack.c.h.b16 %v2096
        %v3338 = vunpack.c.l.b16 %v2097
        %v3339 = vunpack.c.h.b16 %v2097
        %v3340 = vunpack.c.l.b16 %v2098
        %v3341 = vunpack.c.h.b16 %v2098
        %v3342 = vunpack.c.l.b16 %v2099
        %v3343 = vunpack.c.h.b16 %v2099
        %v3344 = vunpack.c.l.b16 %v2100
        %v3345 = vunpack.c.h.b16 %v2100
        %v3346 = vunpack.c.l.b16 %v2101
        %v3347 = vunpack.c.h.b16 %v2101
        %v3348 = vunpack.c.l.b16 %v2102
        %v3349 = vunpack.c.h.b16 %v2102
        %v3350 = vunpack.c.l.b16 %v2103
        %v3351 = vunpack.c.h.b16 %v2103
        %v3352 = vunpack.c.l.b16 %v2104
        %v3353 = vunpack.c.h.b16 %v2104
        %v3354 = vunpack.c.l.b16 %v2105
        %v3355 = vunpack.c.h.b16 %v2105
        %v3356 = vunpack.c.l.b16 %v2106
        %v3357 = vunpack.c.h.b16 %v2106
        %v3358 = vunpack.c.l.b16 %v2107
        %v3359 = vunpack.c.h.b16 %v2107
        %v3360 = vunpack.c.l.b16 %v2108
        %v3361 = vunpack.c.h.b16 %v2108
        %v3362 = vunpack.c.l.b16 %v2109
        %v3363 = vunpack.c.h.b16 %v2109
        %v3364 = vunpack.c.l.b16 %v2110
        %v3365 = vunpack.c.h.b16 %v2110
        %v3366 = vunpack.c.l.b16 %v2111
        %v3367 = vunpack.c.h.b16 %v2111
        %v3368 = vunpack.c.l.b16 %v2112
        %v3369 = vunpack.c.h.b16 %v2112
        %v3370 = vunpack.c.l.b16 %v2113
        %v3371 = vunpack.c.h.b16 %v2113
        %v3372 = vunpack.c.l.b16 %v2114
        %v3373 = vunpack.c.h.b16 %v2114
        %v3374 = vunpack.c.l.b16 %v2115
        %v3375 = vunpack.c.h.b16 %v2115
        %v3376 = vunpack.c.l.b16 %v2116
        %v3377 = vunpack.c.h.b16 %v2116
        %v3378 = vunpack.c.l.b16 %v2117
        %v3379 = vunpack.c.h.b16 %v2117
        %v3380 = vunpack.c.l.b16 %v2118
        %v3381 = vunpack.c.h.b16 %v2118
        %v3382 = vunpack.c.l.b16 %v2119
        %v3383 = vunpack.c.h.b16 %v2119
        %v3384 = vunpack.c.l.b16 %v2120
        %v3385 = vunpack.c.h.b16 %v2120
        %v3386 = vunpack.c.l.b16 %v2121
        %v3387 = vunpack.c.h.b16 %v2121
        %v3388 = vunpack.c.l.b16 %v2122
        %v3389 = vunpack.c.h.b16 %v2122
        %v3390 = vunpack.c.l.b16 %v2123
        %v3391 = vunpack.c.h.b16 %v2123
        %v3392 = vunpack.c.l.b16 %v2124
        %v3393 = vunpack.c.h.b16 %v2124
        %v3394 = vunpack.c.l.b16 %v2125
        %v3395 = vunpack.c.h.b16 %v2125
        %v3396 = vunpack.c.l.b16 %v2126
        %v3397 = vunpack.c.h.b16 %v2126
        %v3398 = vunpack.c.l.b16 %v2127
        %v3399 = vunpack.c.h.b16 %v2127
        %v3400 = vunpack.c.l.b16 %v2128
        %v3401 = vunpack.c.h.b16 %v2128
        %v3402 = vunpack.c.l.b16 %v2129
        %v3403 = vunpack.c.h.b16 %v2129
        %v3404 = vunpack.c.l.b16 %v2130
        %v3405 = vunpack.c.h.b16 %v2130
        %v3406 = vunpack.c.l.b16 %v2131
        %v3407 = vunpack.c.h.b16 %v2131
        %v3408 = vunpack.c.l.b16 %v2132
        %v3409 = vunpack.c.h.b16 %v2132
        %v3410 = vunpack.c.l.b16 %v2133
        %v3411 = vunpack.c.h.b16 %v2133
        %v3412 = vunpack.c.l.b16 %v2134
        %v3413 = vunpack.c.h.b16 %v2134
        %v3414 = vunpack.c.l.b16 %v2135
        %v3415 = vunpack.c.h.b16 %v2135
        %v3416 = vunpack.c.l.b16 %v2136
        %v3417 = vunpack.c.h.b16 %v2136
        %v3418 = vunpack.c.l.b16 %v2137
        %v3419 = vunpack.c.h.b16 %v2137
        %v3420 = vunpack.c.l.b16 %v2138
        %v3421 = vunpack.c.h.b16 %v2138
        %v3422 = vunpack.c.l.b16 %v2139
        %v3423 = vunpack.c.h.b16 %v2139
        %v3424 = vunpack.c.l.b16 %v2140
        %v3425 = vunpack.c.h.b16 %v2140
        %v3426 = vunpack.c.l.b16 %v2141
        %v3427 = vunpack.c.h.b16 %v2141
        %v3428 = vunpack.c.l.b16 %v2142
        %v3429 = vunpack.c.h.b16 %v2142
        %v3430 = vunpack.c.l.b16 %v2143
        %v3431 = vunpack.c.h.b16 %v2143
        %v3432 = vunpack.c.l.b16 %v2144
        %v3433 = vunpack.c.h.b16 %v2144
        %v3434 = vunpack.c.l.b16 %v2145
        %v3435 = vunpack.c.h.b16 %v2145
        %v3436 = vunpack.c.l.b16 %v2146
        %v3437 = vunpack.c.h.b16 %v2146
        %v3438 = vunpack.c.l.b16 %v2147
        %v3439 = vunpack.c.h.b16 %v2147
        %v3440 = vunpack.c.l.b16 %v2148
        %v3441 = vunpack.c.h.b16 %v2148
        %v3442 = vunpack.c.l.b16 %v2149
        %v3443 = vunpack.c.h.b16 %v2149
        %v3444 = vunpack.c.l.b16 %v2150
        %v3445 = vunpack.c.h.b16 %v2150
        %v3446 = vunpack.c.l.b16 %v2151
        %v3447 = vunpack.c.h.b16 %v2151
        %v3448 = vunpack.c.l.b16 %v2152
        %v3449 = vunpack.c.h.b16 %v2152
        %v3450 = vunpack.c.l.b16 %v2153
        %v3451 = vunpack.c.h.b16 %v2153
        %v3452 = vunpack.c.l.b16 %v2154
        %v3453 = vunpack.c.h.b16 %v2154
        %v3454 = vunpack.c.l.b16 %v2155
        %v3455 = vunpack.c.h.b16 %v2155
        %v3456 = vunpack.c.l.b16 %v2156
        %v3457 = vunpack.c.h.b16 %v2156
        %v3458 = vunpack.c.l.b16 %v2157
        %v3459 = vunpack.c.h.b16 %v2157
        %v3460 = vunpack.c.l.b16 %v2158
        %v3461 = vunpack.c.h.b16 %v2158
        %v3462 = vunpack.c.l.b16 %v2159
        %v3463 = vunpack.c.h.b16 %v2159
        %v3464 = vunpack.c.l.b16 %v2160
        %v3465 = vunpack.c.h.b16 %v2160
        %v3466 = vunpack.c.l.b16 %v2161
        %v3467 = vunpack.c.h.b16 %v2161
        %v3468 = vunpack.c.l.b16 %v2162
        %v3469 = vunpack.c.h.b16 %v2162
        %v3470 = vunpack.c.l.b16 %v2163
        %v3471 = vunpack.c.h.b16 %v2163
        %v3472 = vunpack.c.l.b16 %v2164
        %v3473 = vunpack.c.h.b16 %v2164
        %v3474 = vunpack.c.l.b16 %v2165
        %v3475 = vunpack.c.h.b16 %v2165
        %v3476 = vunpack.c.l.b16 %v2166
        %v3477 = vunpack.c.h.b16 %v2166
        %v3478 = vunpack.c.l.b16 %v2167
        %v3479 = vunpack.c.h.b16 %v2167
        %v3480 = vunpack.c.l.b16 %v2168
        %v3481 = vunpack.c.h.b16 %v2168
        %v3482 = vunpack.c.l.b16 %v2169
        %v3483 = vunpack.c.h.b16 %v2169
        %v3484 = vunpack.c.l.b16 %v2170
        %v3485 = vunpack.c.h.b16 %v2170
        %v3486 = vunpack.c.l.b16 %v2171
        %v3487 = vunpack.c.h.b16 %v2171
        %v3488 = vunpack.c.l.b16 %v2172
        %v3489 = vunpack.c.h.b16 %v2172
        %v3490 = vunpack.c.l.b16 %v2173
        %v3491 = vunpack.c.h.b16 %v2173
        %v3492 = vunpack.c.l.b16 %v2174
        %v3493 = vunpack.c.h.b16 %v2174
        %v3494 = vunpack.c.l.b16 %v2175
        %v3495 = vunpack.c.h.b16 %v2175
        %v3496 = vunpack.c.l.b16 %v2176
        %v3497 = vunpack.c.h.b16 %v2176
        %v3498 = vunpack.c.l.b16 %v2177
        %v3499 = vunpack.c.h.b16 %v2177
        %v3500 = vunpack.c.l.b16 %v2178
        %v3501 = vunpack.c.h.b16 %v2178
        %v3502 = vunpack.c.l.b16 %v2179
        %v3503 = vunpack.c.h.b16 %v2179
        %v3504 = vunpack.c.l.b16 %v2180
        %v3505 = vunpack.c.h.b16 %v2180
        %v3506 = vunpack.c.l.b16 %v2181
        %v3507 = vunpack.c.h.b16 %v2181
        %v3508 = vunpack.c.l.b16 %v2182
        %v3509 = vunpack.c.h.b16 %v2182
        %v3510 = vunpack.c.l.b16 %v2183
        %v3511 = vunpack.c.h.b16 %v2183
        %v3512 = vunpack.c.l.b16 %v2184
        %v3513 = vunpack.c.h.b16 %v2184
        %v3514 = vunpack.c.l.b16 %v2185
        %v3515 = vunpack.c.h.b16 %v2185
        %v3516 = vunpack.c.l.b16 %v2186
        %v3517 = vunpack.c.h.b16 %v2186
        %v3518 = vunpack.c.l.b16 %v2187
        %v3519 = vunpack.c.h.b16 %v2187
        %v3520 = vunpack.c.l.b16 %v2188
        %v3521 = vunpack.c.h.b16 %v2188
        %v3522 = vunpack.c.l.b16 %v2189
        %v3523 = vunpack.c.h.b16 %v2189
        %v3524 = vunpack.c.l.b16 %v2190
        %v3525 = vunpack.c.h.b16 %v2190
        %v3526 = vunpack.c.l.b16 %v2191
        %v3527 = vunpack.c.h.b16 %v2191
        %v3528 = vunpack.c.l.b16 %v2192
        %v3529 = vunpack.c.h.b16 %v2192
        %v3530 = vunpack.c.l.b16 %v2193
        %v3531 = vunpack.c.h.b16 %v2193
        %v3532 = vunpack.c.l.b16 %v2194
        %v3533 = vunpack.c.h.b16 %v2194
        %v3534 = vunpack.c.l.b16 %v2195
        %v3535 = vunpack.c.h.b16 %v2195
        %v3536 = vunpack.c.l.b16 %v2196
        %v3537 = vunpack.c.h.b16 %v2196
        %v3538 = vunpack.c.l.b16 %v2197
        %v3539 = vunpack.c.h.b16 %v2197
        %v3540 = vunpack.c.l.b16 %v2198
        %v3541 = vunpack.c.h.b16 %v2198
        %v3542 = vunpack.c.l.b16 %v2199
        %v3543 = vunpack.c.h.b16 %v2199
        %v3544 = vunpack.c.l.b16 %v2200
        %v3545 = vunpack.c.h.b16 %v2200
        %v3546 = vunpack.c.l.b16 %v2201
        %v3547 = vunpack.c.h.b16 %v2201
        %v3548 = vunpack.c.l.b16 %v2202
        %v3549 = vunpack.c.h.b16 %v2202
        %v3550 = vunpack.c.l.b16 %v2203
        %v3551 = vunpack.c.h.b16 %v2203
        %v3552 = vunpack.c.l.b16 %v2204
        %v3553 = vunpack.c.h.b16 %v2204
        %v3554 = vunpack.c.l.b16 %v2205
        %v3555 = vunpack.c.h.b16 %v2205
        %v3556 = vunpack.c.l.b16 %v2206
        %v3557 = vunpack.c.h.b16 %v2206
        %v3558 = vunpack.c.l.b16 %v2207
        %v3559 = vunpack.c.h.b16 %v2207
        %v3560 = vunpack.c.l.b16 %v2208
        %v3561 = vunpack.c.h.b16 %v2208
        %v3562 = vunpack.c.l.b16 %v2209
        %v3563 = vunpack.c.h.b16 %v2209
        %v3564 = vunpack.c.l.b16 %v2210
        %v3565 = vunpack.c.h.b16 %v2210
        %v3566 = vunpack.c.l.b16 %v2211
        %v3567 = vunpack.c.h.b16 %v2211
        %v3568 = vunpack.c.l.b16 %v2212
        %v3569 = vunpack.c.h.b16 %v2212
        %v3570 = vunpack.c.l.b16 %v2213
        %v3571 = vunpack.c.h.b16 %v2213
        %v3572 = vunpack.c.l.b16 %v2214
        %v3573 = vunpack.c.h.b16 %v2214
        %v3574 = vunpack.c.l.b16 %v2215
        %v3575 = vunpack.c.h.b16 %v2215
        %v3576 = vunpack.c.l.b16 %v2216
        %v3577 = vunpack.c.h.b16 %v2216
        %v3578 = vunpack.c.l.b16 %v2217
        %v3579 = vunpack.c.h.b16 %v2217
        %v3580 = vunpack.c.l.b16 %v2218
        %v3581 = vunpack.c.h.b16 %v2218
        %v3582 = vunpack.c.l.b16 %v2219
        %v3583 = vunpack.c.h.b16 %v2219
        %v3584 = vunpack.c.l.b16 %v2220
        %v3585 = vunpack.c.h.b16 %v2220
        %v3586 = vunpack.c.l.b16 %v2221
        %v3587 = vunpack.c.h.b16 %v2221
        %v3588 = vunpack.c.l.b16 %v2222
        %v3589 = vunpack.c.h.b16 %v2222
        %v3590 = vunpack.c.l.b16 %v2223
        %v3591 = vunpack.c.h.b16 %v2223
        %v3592 = vunpack.c.l.b16 %v2224
        %v3593 = vunpack.c.h.b16 %v2224
        %v3594 = vunpack.c.l.b16 %v2225
        %v3595 = vunpack.c.h.b16 %v2225
        %v3596 = vunpack.c.l.b16 %v2226
        %v3597 = vunpack.c.h.b16 %v2226
        %v3598 = vunpack.c.l.b16 %v2227
        %v3599 = vunpack.c.h.b16 %v2227
        %v3600 = vunpack.c.l.b16 %v2228
        %v3601 = vunpack.c.h.b16 %v2228
        %v3602 = vunpack.c.l.b16 %v2229
        %v3603 = vunpack.c.h.b16 %v2229
        %v3604 = vunpack.c.l.b16 %v2230
        %v3605 = vunpack.c.h.b16 %v2230
        %v3606 = vunpack.c.l.b16 %v2231
        %v3607 = vunpack.c.h.b16 %v2231
        %v3608 = vunpack.c.l.b16 %v2232
        %v3609 = vunpack.c.h.b16 %v2232
        %v3610 = vunpack.c.l.b16 %v2233
        %v3611 = vunpack.c.h.b16 %v2233
        %v3612 = vunpack.c.l.b16 %v2234
        %v3613 = vunpack.c.h.b16 %v2234
        %v3614 = vunpack.c.l.b16 %v2235
        %v3615 = vunpack.c.h.b16 %v2235
        %v3616 = vunpack.c.l.b16 %v2236
        %v3617 = vunpack.c.h.b16 %v2236
        %v3618 = vunpack.c.l.b16 %v2237
        %v3619 = vunpack.c.h.b16 %v2237
        %v3620 = vunpack.c.l.b16 %v2238
        %v3621 = vunpack.c.h.b16 %v2238
        %v3622 = vunpack.c.l.b16 %v2239
        %v3623 = vunpack.c.h.b16 %v2239
        %v3624 = vunpack.c.l.b16 %v2240
        %v3625 = vunpack.c.h.b16 %v2240
        %v3626 = vunpack.c.l.b16 %v2241
        %v3627 = vunpack.c.h.b16 %v2241
        %v3628 = vunpack.c.l.b16 %v2242
        %v3629 = vunpack.c.h.b16 %v2242
        %v3630 = vunpack.c.l.b16 %v2243
        %v3631 = vunpack.c.h.b16 %v2243
        %v3632 = vunpack.c.l.b16 %v2244
        %v3633 = vunpack.c.h.b16 %v2244
        %v3634 = vunpack.c.l.b16 %v2245
        %v3635 = vunpack.c.h.b16 %v2245
        %v3636 = vunpack.c.l.b16 %v2246
        %v3637 = vunpack.c.h.b16 %v2246
        %v3638 = vunpack.c.l.b16 %v2247
        %v3639 = vunpack.c.h.b16 %v2247
        %v3640 = vunpack.c.l.b16 %v2248
        %v3641 = vunpack.c.h.b16 %v2248
        %v3642 = vunpack.c.l.b16 %v2249
        %v3643 = vunpack.c.h.b16 %v2249
        %v3644 = vunpack.c.l.b16 %v2250
        %v3645 = vunpack.c.h.b16 %v2250
        %v3646 = vunpack.c.l.b16 %v2251
        %v3647 = vunpack.c.h.b16 %v2251
        %v3648 = vunpack.c.l.b16 %v2252
        %v3649 = vunpack.c.h.b16 %v2252
        %v3650 = vunpack.c.l.b16 %v2253
        %v3651 = vunpack.c.h.b16 %v2253
        %v3652 = vunpack.c.l.b16 %v2254
        %v3653 = vunpack.c.h.b16 %v2254
        %v3654 = vunpack.c.l.b16 %v2255
        %v3655 = vunpack.c.h.b16 %v2255
        %v3656 = vunpack.c.l.b16 %v2256
        %v3657 = vunpack.c.h.b16 %v2256
        %v3658 = vunpack.c.l.b16 %v2257
        %v3659 = vunpack.c.h.b16 %v2257
        %v3660 = vunpack.c.l.b16 %v2258
        %v3661 = vunpack.c.h.b16 %v2258
        %v3662 = vunpack.c.l.b16 %v2259
        %v3663 = vunpack.c.h.b16 %v2259
        %v3664 = vunpack.c.l.b16 %v2260
        %v3665 = vunpack.c.h.b16 %v2260
        %v3666 = vunpack.c.l.b16 %v2261
        %v3667 = vunpack.c.h.b16 %v2261
        %v3668 = vunpack.c.l.b16 %v2262
        %v3669 = vunpack.c.h.b16 %v2262
        %v3670 = vunpack.c.l.b16 %v2263
        %v3671 = vunpack.c.h.b16 %v2263
        %v3672 = vunpack.c.l.b16 %v2264
        %v3673 = vunpack.c.h.b16 %v2264
        %v3674 = vunpack.c.l.b16 %v2265
        %v3675 = vunpack.c.h.b16 %v2265
        %v3676 = vunpack.c.l.b16 %v2266
        %v3677 = vunpack.c.h.b16 %v2266
        %v3678 = vunpack.c.l.b16 %v2267
        %v3679 = vunpack.c.h.b16 %v2267
        %v3680 = vunpack.c.l.b16 %v2268
        %v3681 = vunpack.c.h.b16 %v2268
        %v3682 = vunpack.c.l.b16 %v2269
        %v3683 = vunpack.c.h.b16 %v2269
        %v3684 = vunpack.c.l.b16 %v2270
        %v3685 = vunpack.c.h.b16 %v2270
        %v3686 = vunpack.c.l.b16 %v2271
        %v3687 = vunpack.c.h.b16 %v2271
        %v3688 = vunpack.c.l.b16 %v2272
        %v3689 = vunpack.c.h.b16 %v2272
        %v3690 = vunpack.c.l.b16 %v2273
        %v3691 = vunpack.c.h.b16 %v2273
        %v3692 = vunpack.c.l.b16 %v2274
        %v3693 = vunpack.c.h.b16 %v2274
        %v3694 = vunpack.c.l.b16 %v2275
        %v3695 = vunpack.c.h.b16 %v2275
        %v3696 = vunpack.c.l.b16 %v2276
        %v3697 = vunpack.c.h.b16 %v2276
        %v3698 = vunpack.c.l.b16 %v2277
        %v3699 = vunpack.c.h.b16 %v2277
        %v3700 = vunpack.c.l.b16 %v2278
        %v3701 = vunpack.c.h.b16 %v2278
        %v3702 = vunpack.c.l.b16 %v2279
        %v3703 = vunpack.c.h.b16 %v2279
        %v3704 = vunpack.c.l.b16 %v2280
        %v3705 = vunpack.c.h.b16 %v2280
        %v3706 = vunpack.c.l.b16 %v2281
        %v3707 = vunpack.c.h.b16 %v2281
        %v3708 = vunpack.c.l.b16 %v2282
        %v3709 = vunpack.c.h.b16 %v2282
        %v3710 = vunpack.c.l.b16 %v2283
        %v3711 = vunpack.c.h.b16 %v2283
        %v3712 = vunpack.c.l.b16 %v2284
        %v3713 = vunpack.c.h.b16 %v2284
        %v3714 = vunpack.c.l.b16 %v2285
        %v3715 = vunpack.c.h.b16 %v2285
        %v3716 = vunpack.c.l.b16 %v2286
        %v3717 = vunpack.c.h.b16 %v2286
        %v3718 = vunpack.c.l.b16 %v2287
        %v3719 = vunpack.c.h.b16 %v2287
        %v3720 = vunpack.c.l.b16 %v2288
        %v3721 = vunpack.c.h.b16 %v2288
        %v3722 = vunpack.c.l.b16 %v2289
        %v3723 = vunpack.c.h.b16 %v2289
        %v3724 = vunpack.c.l.b16 %v2290
        %v3725 = vunpack.c.h.b16 %v2290
        %v3726 = vunpack.c.l.b16 %v2291
        %v3727 = vunpack.c.h.b16 %v2291
        %v3728 = vunpack.c.l.b16 %v2292
        %v3729 = vunpack.c.h.b16 %v2292
        %v3730 = vunpack.c.l.b16 %v2293
        %v3731 = vunpack.c.h.b16 %v2293
        %v3732 = vunpack.c.l.b16 %v2294
        %v3733 = vunpack.c.h.b16 %v2294
        %v3734 = vunpack.c.l.b16 %v2295
        %v3735 = vunpack.c.h.b16 %v2295
        %v3736 = vunpack.c.l.b16 %v2296
        %v3737 = vunpack.c.h.b16 %v2296
        %v3738 = vunpack.c.l.b16 %v2297
        %v3739 = vunpack.c.h.b16 %v2297
        %v3740 = vunpack.c.l.b16 %v2298
        %v3741 = vunpack.c.h.b16 %v2298
        %v3742 = vunpack.c.l.b16 %v2299
        %v3743 = vunpack.c.h.b16 %v2299
        %v3744 = vunpack.c.l.b16 %v2300
        %v3745 = vunpack.c.h.b16 %v2300
        %v3746 = vunpack.c.l.b16 %v2301
        %v3747 = vunpack.c.h.b16 %v2301
        %v3748 = vunpack.c.l.b16 %v2302
        %v3749 = vunpack.c.h.b16 %v2302
        %v3750 = vunpack.c.l.b16 %v2303
        %v3751 = vunpack.c.h.b16 %v2303
        %v3752 = vunpack.c.l.b16 %v2304
        %v3753 = vunpack.c.h.b16 %v2304
        %v3754 = vunpack.c.l.b16 %v2305
        %v3755 = vunpack.c.h.b16 %v2305
        %v3756 = vunpack.c.l.b16 %v2306
        %v3757 = vunpack.c.h.b16 %v2306
        %v3758 = vunpack.c.l.b16 %v2307
        %v3759 = vunpack.c.h.b16 %v2307
        %v3760 = vunpack.c.l.b16 %v2308
        %v3761 = vunpack.c.h.b16 %v2308
        %v3762 = vunpack.c.l.b16 %v2309
        %v3763 = vunpack.c.h.b16 %v2309
        %v3764 = vunpack.c.l.b16 %v2310
        %v3765 = vunpack.c.h.b16 %v2310
        %v3766 = vunpack.c.l.b16 %v2311
        %v3767 = vunpack.c.h.b16 %v2311
        %v3768 = vunpack.c.l.b16 %v2312
        %v3769 = vunpack.c.h.b16 %v2312
        %v3770 = vunpack.c.l.b16 %v2313
        %v3771 = vunpack.c.h.b16 %v2313
        %v3772 = vunpack.c.l.b16 %v2314
        %v3773 = vunpack.c.h.b16 %v2314
        %v3774 = vunpack.c.l.b16 %v2315
        %v3775 = vunpack.c.h.b16 %v2315
        %v3776 = vunpack.c.l.b16 %v2316
        %v3777 = vunpack.c.h.b16 %v2316
        %v3778 = vunpack.c.l.b16 %v2317
        %v3779 = vunpack.c.h.b16 %v2317
        %v3780 = vunpack.c.l.b16 %v2318
        %v3781 = vunpack.c.h.b16 %v2318
        %v3782 = vunpack.c.l.b16 %v2319
        %v3783 = vunpack.c.h.b16 %v2319
        %v3784 = vunpack.c.l.b16 %v2320
        %v3785 = vunpack.c.h.b16 %v2320
        %v3786 = vunpack.c.l.b16 %v2321
        %v3787 = vunpack.c.h.b16 %v2321
        %v3788 = vunpack.c.l.b16 %v2322
        %v3789 = vunpack.c.h.b16 %v2322
        %v3790 = vunpack.c.l.b16 %v2323
        %v3791 = vunpack.c.h.b16 %v2323
        %v3792 = vunpack.c.l.b16 %v2324
        %v3793 = vunpack.c.h.b16 %v2324
        %v3794 = vunpack.c.l.b16 %v2325
        %v3795 = vunpack.c.h.b16 %v2325
        %v3796 = vunpack.c.l.b16 %v2326
        %v3797 = vunpack.c.h.b16 %v2326
        %v3798 = vunpack.c.l.b16 %v2327
        %v3799 = vunpack.c.h.b16 %v2327
        %v3800 = vunpack.c.l.b16 %v2328
        %v3801 = vunpack.c.h.b16 %v2328
        %v3802 = vunpack.c.l.b16 %v2329
        %v3803 = vunpack.c.h.b16 %v2329
        %v3804 = vunpack.c.l.b16 %v2330
        %v3805 = vunpack.c.h.b16 %v2330
        %v3806 = vunpack.c.l.b16 %v2331
        %v3807 = vunpack.c.h.b16 %v2331
        %v3808 = vunpack.c.l.b16 %v2332
        %v3809 = vunpack.c.h.b16 %v2332
        %v3810 = vunpack.c.l.b16 %v2333
        %v3811 = vunpack.c.h.b16 %v2333
        %v3812 = vunpack.c.l.b16 %v2334
        %v3813 = vunpack.c.h.b16 %v2334
        %v3814 = vunpack.c.l.b16 %v2335
        %v3815 = vunpack.c.h.b16 %v2335
        %v3816 = vunpack.c.l.b16 %v2336
        %v3817 = vunpack.c.h.b16 %v2336
        %v3818 = vunpack.c.l.b16 %v2337
        %v3819 = vunpack.c.h.b16 %v2337
        %v3820 = vunpack.c.l.b16 %v2338
        %v3821 = vunpack.c.h.b16 %v2338
        %v3822 = vunpack.c.l.b16 %v2339
        %v3823 = vunpack.c.h.b16 %v2339
        %v3824 = vunpack.c.l.b16 %v2340
        %v3825 = vunpack.c.h.b16 %v2340
        %v3826 = vunpack.c.l.b16 %v2341
        %v3827 = vunpack.c.h.b16 %v2341
        %v3828 = vunpack.c.l.b16 %v2342
        %v3829 = vunpack.c.h.b16 %v2342
        %v3830 = vunpack.c.l.b16 %v2343
        %v3831 = vunpack.c.h.b16 %v2343
        %v3832 = vunpack.c.l.b16 %v2344
        %v3833 = vunpack.c.h.b16 %v2344
        %v3834 = vunpack.c.l.b16 %v2345
        %v3835 = vunpack.c.h.b16 %v2345
        %v3836 = vunpack.c.l.b16 %v2346
        %v3837 = vunpack.c.h.b16 %v2346
        %v3838 = vunpack.c.l.b16 %v2347
        %v3839 = vunpack.c.h.b16 %v2347
        %v3840 = vunpack.c.l.b16 %v2348
        %v3841 = vunpack.c.h.b16 %v2348
        %v3842 = vunpack.c.l.b16 %v2349
        %v3843 = vunpack.c.h.b16 %v2349
        %v3844 = vunpack.c.l.b16 %v2350
        %v3845 = vunpack.c.h.b16 %v2350
        %v3846 = vunpack.c.l.b16 %v2351
        %v3847 = vunpack.c.h.b16 %v2351
        %v3848 = vunpack.c.l.b16 %v2352
        %v3849 = vunpack.c.h.b16 %v2352
        %v3850 = vunpack.c.l.b16 %v2353
        %v3851 = vunpack.c.h.b16 %v2353
        %v3852 = vunpack.c.l.b16 %v2354
        %v3853 = vunpack.c.h.b16 %v2354
        %v3854 = vunpack.c.l.b16 %v2355
        %v3855 = vunpack.c.h.b16 %v2355
        %v3856 = vunpack.c.l.b16 %v2356
        %v3857 = vunpack.c.h.b16 %v2356
        %v3858 = vunpack.c.l.b16 %v2357
        %v3859 = vunpack.c.h.b16 %v2357
        %v3860 = vunpack.c.l.b16 %v2358
        %v3861 = vunpack.c.h.b16 %v2358
        %v3862 = vunpack.c.l.b16 %v2359
        %v3863 = vunpack.c.h.b16 %v2359
        %v3864 = vunpack.c.l.b16 %v2360
        %v3865 = vunpack.c.h.b16 %v2360
        %v3866 = vunpack.c.l.b16 %v2361
        %v3867 = vunpack.c.h.b16 %v2361
        %v3868 = vunpack.c.l.b16 %v2362
        %v3869 = vunpack.c.h.b16 %v2362
        %v3870 = vunpack.c.l.b16 %v2363
        %v3871 = vunpack.c.h.b16 %v2363
        %v3872 = vunpack.c.l.b16 %v2364
        %v3873 = vunpack.c.h.b16 %v2364
        %v3874 = vunpack.c.l.b16 %v2365
        %v3875 = vunpack.c.h.b16 %v2365
        %v3876 = vunpack.c.l.b16 %v2366
        %v3877 = vunpack.c.h.b16 %v2366
        %v3878 = vunpack.c.l.b16 %v2367
        %v3879 = vunpack.c.h.b16 %v2367
        %v3880 = vunpack.c.l.b16 %v2368
        %v3881 = vunpack.c.h.b16 %v2368
        %v3882 = vunpack.c.l.b16 %v2369
        %v3883 = vunpack.c.h.b16 %v2369
        %v3884 = vunpack.c.l.b16 %v2370
        %v3885 = vunpack.c.h.b16 %v2370
        %v3886 = vunpack.c.l.b16 %v2371
        %v3887 = vunpack.c.h.b16 %v2371
        %v3888 = vunpack.c.l.b16 %v2372
        %v3889 = vunpack.c.h.b16 %v2372
        %v3890 = vunpack.c.l.b16 %v2373
        %v3891 = vunpack.c.h.b16 %v2373
        %v3892 = vunpack.c.l.b16 %v2374
        %v3893 = vunpack.c.h.b16 %v2374
        %v3894 = vunpack.c.l.b16 %v2375
        %v3895 = vunpack.c.h.b16 %v2375
        %v3896 = vunpack.c.l.b16 %v2376
        %v3897 = vunpack.c.h.b16 %v2376
        %v3898 = vunpack.c.l.b16 %v2377
        %v3899 = vunpack.c.h.b16 %v2377
        %v3900 = vunpack.c.l.b16 %v2378
        %v3901 = vunpack.c.h.b16 %v2378
        %v3902 = vunpack.c.l.b16 %v2379
        %v3903 = vunpack.c.h.b16 %v2379
        %v3904 = vunpack.c.l.b16 %v2380
        %v3905 = vunpack.c.h.b16 %v2380
        %v3906 = vunpack.c.l.b16 %v2381
        %v3907 = vunpack.c.h.b16 %v2381
        %v3908 = vunpack.c.l.b16 %v2382
        %v3909 = vunpack.c.h.b16 %v2382
        %v3910 = vunpack.c.l.b16 %v2383
        %v3911 = vunpack.c.h.b16 %v2383
        %v3912 = vunpack.c.l.b16 %v2384
        %v3913 = vunpack.c.h.b16 %v2384
        %v3914 = vunpack.c.l.b16 %v2385
        %v3915 = vunpack.c.h.b16 %v2385
        %v3916 = vunpack.c.l.b16 %v2386
        %v3917 = vunpack.c.h.b16 %v2386
        %v3918 = vunpack.c.l.b16 %v2387
        %v3919 = vunpack.c.h.b16 %v2387
        %v3920 = vunpack.c.l.b16 %v2388
        %v3921 = vunpack.c.h.b16 %v2388
        %v3922 = vunpack.c.l.b16 %v2389
        %v3923 = vunpack.c.h.b16 %v2389
        %v3924 = vunpack.c.l.b16 %v2390
        %v3925 = vunpack.c.h.b16 %v2390
        %v3926 = vunpack.c.l.b16 %v2391
        %v3927 = vunpack.c.h.b16 %v2391
        %v3928 = vunpack.c.l.b16 %v2392
        %v3929 = vunpack.c.h.b16 %v2392
        %v3930 = vunpack.c.l.b16 %v2393
        %v3931 = vunpack.c.h.b16 %v2393
        %v3932 = vunpack.c.l.b16 %v2394
        %v3933 = vunpack.c.h.b16 %v2394
        %v3934 = vunpack.c.l.b16 %v2395
        %v3935 = vunpack.c.h.b16 %v2395
        %v3936 = vunpack.c.l.b16 %v2396
        %v3937 = vunpack.c.h.b16 %v2396
        %v3938 = vunpack.c.l.b16 %v2397
        %v3939 = vunpack.c.h.b16 %v2397
        %v3940 = vunpack.c.l.b16 %v2398
        %v3941 = vunpack.c.h.b16 %v2398
        %v3942 = vunpack.c.l.b16 %v2399
        %v3943 = vunpack.c.h.b16 %v2399
        %v3944 = vunpack.c.l.b16 %v2400
        %v3945 = vunpack.c.h.b16 %v2400
        %v3946 = vunpack.c.l.b16 %v2401
        %v3947 = vunpack.c.h.b16 %v2401
        %v3948 = vunpack.c.l.b16 %v2402
        %v3949 = vunpack.c.h.b16 %v2402
        %v3950 = vunpack.c.l.b16 %v2403
        %v3951 = vunpack.c.h.b16 %v2403
        %v3952 = vunpack.c.l.b16 %v2404
        %v3953 = vunpack.c.h.b16 %v2404
        %v3954 = vunpack.c.l.b16 %v2405
        %v3955 = vunpack.c.h.b16 %v2405
        %v3956 = vunpack.c.l.b16 %v2406
        %v3957 = vunpack.c.h.b16 %v2406
        %v3958 = vunpack.c.l.b16 %v2407
        %v3959 = vunpack.c.h.b16 %v2407
        %v3960 = vunpack.c.l.b16 %v2408
        %v3961 = vunpack.c.h.b16 %v2408
        %v3962 = vunpack.c.l.b16 %v2409
        %v3963 = vunpack.c.h.b16 %v2409
        %v3964 = vunpack.c.l.b16 %v2410
        %v3965 = vunpack.c.h.b16 %v2410
        %v3966 = vunpack.c.l.b16 %v2411
        %v3967 = vunpack.c.h.b16 %v2411
        %v3968 = vunpack.c.l.b16 %v2412
        %v3969 = vunpack.c.h.b16 %v2412
        %v3970 = vunpack.c.l.b16 %v2413
        %v3971 = vunpack.c.h.b16 %v2413
        %v3972 = vunpack.c.l.b16 %v2414
        %v3973 = vunpack.c.h.b16 %v2414
        %v3974 = vunpack.c.l.b16 %v2415
        %v3975 = vunpack.c.h.b16 %v2415
        %v3976 = vunpack.c.l.b16 %v2416
        %v3977 = vunpack.c.h.b16 %v2416
        %v3978 = vunpack.c.l.b16 %v2417
        %v3979 = vunpack.c.h.b16 %v2417
        %v3980 = vunpack.c.l.b16 %v2418
        %v3981 = vunpack.c.h.b16 %v2418
        %v3982 = vunpack.c.l.b16 %v2419
        %v3983 = vunpack.c.h.b16 %v2419
        %v3984 = vunpack.c.l.b16 %v2420
        %v3985 = vunpack.c.h.b16 %v2420
        %v3986 = vunpack.c.l.b16 %v2421
        %v3987 = vunpack.c.h.b16 %v2421
        %v3988 = vunpack.c.l.b16 %v2422
        %v3989 = vunpack.c.h.b16 %v2422
        %v3990 = vunpack.c.l.b16 %v2423
        %v3991 = vunpack.c.h.b16 %v2423
        %v3992 = vunpack.c.l.b16 %v2424
        %v3993 = vunpack.c.h.b16 %v2424
        %v3994 = vunpack.c.l.b16 %v2425
        %v3995 = vunpack.c.h.b16 %v2425
        %v3996 = vunpack.c.l.b16 %v2426
        %v3997 = vunpack.c.h.b16 %v2426
        %v3998 = vunpack.c.l.b16 %v2427
        %v3999 = vunpack.c.h.b16 %v2427
        %v4000 = vunpack.c.l.b16 %v2428
        %v4001 = vunpack.c.h.b16 %v2428
        %v4002 = vunpack.c.l.b16 %v2429
        %v4003 = vunpack.c.h.b16 %v2429
        %v4004 = vunpack.c.l.b16 %v2430
        %v4005 = vunpack.c.h.b16 %v2430
        %v4006 = vunpack.c.l.b16 %v2431
        %v4007 = vunpack.c.h.b16 %v2431
        %v4008 = vunpack.c.l.b16 %v2432
        %v4009 = vunpack.c.h.b16 %v2432
        %v4010 = vunpack.c.l.b16 %v2433
        %v4011 = vunpack.c.h.b16 %v2433
        %v4012 = vunpack.c.l.b16 %v2434
        %v4013 = vunpack.c.h.b16 %v2434
        %v4014 = vunpack.c.l.b16 %v2435
        %v4015 = vunpack.c.h.b16 %v2435
        %v4016 = vunpack.c.l.b16 %v2436
        %v4017 = vunpack.c.h.b16 %v2436
        %v4018 = vunpack.c.l.b16 %v2437
        %v4019 = vunpack.c.h.b16 %v2437
        %v4020 = vunpack.c.l.b16 %v2438
        %v4021 = vunpack.c.h.b16 %v2438
        %v4022 = vunpack.c.l.b16 %v2439
        %v4023 = vunpack.c.h.b16 %v2439
        %v4024 = vunpack.c.l.b16 %v2440
        %v4025 = vunpack.c.h.b16 %v2440
        %v4026 = vunpack.c.l.b16 %v2441
        %v4027 = vunpack.c.h.b16 %v2441
        %v4028 = vunpack.c.l.b16 %v2442
        %v4029 = vunpack.c.h.b16 %v2442
        %v4030 = vunpack.c.l.b16 %v2443
        %v4031 = vunpack.c.h.b16 %v2443
        %v4032 = vunpack.c.l.b16 %v2444
        %v4033 = vunpack.c.h.b16 %v2444
        %v4034 = vunpack.c.l.b16 %v2445
        %v4035 = vunpack.c.h.b16 %v2445
        %v4036 = vunpack.c.l.b16 %v2446
        %v4037 = vunpack.c.h.b16 %v2446
        %v4038 = vunpack.c.l.b16 %v2447
        %v4039 = vunpack.c.h.b16 %v2447
        %v4040 = vunpack.c.l.b16 %v2448
        %v4041 = vunpack.c.h.b16 %v2448
        %v4042 = vunpack.c.l.b16 %v2449
        %v4043 = vunpack.c.h.b16 %v2449
        %v4044 = vunpack.c.l.b16 %v2450
        %v4045 = vunpack.c.h.b16 %v2450
        %v4046 = vunpack.c.l.b16 %v2451
        %v4047 = vunpack.c.h.b16 %v2451
        %v4048 = vunpack.c.l.b16 %v2452
        %v4049 = vunpack.c.h.b16 %v2452
        %v4050 = vunpack.c.l.b16 %v2453
        %v4051 = vunpack.c.h.b16 %v2453
        %v4052 = vunpack.c.l.b16 %v2454
        %v4053 = vunpack.c.h.b16 %v2454
        %v4054 = vunpack.c.l.b16 %v2455
        %v4055 = vunpack.c.h.b16 %v2455
        %v4056 = vunpack.c.l.b16 %v2456
        %v4057 = vunpack.c.h.b16 %v2456
        %v4058 = vunpack.c.l.b16 %v2457
        %v4059 = vunpack.c.h.b16 %v2457
        %v4060 = vunpack.c.l.b16 %v2458
        %v4061 = vunpack.c.h.b16 %v2458
        %v4062 = vunpack.c.l.b16 %v2459
        %v4063 = vunpack.c.h.b16 %v2459
        %v4064 = vunpack.c.l.b16 %v2460
        %v4065 = vunpack.c.h.b16 %v2460
        %v4066 = vunpack.c.l.b16 %v2461
        %v4067 = vunpack.c.h.b16 %v2461
        %v4068 = vunpack.c.l.b16 %v2462
        %v4069 = vunpack.c.h.b16 %v2462
        %v4070 = vunpack.c.l.b16 %v2463
        %v4071 = vunpack.c.h.b16 %v2463
        %v4072 = vunpack.c.l.b16 %v2464
        %v4073 = vunpack.c.h.b16 %v2464
        %v4074 = vunpack.c.l.b16 %v2465
        %v4075 = vunpack.c.h.b16 %v2465
        %v4076 = vunpack.c.l.b16 %v2466
        %v4077 = vunpack.c.h.b16 %v2466
        %v4078 = vunpack.c.l.b16 %v2467
        %v4079 = vunpack.c.h.b16 %v2467
        %v4080 = vunpack.c.l.b16 %v2468
        %v4081 = vunpack.c.h.b16 %v2468
        %v4082 = vunpack.c.l.b16 %v2469
        %v4083 = vunpack.c.h.b16 %v2469
        %v4084 = vunpack.c.l.b16 %v2470
        %v4085 = vunpack.c.h.b16 %v2470
        %v4086 = vunpack.c.l.b16 %v2471
        %v4087 = vunpack.c.h.b16 %v2471
        %v4088 = vunpack.c.l.b16 %v2472
        %v4089 = vunpack.c.h.b16 %v2472
        %v4090 = vunpack.c.l.b16 %v2473
        %v4091 = vunpack.c.h.b16 %v2473
        %v4092 = vunpack.c.l.b16 %v2474
        %v4093 = vunpack.c.h.b16 %v2474
        %v4094 = vunpack.c.l.b16 %v2475
        %v4095 = vunpack.c.h.b16 %v2475
        %v4096 = vpack.c.b16 %v3088, %v3072
        %v4097 = vpack.c.b16 %v3089, %v3073
        %v4098 = vpack.c.b16 %v3090, %v3074
        %v4099 = vpack.c.b16 %v3091, %v3075
        %v4100 = vpack.c.b16 %v3092, %v3076
        %v4101 = vpack.c.b16 %v3093, %v3077
        %v4102 = vpack.c.b16 %v3094, %v3078
        %v4103 = vpack.c.b16 %v3095, %v3079
        %v4104 = vpack.c.b16 %v3096, %v3080
        %v4105 = vpack.c.b16 %v3097, %v3081
        %v4106 = vpack.c.b16 %v3098, %v3082
        %v4107 = vpack.c.b16 %v3099, %v3083
        %v4108 = vpack.c.b16 %v3100, %v3084
        %v4109 = vpack.c.b16 %v3101, %v3085
        %v4110 = vpack.c.b16 %v3102, %v3086
        %v4111 = vpack.c.b16 %v3103, %v3087
        %v4112 = vpack.c.b16 %v3120, %v3104
        %v4113 = vpack.c.b16 %v3121, %v3105
        %v4114 = vpack.c.b16 %v3122, %v3106
        %v4115 = vpack.c.b16 %v3123, %v3107
        %v4116 = vpack.c.b16 %v3124, %v3108
        %v4117 = vpack.c.b16 %v3125, %v3109
        %v4118 = vpack.c.b16 %v3126, %v3110
        %v4119 = vpack.c.b16 %v3127, %v3111
        %v4120 = vpack.c.b16 %v3128, %v3112
        %v4121 = vpack.c.b16 %v3129, %v3113
        %v4122 = vpack.c.b16 %v3130, %v3114
        %v4123 = vpack.c.b16 %v3131, %v3115
        %v4124 = vpack.c.b16 %v3132, %v3116
        %v4125 = vpack.c.b16 %v3133, %v3117
        %v4126 = vpack.c.b16 %v3134, %v3118
        %v4127 = vpack.c.b16 %v3135, %v3119
        %v4128 = vpack.c.b16 %v3152, %v3136
        %v4129 = vpack.c.b16 %v3153, %v3137
        %v4130 = vpack.c.b16 %v3154, %v3138
        %v4131 = vpack.c.b16 %v3155, %v3139
        %v4132 = vpack.c.b16 %v3156, %v3140
        %v4133 = vpack.c.b16 %v3157, %v3141
        %v4134 = vpack.c.b16 %v3158, %v3142
        %v4135 = vpack.c.b16 %v3159, %v3143
        %v4136 = vpack.c.b16 %v3160, %v3144
        %v4137 = vpack.c.b16 %v3161, %v3145
        %v4138 = vpack.c.b16 %v3162, %v3146
        %v4139 = vpack.c.b16 %v3163, %v3147
        %v4140 = vpack.c.b16 %v3164, %v3148
        %v4141 = vpack.c.b16 %v3165, %v3149
        %v4142 = vpack.c.b16 %v3166, %v3150
        %v4143 = vpack.c.b16 %v3167, %v3151
        %v4144 = vpack.c.b16 %v3184, %v3168
        %v4145 = vpack.c.b16 %v3185, %v3169
        %v4146 = vpack.c.b16 %v3186, %v3170
        %v4147 = vpack.c.b16 %v3187, %v3171
        %v4148 = vpack.c.b16 %v3188, %v3172
        %v4149 = vpack.c.b16 %v3189, %v3173
        %v4150 = vpack.c.b16 %v3190, %v3174
        %v4151 = vpack.c.b16 %v3191, %v3175
        %v4152 = vpack.c.b16 %v3192, %v3176
        %v4153 = vpack.c.b16 %v3193, %v3177
        %v4154 = vpack.c.b16 %v3194, %v3178
        %v4155 = vpack.c.b16 %v3195, %v3179
        %v4156 = vpack.c.b16 %v3196, %v3180
        %v4157 = vpack.c.b16 %v3197, %v3181
        %v4158 = vpack.c.b16 %v3198, %v3182
        %v4159 = vpack.c.b16 %v3199, %v3183
        %v4160 = vpack.c.b16 %v3216, %v3200
        %v4161 = vpack.c.b16 %v3217, %v3201
        %v4162 = vpack.c.b16 %v3218, %v3202
        %v4163 = vpack.c.b16 %v3219, %v3203
        %v4164 = vpack.c.b16 %v3220, %v3204
        %v4165 = vpack.c.b16 %v3221, %v3205
        %v4166 = vpack.c.b16 %v3222, %v3206
        %v4167 = vpack.c.b16 %v3223, %v3207
        %v4168 = vpack.c.b16 %v3224, %v3208
        %v4169 = vpack.c.b16 %v3225, %v3209
        %v4170 = vpack.c.b16 %v3226, %v3210
        %v4171 = vpack.c.b16 %v3227, %v3211
        %v4172 = vpack.c.b16 %v3228, %v3212
        %v4173 = vpack.c.b16 %v3229, %v3213
        %v4174 = vpack.c.b16 %v3230, %v3214
        %v4175 = vpack.c.b16 %v3231, %v3215
        %v4176 = vpack.c.b16 %v3248, %v3232
        %v4177 = vpack.c.b16 %v3249, %v3233
        %v4178 = vpack.c.b16 %v3250, %v3234
        %v4179 = vpack.c.b16 %v3251, %v3235
        %v4180 = vpack.c.b16 %v3252, %v3236
        %v4181 = vpack.c.b16 %v3253, %v3237
        %v4182 = vpack.c.b16 %v3254, %v3238
        %v4183 = vpack.c.b16 %v3255, %v3239
        %v4184 = vpack.c.b16 %v3256, %v3240
        %v4185 = vpack.c.b16 %v3257, %v3241
        %v4186 = vpack.c.b16 %v3258, %v3242
        %v4187 = vpack.c.b16 %v3259, %v3243
        %v4188 = vpack.c.b16 %v3260, %v3244
        %v4189 = vpack.c.b16 %v3261, %v3245
        %v4190 = vpack.c.b16 %v3262, %v3246
        %v4191 = vpack.c.b16 %v3263, %v3247
        %v4192 = vpack.c.b16 %v3280, %v3264
        %v4193 = vpack.c.b16 %v3281, %v3265
        %v4194 = vpack.c.b16 %v3282, %v3266
        %v4195 = vpack.c.b16 %v3283, %v3267
        %v4196 = vpack.c.b16 %v3284, %v3268
        %v4197 = vpack.c.b16 %v3285, %v3269
        %v4198 = vpack.c.b16 %v3286, %v3270
        %v4199 = vpack.c.b16 %v3287, %v3271
        %v4200 = vpack.c.b16 %v3288, %v3272
        %v4201 = vpack.c.b16 %v3289, %v3273
        %v4202 = vpack.c.b16 %v3290, %v3274
        %v4203 = vpack.c.b16 %v3291, %v3275
        %v4204 = vpack.c.b16 %v3292, %v3276
        %v4205 = vpack.c.b16 %v3293, %v3277
        %v4206 = vpack.c.b16 %v3294, %v3278
        %v4207 = vpack.c.b16 %v3295, %v3279
        %v4208 = vpack.c.b16 %v3312, %v3296
        %v4209 = vpack.c.b16 %v3313, %v3297
        %v4210 = vpack.c.b16 %v3314, %v3298
        %v4211 = vpack.c.b16 %v3315, %v3299
        %v4212 = vpack.c.b16 %v3316, %v3300
        %v4213 = vpack.c.b16 %v3317, %v3301
        %v4214 = vpack.c.b16 %v3318, %v3302
        %v4215 = vpack.c.b16 %v3319, %v3303
        %v4216 = vpack.c.b16 %v3320, %v3304
        %v4217 = vpack.c.b16 %v3321, %v3305
        %v4218 = vpack.c.b16 %v3322, %v3306
        %v4219 = vpack.c.b16 %v3323, %v3307
        %v4220 = vpack.c.b16 %v3324, %v3308
        %v4221 = vpack.c.b16 %v3325, %v3309
        %v4222 = vpack.c.b16 %v3326, %v3310
        %v4223 = vpack.c.b16 %v3327, %v3311
        %v4224 = vpack.c.b16 %v3344, %v3328
        %v4225 = vpack.c.b16 %v3345, %v3329
        %v4226 = vpack.c.b16 %v3346, %v3330
        %v4227 = vpack.c.b16 %v3347, %v3331
        %v4228 = vpack.c.b16 %v3348, %v3332
        %v4229 = vpack.c.b16 %v3349, %v3333
        %v4230 = vpack.c.b16 %v3350, %v3334
        %v4231 = vpack.c.b16 %v3351, %v3335
        %v4232 = vpack.c.b16 %v3352, %v3336
        %v4233 = vpack.c.b16 %v3353, %v3337
        %v4234 = vpack.c.b16 %v3354, %v3338
        %v4235 = vpack.c.b16 %v3355, %v3339
        %v4236 = vpack.c.b16 %v3356, %v3340
        %v4237 = vpack.c.b16 %v3357, %v3341
        %v4238 = vpack.c.b16 %v3358, %v3342
        %v4239 = vpack.c.b16 %v3359, %v3343
        %v4240 = vpack.c.b16 %v3376, %v3360
        %v4241 = vpack.c.b16 %v3377, %v3361
        %v4242 = vpack.c.b16 %v3378, %v3362
        %v4243 = vpack.c.b16 %v3379, %v3363
        %v4244 = vpack.c.b16 %v3380, %v3364
        %v4245 = vpack.c.b16 %v3381, %v3365
        %v4246 = vpack.c.b16 %v3382, %v3366
        %v4247 = vpack.c.b16 %v3383, %v3367
        %v4248 = vpack.c.b16 %v3384, %v3368
        %v4249 = vpack.c.b16 %v3385, %v3369
        %v4250 = vpack.c.b16 %v3386, %v3370
        %v4251 = vpack.c.b16 %v3387, %v3371
        %v4252 = vpack.c.b16 %v3388, %v3372
        %v4253 = vpack.c.b16 %v3389, %v3373
        %v4254 = vpack.c.b16 %v3390, %v3374
        %v4255 = vpack.c.b16 %v3391, %v3375
        %v4256 = vpack.c.b16 %v3408, %v3392
        %v4257 = vpack.c.b16 %v3409, %v3393
        %v4258 = vpack.c.b16 %v3410, %v3394
        %v4259 = vpack.c.b16 %v3411, %v3395
        %v4260 = vpack.c.b16 %v3412, %v3396
        %v4261 = vpack.c.b16 %v3413, %v3397
        %v4262 = vpack.c.b16 %v3414, %v3398
        %v4263 = vpack.c.b16 %v3415, %v3399
        %v4264 = vpack.c.b16 %v3416, %v3400
        %v4265 = vpack.c.b16 %v3417, %v3401
        %v4266 = vpack.c.b16 %v3418, %v3402
        %v4267 = vpack.c.b16 %v3419, %v3403
        %v4268 = vpack.c.b16 %v3420, %v3404
        %v4269 = vpack.c.b16 %v3421, %v3405
        %v4270 = vpack.c.b16 %v3422, %v3406
        %v4271 = vpack.c.b16 %v3423, %v3407
        %v4272 = vpack.c.b16 %v3440, %v3424
        %v4273 = vpack.c.b16 %v3441, %v3425
        %v4274 = vpack.c.b16 %v3442, %v3426
        %v4275 = vpack.c.b16 %v3443, %v3427
        %v4276 = vpack.c.b16 %v3444, %v3428
        %v4277 = vpack.c.b16 %v3445, %v3429
        %v4278 = vpack.c.b16 %v3446, %v3430
        %v4279 = vpack.c.b16 %v3447, %v3431
        %v4280 = vpack.c.b16 %v3448, %v3432
        %v4281 = vpack.c.b16 %v3449, %v3433
        %v4282 = vpack.c.b16 %v3450, %v3434
        %v4283 = vpack.c.b16 %v3451, %v3435
        %v4284 = vpack.c.b16 %v3452, %v3436
        %v4285 = vpack.c.b16 %v3453, %v3437
        %v4286 = vpack.c.b16 %v3454, %v3438
        %v4287 = vpack.c.b16 %v3455, %v3439
        %v4288 = vpack.c.b16 %v3472, %v3456
        %v4289 = vpack.c.b16 %v3473, %v3457
        %v4290 = vpack.c.b16 %v3474, %v3458
        %v4291 = vpack.c.b16 %v3475, %v3459
        %v4292 = vpack.c.b16 %v3476, %v3460
        %v4293 = vpack.c.b16 %v3477, %v3461
        %v4294 = vpack.c.b16 %v3478, %v3462
        %v4295 = vpack.c.b16 %v3479, %v3463
        %v4296 = vpack.c.b16 %v3480, %v3464
        %v4297 = vpack.c.b16 %v3481, %v3465
        %v4298 = vpack.c.b16 %v3482, %v3466
        %v4299 = vpack.c.b16 %v3483, %v3467
        %v4300 = vpack.c.b16 %v3484, %v3468
        %v4301 = vpack.c.b16 %v3485, %v3469
        %v4302 = vpack.c.b16 %v3486, %v3470
        %v4303 = vpack.c.b16 %v3487, %v3471
        %v4304 = vpack.c.b16 %v3504, %v3488
        %v4305 = vpack.c.b16 %v3505, %v3489
        %v4306 = vpack.c.b16 %v3506, %v3490
        %v4307 = vpack.c.b16 %v3507, %v3491
        %v4308 = vpack.c.b16 %v3508, %v3492
        %v4309 = vpack.c.b16 %v3509, %v3493
        %v4310 = vpack.c.b16 %v3510, %v3494
        %v4311 = vpack.c.b16 %v3511, %v3495
        %v4312 = vpack.c.b16 %v3512, %v3496
        %v4313 = vpack.c.b16 %v3513, %v3497
        %v4314 = vpack.c.b16 %v3514, %v3498
        %v4315 = vpack.c.b16 %v3515, %v3499
        %v4316 = vpack.c.b16 %v3516, %v3500
        %v4317 = vpack.c.b16 %v3517, %v3501
        %v4318 = vpack.c.b16 %v3518, %v3502
        %v4319 = vpack.c.b16 %v3519, %v3503
        %v4320 = vpack.c.b16 %v3536, %v3520
        %v4321 = vpack.c.b16 %v3537, %v3521
        %v4322 = vpack.c.b16 %v3538, %v3522
        %v4323 = vpack.c.b16 %v3539, %v3523
        %v4324 = vpack.c.b16 %v3540, %v3524
        %v4325 = vpack.c.b16 %v3541, %v3525
        %v4326 = vpack.c.b16 %v3542, %v3526
        %v4327 = vpack.c.b16 %v3543, %v3527
        %v4328 = vpack.c.b16 %v3544, %v3528
        %v4329 = vpack.c.b16 %v3545, %v3529
        %v4330 = vpack.c.b16 %v3546, %v3530
        %v4331 = vpack.c.b16 %v3547, %v3531
        %v4332 = vpack.c.b16 %v3548, %v3532
        %v4333 = vpack.c.b16 %v3549, %v3533
        %v4334 = vpack.c.b16 %v3550, %v3534
        %v4335 = vpack.c.b16 %v3551, %v3535
        %v4336 = vpack.c.b16 %v3568, %v3552
        %v4337 = vpack.c.b16 %v3569, %v3553
        %v4338 = vpack.c.b16 %v3570, %v3554
        %v4339 = vpack.c.b16 %v3571, %v3555
        %v4340 = vpack.c.b16 %v3572, %v3556
        %v4341 = vpack.c.b16 %v3573, %v3557
        %v4342 = vpack.c.b16 %v3574, %v3558
        %v4343 = vpack.c.b16 %v3575, %v3559
        %v4344 = vpack.c.b16 %v3576, %v3560
        %v4345 = vpack.c.b16 %v3577, %v3561
        %v4346 = vpack.c.b16 %v3578, %v3562
        %v4347 = vpack.c.b16 %v3579, %v3563
        %v4348 = vpack.c.b16 %v3580, %v3564
        %v4349 = vpack.c.b16 %v3581, %v3565
        %v4350 = vpack.c.b16 %v3582, %v3566
        %v4351 = vpack.c.b16 %v3583, %v3567
        %v4352 = vpack.c.b16 %v3600, %v3584
        %v4353 = vpack.c.b16 %v3601, %v3585
        %v4354 = vpack.c.b16 %v3602, %v3586
        %v4355 = vpack.c.b16 %v3603, %v3587
        %v4356 = vpack.c.b16 %v3604, %v3588
        %v4357 = vpack.c.b16 %v3605, %v3589
        %v4358 = vpack.c.b16 %v3606, %v3590
        %v4359 = vpack.c.b16 %v3607, %v3591
        %v4360 = vpack.c.b16 %v3608, %v3592
        %v4361 = vpack.c.b16 %v3609, %v3593
        %v4362 = vpack.c.b16 %v3610, %v3594
        %v4363 = vpack.c.b16 %v3611, %v3595
        %v4364 = vpack.c.b16 %v3612, %v3596
        %v4365 = vpack.c.b16 %v3613, %v3597
        %v4366 = vpack.c.b16 %v3614, %v3598
        %v4367 = vpack.c.b16 %v3615, %v3599
        %v4368 = vpack.c.b16 %v3632, %v3616
        %v4369 = vpack.c.b16 %v3633, %v3617
        %v4370 = vpack.c.b16 %v3634, %v3618
        %v4371 = vpack.c.b16 %v3635, %v3619
        %v4372 = vpack.c.b16 %v3636, %v3620
        %v4373 = vpack.c.b16 %v3637, %v3621
        %v4374 = vpack.c.b16 %v3638, %v3622
        %v4375 = vpack.c.b16 %v3639, %v3623
        %v4376 = vpack.c.b16 %v3640, %v3624
        %v4377 = vpack.c.b16 %v3641, %v3625
        %v4378 = vpack.c.b16 %v3642, %v3626
        %v4379 = vpack.c.b16 %v3643, %v3627
        %v4380 = vpack.c.b16 %v3644, %v3628
        %v4381 = vpack.c.b16 %v3645, %v3629
        %v4382 = vpack.c.b16 %v3646, %v3630
        %v4383 = vpack.c.b16 %v3647, %v3631
        %v4384 = vpack.c.b16 %v3664, %v3648
        %v4385 = vpack.c.b16 %v3665, %v3649
        %v4386 = vpack.c.b16 %v3666, %v3650
        %v4387 = vpack.c.b16 %v3667, %v3651
        %v4388 = vpack.c.b16 %v3668, %v3652
        %v4389 = vpack.c.b16 %v3669, %v3653
        %v4390 = vpack.c.b16 %v3670, %v3654
        %v4391 = vpack.c.b16 %v3671, %v3655
        %v4392 = vpack.c.b16 %v3672, %v3656
        %v4393 = vpack.c.b16 %v3673, %v3657
        %v4394 = vpack.c.b16 %v3674, %v3658
        %v4395 = vpack.c.b16 %v3675, %v3659
        %v4396 = vpack.c.b16 %v3676, %v3660
        %v4397 = vpack.c.b16 %v3677, %v3661
        %v4398 = vpack.c.b16 %v3678, %v3662
        %v4399 = vpack.c.b16 %v3679, %v3663
        %v4400 = vpack.c.b16 %v3696, %v3680
        %v4401 = vpack.c.b16 %v3697, %v3681
        %v4402 = vpack.c.b16 %v3698, %v3682
        %v4403 = vpack.c.b16 %v3699, %v3683
        %v4404 = vpack.c.b16 %v3700, %v3684
        %v4405 = vpack.c.b16 %v3701, %v3685
        %v4406 = vpack.c.b16 %v3702, %v3686
        %v4407 = vpack.c.b16 %v3703, %v3687
        %v4408 = vpack.c.b16 %v3704, %v3688
        %v4409 = vpack.c.b16 %v3705, %v3689
        %v4410 = vpack.c.b16 %v3706, %v3690
        %v4411 = vpack.c.b16 %v3707, %v3691
        %v4412 = vpack.c.b16 %v3708, %v3692
        %v4413 = vpack.c.b16 %v3709, %v3693
        %v4414 = vpack.c.b16 %v3710, %v3694
        %v4415 = vpack.c.b16 %v3711, %v3695
        %v4416 = vpack.c.b16 %v3728, %v3712
        %v4417 = vpack.c.b16 %v3729, %v3713
        %v4418 = vpack.c.b16 %v3730, %v3714
        %v4419 = vpack.c.b16 %v3731, %v3715
        %v4420 = vpack.c.b16 %v3732, %v3716
        %v4421 = vpack.c.b16 %v3733, %v3717
        %v4422 = vpack.c.b16 %v3734, %v3718
        %v4423 = vpack.c.b16 %v3735, %v3719
        %v4424 = vpack.c.b16 %v3736, %v3720
        %v4425 = vpack.c.b16 %v3737, %v3721
        %v4426 = vpack.c.b16 %v3738, %v3722
        %v4427 = vpack.c.b16 %v3739, %v3723
        %v4428 = vpack.c.b16 %v3740, %v3724
        %v4429 = vpack.c.b16 %v3741, %v3725
        %v4430 = vpack.c.b16 %v3742, %v3726
        %v4431 = vpack.c.b16 %v3743, %v3727
        %v4432 = vpack.c.b16 %v3760, %v3744
        %v4433 = vpack.c.b16 %v3761, %v3745
        %v4434 = vpack.c.b16 %v3762, %v3746
        %v4435 = vpack.c.b16 %v3763, %v3747
        %v4436 = vpack.c.b16 %v3764, %v3748
        %v4437 = vpack.c.b16 %v3765, %v3749
        %v4438 = vpack.c.b16 %v3766, %v3750
        %v4439 = vpack.c.b16 %v3767, %v3751
        %v4440 = vpack.c.b16 %v3768, %v3752
        %v4441 = vpack.c.b16 %v3769, %v3753
        %v4442 = vpack.c.b16 %v3770, %v3754
        %v4443 = vpack.c.b16 %v3771, %v3755
        %v4444 = vpack.c.b16 %v3772, %v3756
        %v4445 = vpack.c.b16 %v3773, %v3757
        %v4446 = vpack.c.b16 %v3774, %v3758
        %v4447 = vpack.c.b16 %v3775, %v3759
        %v4448 = vpack.c.b16 %v3792, %v3776
        %v4449 = vpack.c.b16 %v3793, %v3777
        %v4450 = vpack.c.b16 %v3794, %v3778
        %v4451 = vpack.c.b16 %v3795, %v3779
        %v4452 = vpack.c.b16 %v3796, %v3780
        %v4453 = vpack.c.b16 %v3797, %v3781
        %v4454 = vpack.c.b16 %v3798, %v3782
        %v4455 = vpack.c.b16 %v3799, %v3783
        %v4456 = vpack.c.b16 %v3800, %v3784
        %v4457 = vpack.c.b16 %v3801, %v3785
        %v4458 = vpack.c.b16 %v3802, %v3786
        %v4459 = vpack.c.b16 %v3803, %v3787
        %v4460 = vpack.c.b16 %v3804, %v3788
        %v4461 = vpack.c.b16 %v3805, %v3789
        %v4462 = vpack.c.b16 %v3806, %v3790
        %v4463 = vpack.c.b16 %v3807, %v3791
        %v4464 = vpack.c.b16 %v3824, %v3808
        %v4465 = vpack.c.b16 %v3825, %v3809
        %v4466 = vpack.c.b16 %v3826, %v3810
        %v4467 = vpack.c.b16 %v3827, %v3811
        %v4468 = vpack.c.b16 %v3828, %v3812
        %v4469 = vpack.c.b16 %v3829, %v3813
        %v4470 = vpack.c.b16 %v3830, %v3814
        %v4471 = vpack.c.b16 %v3831, %v3815
        %v4472 = vpack.c.b16 %v3832, %v3816
        %v4473 = vpack.c.b16 %v3833, %v3817
        %v4474 = vpack.c.b16 %v3834, %v3818
        %v4475 = vpack.c.b16 %v3835, %v3819
        %v4476 = vpack.c.b16 %v3836, %v3820
        %v4477 = vpack.c.b16 %v3837, %v3821
        %v4478 = vpack.c.b16 %v3838, %v3822
        %v4479 = vpack.c.b16 %v3839, %v3823
        %v4480 = vpack.c.b16 %v3856, %v3840
        %v4481 = vpack.c.b16 %v3857, %v3841
        %v4482 = vpack.c.b16 %v3858, %v3842
        %v4483 = vpack.c.b16 %v3859, %v3843
        %v4484 = vpack.c.b16 %v3860, %v3844
        %v4485 = vpack.c.b16 %v3861, %v3845
        %v4486 = vpack.c.b16 %v3862, %v3846
        %v4487 = vpack.c.b16 %v3863, %v3847
        %v4488 = vpack.c.b16 %v3864, %v3848
        %v4489 = vpack.c.b16 %v3865, %v3849
        %v4490 = vpack.c.b16 %v3866, %v3850
        %v4491 = vpack.c.b16 %v3867, %v3851
        %v4492 = vpack.c.b16 %v3868, %v3852
        %v4493 = vpack.c.b16 %v3869, %v3853
        %v4494 = vpack.c.b16 %v3870, %v3854
        %v4495 = vpack.c.b16 %v3871, %v3855
        %v4496 = vpack.c.b16 %v3888, %v3872
        %v4497 = vpack.c.b16 %v3889, %v3873
        %v4498 = vpack.c.b16 %v3890, %v3874
        %v4499 = vpack.c.b16 %v3891, %v3875
        %v4500 = vpack.c.b16 %v3892, %v3876
        %v4501 = vpack.c.b16 %v3893, %v3877
        %v4502 = vpack.c.b16 %v3894, %v3878
        %v4503 = vpack.c.b16 %v3895, %v3879
        %v4504 = vpack.c.b16 %v3896, %v3880
        %v4505 = vpack.c.b16 %v3897, %v3881
        %v4506 = vpack.c.b16 %v3898, %v3882
        %v4507 = vpack.c.b16 %v3899, %v3883
        %v4508 = vpack.c.b16 %v3900, %v3884
        %v4509 = vpack.c.b16 %v3901, %v3885
        %v4510 = vpack.c.b16 %v3902, %v3886
        %v4511 = vpack.c.b16 %v3903, %v3887
        %v4512 = vpack.c.b16 %v3920, %v3904
        %v4513 = vpack.c.b16 %v3921, %v3905
        %v4514 = vpack.c.b16 %v3922, %v3906
        %v4515 = vpack.c.b16 %v3923, %v3907
        %v4516 = vpack.c.b16 %v3924, %v3908
        %v4517 = vpack.c.b16 %v3925, %v3909
        %v4518 = vpack.c.b16 %v3926, %v3910
        %v4519 = vpack.c.b16 %v3927, %v3911
        %v4520 = vpack.c.b16 %v3928, %v3912
        %v4521 = vpack.c.b16 %v3929, %v3913
        %v4522 = vpack.c.b16 %v3930, %v3914
        %v4523 = vpack.c.b16 %v3931, %v3915
        %v4524 = vpack.c.b16 %v3932, %v3916
        %v4525 = vpack.c.b16 %v3933, %v3917
        %v4526 = vpack.c.b16 %v3934, %v3918
        %v4527 = vpack.c.b16 %v3935, %v3919
        %v4528 = vpack.c.b16 %v3952, %v3936
        %v4529 = vpack.c.b16 %v3953, %v3937
        %v4530 = vpack.c.b16 %v3954, %v3938
        %v4531 = vpack.c.b16 %v3955, %v3939
        %v4532 = vpack.c.b16 %v3956, %v3940
        %v4533 = vpack.c.b16 %v3957, %v3941
        %v4534 = vpack.c.b16 %v3958, %v3942
        %v4535 = vpack.c.b16 %v3959, %v3943
        %v4536 = vpack.c.b16 %v3960, %v3944
        %v4537 = vpack.c.b16 %v3961, %v3945
        %v4538 = vpack.c.b16 %v3962, %v3946
        %v4539 = vpack.c.b16 %v3963, %v3947
        %v4540 = vpack.c.b16 %v3964, %v3948
        %v4541 = vpack.c.b16 %v3965, %v3949
        %v4542 = vpack.c.b16 %v3966, %v3950
        %v4543 = vpack.c.b16 %v3967, %v3951
        %v4544 = vpack.c.b16 %v3984, %v3968
        %v4545 = vpack.c.b16 %v3985, %v3969
        %v4546 = vpack.c.b16 %v3986, %v3970
        %v4547 = vpack.c.b16 %v3987, %v3971
        %v4548 = vpack.c.b16 %v3988, %v3972
        %v4549 = vpack.c.b16 %v3989, %v3973
        %v4550 = vpack.c.b16 %v3990, %v3974
        %v4551 = vpack.c.b16 %v3991, %v3975
        %v4552 = vpack.c.b16 %v3992, %v3976
        %v4553 = vpack.c.b16 %v3993, %v3977
        %v4554 = vpack.c.b16 %v3994, %v3978
        %v4555 = vpack.c.b16 %v3995, %v3979
        %v4556 = vpack.c.b16 %v3996, %v3980
        %v4557 = vpack.c.b16 %v3997, %v3981
        %v4558 = vpack.c.b16 %v3998, %v3982
        %v4559 = vpack.c.b16 %v3999, %v3983
        %v4560 = vpack.c.b16 %v4016, %v4000
        %v4561 = vpack.c.b16 %v4017, %v4001
        %v4562 = vpack.c.b16 %v4018, %v4002
        %v4563 = vpack.c.b16 %v4019, %v4003
        %v4564 = vpack.c.b16 %v4020, %v4004
        %v4565 = vpack.c.b16 %v4021, %v4005
        %v4566 = vpack.c.b16 %v4022, %v4006
        %v4567 = vpack.c.b16 %v4023, %v4007
        %v4568 = vpack.c.b16 %v4024, %v4008
        %v4569 = vpack.c.b16 %v4025, %v4009
        %v4570 = vpack.c.b16 %v4026, %v4010
        %v4571 = vpack.c.b16 %v4027, %v4011
        %v4572 = vpack.c.b16 %v4028, %v4012
        %v4573 = vpack.c.b16 %v4029, %v4013
        %v4574 = vpack.c.b16 %v4030, %v4014
        %v4575 = vpack.c.b16 %v4031, %v4015
        %v4576 = vpack.c.b16 %v4048, %v4032
        %v4577 = vpack.c.b16 %v4049, %v4033
        %v4578 = vpack.c.b16 %v4050, %v4034
        %v4579 = vpack.c.b16 %v4051, %v4035
        %v4580 = vpack.c.b16 %v4052, %v4036
        %v4581 = vpack.c.b16 %v4053, %v4037
        %v4582 = vpack.c.b16 %v4054, %v4038
        %v4583 = vpack.c.b16 %v4055, %v4039
        %v4584 = vpack.c.b16 %v4056, %v4040
        %v4585 = vpack.c.b16 %v4057, %v4041
        %v4586 = vpack.c.b16 %v4058, %v4042
        %v4587 = vpack.c.b16 %v4059, %v4043
        %v4588 = vpack.c.b16 %v4060, %v4044
        %v4589 = vpack.c.b16 %v4061, %v4045
        %v4590 = vpack.c.b16 %v4062, %v4046
        %v4591 = vpack.c.b16 %v4063, %v4047
        %v4592 = vpack.c.b16 %v4080, %v4064
        %v4593 = vpack.c.b16 %v4081, %v4065
        %v4594 = vpack.c.b16 %v4082, %v4066
        %v4595 = vpack.c.b16 %v4083, %v4067
        %v4596 = vpack.c.b16 %v4084, %v4068
        %v4597 = vpack.c.b16 %v4085, %v4069
        %v4598 = vpack.c.b16 %v4086, %v4070
        %v4599 = vpack.c.b16 %v4087, %v4071
        %v4600 = vpack.c.b16 %v4088, %v4072
        %v4601 = vpack.c.b16 %v4089, %v4073
        %v4602 = vpack.c.b16 %v4090, %v4074
        %v4603 = vpack.c.b16 %v4091, %v4075
        %v4604 = vpack.c.b16 %v4092, %v4076
        %v4605 = vpack.c.b16 %v4093, %v4077
        %v4606 = vpack.c.b16 %v4094, %v4078
        %v4607 = vpack.c.b16 %v4095, %v4079
        %5120 = vmatprep.subr.bf16.mxu0 %v4209
        %5121 = vmatpush1.bf16.msra.mxu0 %v4208
        %5122 = vmatprep.subr.bf16.mxu0 %v4193
        %5123 = vmatpush1.bf16.msra.mxu0 %v4192
        %5124 = vmatprep.subr.bf16.mxu0 %v4177
        %5125 = vmatpush1.bf16.msra.mxu0 %v4176
        %5126 = vmatprep.subr.bf16.mxu0 %v4161
        %5127 = vmatpush1.bf16.msra.mxu0 %v4160
        %5128 = vmatprep.subr.bf16.mxu0 %v4145
        %5129 = vmatpush1.bf16.msra.mxu0 %v4144
        %5130 = vmatprep.subr.bf16.mxu0 %v4129
        %5131 = vmatpush1.bf16.msra.mxu0 %v4128
        %5132 = vmatprep.subr.bf16.mxu0 %v4113
        %5133 = vmatpush1.bf16.msra.mxu0 %v4112
        %5134 = vmatprep.subr.bf16.mxu0 %v4097
        %5135 = vmatpush1.bf16.msra.mxu0 %v4096
        %5136 = vmatprep.subr.bf16.mxu0 %v4337
        %5137 = vmatpush2.bf16.msra.mxu0 %v4336
        %5138 = vmatprep.subr.bf16.mxu0 %v4321
        %5139 = vmatpush2.bf16.msra.mxu0 %v4320
        %5140 = vmatprep.subr.bf16.mxu0 %v4305
        %5141 = vmatpush2.bf16.msra.mxu0 %v4304
        %5142 = vmatprep.subr.bf16.mxu0 %v4289
        %5143 = vmatpush2.bf16.msra.mxu0 %v4288
        %5144 = vmatprep.subr.bf16.mxu0 %v4273
        %5145 = vmatpush2.bf16.msra.mxu0 %v4272
        %5146 = vmatprep.subr.bf16.mxu0 %v4257
        %5147 = vmatpush2.bf16.msra.mxu0 %v4256
        %5148 = vmatprep.subr.bf16.mxu0 %v4241
        %5149 = vmatpush2.bf16.msra.mxu0 %v4240
        %5150 = vmatprep.subr.bf16.mxu0 %v4225
        %5151 = vmatpush2.bf16.msra.mxu0 %v4224
        %5152 = vmatprep.mubr.bf16.mxu0 %v1961
        %5153 = vmatmul.mubr.bf16.gmra.mxu0 %v1960
        %v5154 = vpop.f32.mrf.mxu0
        %v5155 = vadd.f32 %v2483, %v5154
        %v5156 = vpop.f32.mrf.mxu0
        %v5157 = vadd.f32 %v2487, %v5156
        %v5158 = vpop.f32.mrf.mxu0
        %v5159 = vadd.f32 %v2483, %v5158
        %v5160 = vpop.f32.mrf.mxu0
        %v5161 = vadd.f32 %v2487, %v5160
        %5162 = vdwg.mxu0
        %5163 = vmatprep.subr.bf16.mxu0 %v4465
        %5164 = vmatpush1.bf16.msra.mxu0 %v4464
        %5165 = vmatprep.subr.bf16.mxu0 %v4449
        %5166 = vmatpush1.bf16.msra.mxu0 %v4448
        %5167 = vmatprep.subr.bf16.mxu0 %v4433
        %5168 = vmatpush1.bf16.msra.mxu0 %v4432
        %5169 = vmatprep.subr.bf16.mxu0 %v4417
        %5170 = vmatpush1.bf16.msra.mxu0 %v4416
        %5171 = vmatprep.subr.bf16.mxu0 %v4401
        %5172 = vmatpush1.bf16.msra.mxu0 %v4400
        %5173 = vmatprep.subr.bf16.mxu0 %v4385
        %5174 = vmatpush1.bf16.msra.mxu0 %v4384
        %5175 = vmatprep.subr.bf16.mxu0 %v4369
        %5176 = vmatpush1.bf16.msra.mxu0 %v4368
        %5177 = vmatprep.subr.bf16.mxu0 %v4353
        %5178 = vmatpush1.bf16.msra.mxu0 %v4352
        %5179 = vmatprep.subr.bf16.mxu0 %v4593
        %5180 = vmatpush2.bf16.msra.mxu0 %v4592
        %5181 = vmatprep.subr.bf16.mxu0 %v4577
        %5182 = vmatpush2.bf16.msra.mxu0 %v4576
        %5183 = vmatprep.subr.bf16.mxu0 %v4561
        %5184 = vmatpush2.bf16.msra.mxu0 %v4560
        %5185 = vmatprep.subr.bf16.mxu0 %v4545
        %5186 = vmatpush2.bf16.msra.mxu0 %v4544
        %5187 = vmatprep.subr.bf16.mxu0 %v4529
        %5188 = vmatpush2.bf16.msra.mxu0 %v4528
        %5189 = vmatprep.subr.bf16.mxu0 %v4513
        %5190 = vmatpush2.bf16.msra.mxu0 %v4512
        %5191 = vmatprep.subr.bf16.mxu0 %v4497
        %5192 = vmatpush2.bf16.msra.mxu0 %v4496
        %5193 = vmatprep.subr.bf16.mxu0 %v4481
        %5194 = vmatpush2.bf16.msra.mxu0 %v4480
        %5195 = vmatprep.mubr.bf16.mxu0 %v1963
        %5196 = vmatmul.mubr.bf16.gmra.mxu0 %v1962
        %v5197 = vpop.f32.mrf.mxu0
        %v5198 = vadd.f32 %v5155, %v5197
        %v5199 = vpop.f32.mrf.mxu0
        %v5200 = vadd.f32 %v5157, %v5199
        %v5201 = vpop.f32.mrf.mxu0
        %v5202 = vadd.f32 %v5159, %v5201
        %v5203 = vpop.f32.mrf.mxu0
        %v5204 = vadd.f32 %v5161, %v5203
        %5205 = vdwg.mxu0
        %5206 = vmatprep.subr.bf16.mxu0 %v4211
        %5207 = vmatpush1.bf16.msra.mxu0 %v4210
        %5208 = vmatprep.subr.bf16.mxu0 %v4195
        %5209 = vmatpush1.bf16.msra.mxu0 %v4194
        %5210 = vmatprep.subr.bf16.mxu0 %v4179
        %5211 = vmatpush1.bf16.msra.mxu0 %v4178
        %5212 = vmatprep.subr.bf16.mxu0 %v4163
        %5213 = vmatpush1.bf16.msra.mxu0 %v4162
        %5214 = vmatprep.subr.bf16.mxu0 %v4147
        %5215 = vmatpush1.bf16.msra.mxu0 %v4146
        %5216 = vmatprep.subr.bf16.mxu0 %v4131
        %5217 = vmatpush1.bf16.msra.mxu0 %v4130
        %5218 = vmatprep.subr.bf16.mxu0 %v4115
        %5219 = vmatpush1.bf16.msra.mxu0 %v4114
        %5220 = vmatprep.subr.bf16.mxu0 %v4099
        %5221 = vmatpush1.bf16.msra.mxu0 %v4098
        %5222 = vmatprep.subr.bf16.mxu0 %v4339
        %5223 = vmatpush2.bf16.msra.mxu0 %v4338
        %5224 = vmatprep.subr.bf16.mxu0 %v4323
        %5225 = vmatpush2.bf16.msra.mxu0 %v4322
        %5226 = vmatprep.subr.bf16.mxu0 %v4307
        %5227 = vmatpush2.bf16.msra.mxu0 %v4306
        %5228 = vmatprep.subr.bf16.mxu0 %v4291
        %5229 = vmatpush2.bf16.msra.mxu0 %v4290
        %5230 = vmatprep.subr.bf16.mxu0 %v4275
        %5231 = vmatpush2.bf16.msra.mxu0 %v4274
        %5232 = vmatprep.subr.bf16.mxu0 %v4259
        %5233 = vmatpush2.bf16.msra.mxu0 %v4258
        %5234 = vmatprep.subr.bf16.mxu0 %v4243
        %5235 = vmatpush2.bf16.msra.mxu0 %v4242
        %5236 = vmatprep.subr.bf16.mxu0 %v4227
        %5237 = vmatpush2.bf16.msra.mxu0 %v4226
        %5238 = vmatprep.mubr.bf16.mxu0 %v1961
        %5239 = vmatmul.mubr.bf16.gmra.mxu0 %v1960
        %v5240 = vpop.f32.mrf.mxu0
        %v5241 = vadd.f32 %v2491, %v5240
        %v5242 = vpop.f32.mrf.mxu0
        %v5243 = vadd.f32 %v2495, %v5242
        %v5244 = vpop.f32.mrf.mxu0
        %v5245 = vadd.f32 %v2491, %v5244
        %v5246 = vpop.f32.mrf.mxu0
        %v5247 = vadd.f32 %v2495, %v5246
        %5248 = vdwg.mxu0
        %5249 = vmatprep.subr.bf16.mxu0 %v4467
        %5250 = vmatpush1.bf16.msra.mxu0 %v4466
        %5251 = vmatprep.subr.bf16.mxu0 %v4451
        %5252 = vmatpush1.bf16.msra.mxu0 %v4450
        %5253 = vmatprep.subr.bf16.mxu0 %v4435
        %5254 = vmatpush1.bf16.msra.mxu0 %v4434
        %5255 = vmatprep.subr.bf16.mxu0 %v4419
        %5256 = vmatpush1.bf16.msra.mxu0 %v4418
        %5257 = vmatprep.subr.bf16.mxu0 %v4403
        %5258 = vmatpush1.bf16.msra.mxu0 %v4402
        %5259 = vmatprep.subr.bf16.mxu0 %v4387
        %5260 = vmatpush1.bf16.msra.mxu0 %v4386
        %5261 = vmatprep.subr.bf16.mxu0 %v4371
        %5262 = vmatpush1.bf16.msra.mxu0 %v4370
        %5263 = vmatprep.subr.bf16.mxu0 %v4355
        %5264 = vmatpush1.bf16.msra.mxu0 %v4354
        %5265 = vmatprep.subr.bf16.mxu0 %v4595
        %5266 = vmatpush2.bf16.msra.mxu0 %v4594
        %5267 = vmatprep.subr.bf16.mxu0 %v4579
        %5268 = vmatpush2.bf16.msra.mxu0 %v4578
        %5269 = vmatprep.subr.bf16.mxu0 %v4563
        %5270 = vmatpush2.bf16.msra.mxu0 %v4562
        %5271 = vmatprep.subr.bf16.mxu0 %v4547
        %5272 = vmatpush2.bf16.msra.mxu0 %v4546
        %5273 = vmatprep.subr.bf16.mxu0 %v4531
        %5274 = vmatpush2.bf16.msra.mxu0 %v4530
        %5275 = vmatprep.subr.bf16.mxu0 %v4515
        %5276 = vmatpush2.bf16.msra.mxu0 %v4514
        %5277 = vmatprep.subr.bf16.mxu0 %v4499
        %5278 = vmatpush2.bf16.msra.mxu0 %v4498
        %5279 = vmatprep.subr.bf16.mxu0 %v4483
        %5280 = vmatpush2.bf16.msra.mxu0 %v4482
        %5281 = vmatprep.mubr.bf16.mxu0 %v1963
        %5282 = vmatmul.mubr.bf16.gmra.mxu0 %v1962
        %v5283 = vpop.f32.mrf.mxu0
        %v5284 = vadd.f32 %v5241, %v5283
        %v5285 = vpop.f32.mrf.mxu0
        %v5286 = vadd.f32 %v5243, %v5285
        %v5287 = vpop.f32.mrf.mxu0
        %v5288 = vadd.f32 %v5245, %v5287
        %v5289 = vpop.f32.mrf.mxu0
        %v5290 = vadd.f32 %v5247, %v5289
        %5291 = vdwg.mxu0
        %5292 = vmatprep.subr.bf16.mxu0 %v4213
        %5293 = vmatpush1.bf16.msra.mxu0 %v4212
        %5294 = vmatprep.subr.bf16.mxu0 %v4197
        %5295 = vmatpush1.bf16.msra.mxu0 %v4196
        %5296 = vmatprep.subr.bf16.mxu0 %v4181
        %5297 = vmatpush1.bf16.msra.mxu0 %v4180
        %5298 = vmatprep.subr.bf16.mxu0 %v4165
        %5299 = vmatpush1.bf16.msra.mxu0 %v4164
        %5300 = vmatprep.subr.bf16.mxu0 %v4149
        %5301 = vmatpush1.bf16.msra.mxu0 %v4148
        %5302 = vmatprep.subr.bf16.mxu0 %v4133
        %5303 = vmatpush1.bf16.msra.mxu0 %v4132
        %5304 = vmatprep.subr.bf16.mxu0 %v4117
        %5305 = vmatpush1.bf16.msra.mxu0 %v4116
        %5306 = vmatprep.subr.bf16.mxu0 %v4101
        %5307 = vmatpush1.bf16.msra.mxu0 %v4100
        %5308 = vmatprep.subr.bf16.mxu0 %v4341
        %5309 = vmatpush2.bf16.msra.mxu0 %v4340
        %5310 = vmatprep.subr.bf16.mxu0 %v4325
        %5311 = vmatpush2.bf16.msra.mxu0 %v4324
        %5312 = vmatprep.subr.bf16.mxu0 %v4309
        %5313 = vmatpush2.bf16.msra.mxu0 %v4308
        %5314 = vmatprep.subr.bf16.mxu0 %v4293
        %5315 = vmatpush2.bf16.msra.mxu0 %v4292
        %5316 = vmatprep.subr.bf16.mxu0 %v4277
        %5317 = vmatpush2.bf16.msra.mxu0 %v4276
        %5318 = vmatprep.subr.bf16.mxu0 %v4261
        %5319 = vmatpush2.bf16.msra.mxu0 %v4260
        %5320 = vmatprep.subr.bf16.mxu0 %v4245
        %5321 = vmatpush2.bf16.msra.mxu0 %v4244
        %5322 = vmatprep.subr.bf16.mxu0 %v4229
        %5323 = vmatpush2.bf16.msra.mxu0 %v4228
        %5324 = vmatprep.mubr.bf16.mxu0 %v1961
        %5325 = vmatmul.mubr.bf16.gmra.mxu0 %v1960
        %v5326 = vpop.f32.mrf.mxu0
        %v5327 = vadd.f32 %v2499, %v5326
        %v5328 = vpop.f32.mrf.mxu0
        %v5329 = vadd.f32 %v2503, %v5328
        %v5330 = vpop.f32.mrf.mxu0
        %v5331 = vadd.f32 %v2499, %v5330
        %v5332 = vpop.f32.mrf.mxu0
        %v5333 = vadd.f32 %v2503, %v5332
        %5334 = vdwg.mxu0
        %5335 = vmatprep.subr.bf16.mxu0 %v4469
        %5336 = vmatpush1.bf16.msra.mxu0 %v4468
        %5337 = vmatprep.subr.bf16.mxu0 %v4453
        %5338 = vmatpush1.bf16.msra.mxu0 %v4452
        %5339 = vmatprep.subr.bf16.mxu0 %v4437
        %5340 = vmatpush1.bf16.msra.mxu0 %v4436
        %5341 = vmatprep.subr.bf16.mxu0 %v4421
        %5342 = vmatpush1.bf16.msra.mxu0 %v4420
        %5343 = vmatprep.subr.bf16.mxu0 %v4405
        %5344 = vmatpush1.bf16.msra.mxu0 %v4404
        %5345 = vmatprep.subr.bf16.mxu0 %v4389
        %5346 = vmatpush1.bf16.msra.mxu0 %v4388
        %5347 = vmatprep.subr.bf16.mxu0 %v4373
        %5348 = vmatpush1.bf16.msra.mxu0 %v4372
        %5349 = vmatprep.subr.bf16.mxu0 %v4357
        %5350 = vmatpush1.bf16.msra.mxu0 %v4356
        %5351 = vmatprep.subr.bf16.mxu0 %v4597
        %5352 = vmatpush2.bf16.msra.mxu0 %v4596
        %5353 = vmatprep.subr.bf16.mxu0 %v4581
        %5354 = vmatpush2.bf16.msra.mxu0 %v4580
        %5355 = vmatprep.subr.bf16.mxu0 %v4565
        %5356 = vmatpush2.bf16.msra.mxu0 %v4564
        %5357 = vmatprep.subr.bf16.mxu0 %v4549
        %5358 = vmatpush2.bf16.msra.mxu0 %v4548
        %5359 = vmatprep.subr.bf16.mxu0 %v4533
        %5360 = vmatpush2.bf16.msra.mxu0 %v4532
        %5361 = vmatprep.subr.bf16.mxu0 %v4517
        %5362 = vmatpush2.bf16.msra.mxu0 %v4516
        %5363 = vmatprep.subr.bf16.mxu0 %v4501
        %5364 = vmatpush2.bf16.msra.mxu0 %v4500
        %5365 = vmatprep.subr.bf16.mxu0 %v4485
        %5366 = vmatpush2.bf16.msra.mxu0 %v4484
        %5367 = vmatprep.mubr.bf16.mxu0 %v1963
        %5368 = vmatmul.mubr.bf16.gmra.mxu0 %v1962
        %v5369 = vpop.f32.mrf.mxu0
        %v5370 = vadd.f32 %v5327, %v5369
        %v5371 = vpop.f32.mrf.mxu0
        %v5372 = vadd.f32 %v5329, %v5371
        %v5373 = vpop.f32.mrf.mxu0
        %v5374 = vadd.f32 %v5331, %v5373
        %v5375 = vpop.f32.mrf.mxu0
        %v5376 = vadd.f32 %v5333, %v5375
        %5377 = vdwg.mxu0
        %5378 = vmatprep.subr.bf16.mxu0 %v4215
        %5379 = vmatpush1.bf16.msra.mxu0 %v4214
        %5380 = vmatprep.subr.bf16.mxu0 %v4199
        %5381 = vmatpush1.bf16.msra.mxu0 %v4198
        %5382 = vmatprep.subr.bf16.mxu0 %v4183
        %5383 = vmatpush1.bf16.msra.mxu0 %v4182
        %5384 = vmatprep.subr.bf16.mxu0 %v4167
        %5385 = vmatpush1.bf16.msra.mxu0 %v4166
        %5386 = vmatprep.subr.bf16.mxu0 %v4151
        %5387 = vmatpush1.bf16.msra.mxu0 %v4150
        %5388 = vmatprep.subr.bf16.mxu0 %v4135
        %5389 = vmatpush1.bf16.msra.mxu0 %v4134
        %5390 = vmatprep.subr.bf16.mxu0 %v4119
        %5391 = vmatpush1.bf16.msra.mxu0 %v4118
        %5392 = vmatprep.subr.bf16.mxu0 %v4103
        %5393 = vmatpush1.bf16.msra.mxu0 %v4102
        %5394 = vmatprep.subr.bf16.mxu0 %v4343
        %5395 = vmatpush2.bf16.msra.mxu0 %v4342
        %5396 = vmatprep.subr.bf16.mxu0 %v4327
        %5397 = vmatpush2.bf16.msra.mxu0 %v4326
        %5398 = vmatprep.subr.bf16.mxu0 %v4311
        %5399 = vmatpush2.bf16.msra.mxu0 %v4310
        %5400 = vmatprep.subr.bf16.mxu0 %v4295
        %5401 = vmatpush2.bf16.msra.mxu0 %v4294
        %5402 = vmatprep.subr.bf16.mxu0 %v4279
        %5403 = vmatpush2.bf16.msra.mxu0 %v4278
        %5404 = vmatprep.subr.bf16.mxu0 %v4263
        %5405 = vmatpush2.bf16.msra.mxu0 %v4262
        %5406 = vmatprep.subr.bf16.mxu0 %v4247
        %5407 = vmatpush2.bf16.msra.mxu0 %v4246
        %5408 = vmatprep.subr.bf16.mxu0 %v4231
        %5409 = vmatpush2.bf16.msra.mxu0 %v4230
        %5410 = vmatprep.mubr.bf16.mxu0 %v1961
        %5411 = vmatmul.mubr.bf16.gmra.mxu0 %v1960
        %v5412 = vpop.f32.mrf.mxu0
        %v5413 = vadd.f32 %v2507, %v5412
        %v5414 = vpop.f32.mrf.mxu0
        %v5415 = vadd.f32 %v2511, %v5414
        %v5416 = vpop.f32.mrf.mxu0
        %v5417 = vadd.f32 %v2507, %v5416
        %v5418 = vpop.f32.mrf.mxu0
        %v5419 = vadd.f32 %v2511, %v5418
        %5420 = vdwg.mxu0
        %5421 = vmatprep.subr.bf16.mxu0 %v4471
        %5422 = vmatpush1.bf16.msra.mxu0 %v4470
        %5423 = vmatprep.subr.bf16.mxu0 %v4455
        %5424 = vmatpush1.bf16.msra.mxu0 %v4454
        %5425 = vmatprep.subr.bf16.mxu0 %v4439
        %5426 = vmatpush1.bf16.msra.mxu0 %v4438
        %5427 = vmatprep.subr.bf16.mxu0 %v4423
        %5428 = vmatpush1.bf16.msra.mxu0 %v4422
        %5429 = vmatprep.subr.bf16.mxu0 %v4407
        %5430 = vmatpush1.bf16.msra.mxu0 %v4406
        %5431 = vmatprep.subr.bf16.mxu0 %v4391
        %5432 = vmatpush1.bf16.msra.mxu0 %v4390
        %5433 = vmatprep.subr.bf16.mxu0 %v4375
        %5434 = vmatpush1.bf16.msra.mxu0 %v4374
        %5435 = vmatprep.subr.bf16.mxu0 %v4359
        %5436 = vmatpush1.bf16.msra.mxu0 %v4358
        %5437 = vmatprep.subr.bf16.mxu0 %v4599
        %5438 = vmatpush2.bf16.msra.mxu0 %v4598
        %5439 = vmatprep.subr.bf16.mxu0 %v4583
        %5440 = vmatpush2.bf16.msra.mxu0 %v4582
        %5441 = vmatprep.subr.bf16.mxu0 %v4567
        %5442 = vmatpush2.bf16.msra.mxu0 %v4566
        %5443 = vmatprep.subr.bf16.mxu0 %v4551
        %5444 = vmatpush2.bf16.msra.mxu0 %v4550
        %5445 = vmatprep.subr.bf16.mxu0 %v4535
        %5446 = vmatpush2.bf16.msra.mxu0 %v4534
        %5447 = vmatprep.subr.bf16.mxu0 %v4519
        %5448 = vmatpush2.bf16.msra.mxu0 %v4518
        %5449 = vmatprep.subr.bf16.mxu0 %v4503
        %5450 = vmatpush2.bf16.msra.mxu0 %v4502
        %5451 = vmatprep.subr.bf16.mxu0 %v4487
        %5452 = vmatpush2.bf16.msra.mxu0 %v4486
        %5453 = vmatprep.mubr.bf16.mxu0 %v1963
        %5454 = vmatmul.mubr.bf16.gmra.mxu0 %v1962
        %v5455 = vpop.f32.mrf.mxu0
        %v5456 = vadd.f32 %v5413, %v5455
        %v5457 = vpop.f32.mrf.mxu0
        %v5458 = vadd.f32 %v5415, %v5457
        %v5459 = vpop.f32.mrf.mxu0
        %v5460 = vadd.f32 %v5417, %v5459
        %v5461 = vpop.f32.mrf.mxu0
        %v5462 = vadd.f32 %v5419, %v5461
        %5463 = vdwg.mxu0
        %5464 = vmatprep.subr.bf16.mxu0 %v4217
        %5465 = vmatpush1.bf16.msra.mxu0 %v4216
        %5466 = vmatprep.subr.bf16.mxu0 %v4201
        %5467 = vmatpush1.bf16.msra.mxu0 %v4200
        %5468 = vmatprep.subr.bf16.mxu0 %v4185
        %5469 = vmatpush1.bf16.msra.mxu0 %v4184
        %5470 = vmatprep.subr.bf16.mxu0 %v4169
        %5471 = vmatpush1.bf16.msra.mxu0 %v4168
        %5472 = vmatprep.subr.bf16.mxu0 %v4153
        %5473 = vmatpush1.bf16.msra.mxu0 %v4152
        %5474 = vmatprep.subr.bf16.mxu0 %v4137
        %5475 = vmatpush1.bf16.msra.mxu0 %v4136
        %5476 = vmatprep.subr.bf16.mxu0 %v4121
        %5477 = vmatpush1.bf16.msra.mxu0 %v4120
        %5478 = vmatprep.subr.bf16.mxu0 %v4105
        %5479 = vmatpush1.bf16.msra.mxu0 %v4104
        %5480 = vmatprep.subr.bf16.mxu0 %v4345
        %5481 = vmatpush2.bf16.msra.mxu0 %v4344
        %5482 = vmatprep.subr.bf16.mxu0 %v4329
        %5483 = vmatpush2.bf16.msra.mxu0 %v4328
        %5484 = vmatprep.subr.bf16.mxu0 %v4313
        %5485 = vmatpush2.bf16.msra.mxu0 %v4312
        %5486 = vmatprep.subr.bf16.mxu0 %v4297
        %5487 = vmatpush2.bf16.msra.mxu0 %v4296
        %5488 = vmatprep.subr.bf16.mxu0 %v4281
        %5489 = vmatpush2.bf16.msra.mxu0 %v4280
        %5490 = vmatprep.subr.bf16.mxu0 %v4265
        %5491 = vmatpush2.bf16.msra.mxu0 %v4264
        %5492 = vmatprep.subr.bf16.mxu0 %v4249
        %5493 = vmatpush2.bf16.msra.mxu0 %v4248
        %5494 = vmatprep.subr.bf16.mxu0 %v4233
        %5495 = vmatpush2.bf16.msra.mxu0 %v4232
        %5496 = vmatprep.mubr.bf16.mxu0 %v1961
        %5497 = vmatmul.mubr.bf16.gmra.mxu0 %v1960
        %v5498 = vpop.f32.mrf.mxu0
        %v5499 = vadd.f32 %v2515, %v5498
        %v5500 = vpop.f32.mrf.mxu0
        %v5501 = vadd.f32 %v2519, %v5500
        %v5502 = vpop.f32.mrf.mxu0
        %v5503 = vadd.f32 %v2515, %v5502
        %v5504 = vpop.f32.mrf.mxu0
        %v5505 = vadd.f32 %v2519, %v5504
        %5506 = vdwg.mxu0
        %5507 = vmatprep.subr.bf16.mxu0 %v4473
        %5508 = vmatpush1.bf16.msra.mxu0 %v4472
        %5509 = vmatprep.subr.bf16.mxu0 %v4457
        %5510 = vmatpush1.bf16.msra.mxu0 %v4456
        %5511 = vmatprep.subr.bf16.mxu0 %v4441
        %5512 = vmatpush1.bf16.msra.mxu0 %v4440
        %5513 = vmatprep.subr.bf16.mxu0 %v4425
        %5514 = vmatpush1.bf16.msra.mxu0 %v4424
        %5515 = vmatprep.subr.bf16.mxu0 %v4409
        %5516 = vmatpush1.bf16.msra.mxu0 %v4408
        %5517 = vmatprep.subr.bf16.mxu0 %v4393
        %5518 = vmatpush1.bf16.msra.mxu0 %v4392
        %5519 = vmatprep.subr.bf16.mxu0 %v4377
        %5520 = vmatpush1.bf16.msra.mxu0 %v4376
        %5521 = vmatprep.subr.bf16.mxu0 %v4361
        %5522 = vmatpush1.bf16.msra.mxu0 %v4360
        %5523 = vmatprep.subr.bf16.mxu0 %v4601
        %5524 = vmatpush2.bf16.msra.mxu0 %v4600
        %5525 = vmatprep.subr.bf16.mxu0 %v4585
        %5526 = vmatpush2.bf16.msra.mxu0 %v4584
        %5527 = vmatprep.subr.bf16.mxu0 %v4569
        %5528 = vmatpush2.bf16.msra.mxu0 %v4568
        %5529 = vmatprep.subr.bf16.mxu0 %v4553
        %5530 = vmatpush2.bf16.msra.mxu0 %v4552
        %5531 = vmatprep.subr.bf16.mxu0 %v4537
        %5532 = vmatpush2.bf16.msra.mxu0 %v4536
        %5533 = vmatprep.subr.bf16.mxu0 %v4521
        %5534 = vmatpush2.bf16.msra.mxu0 %v4520
        %5535 = vmatprep.subr.bf16.mxu0 %v4505
        %5536 = vmatpush2.bf16.msra.mxu0 %v4504
        %5537 = vmatprep.subr.bf16.mxu0 %v4489
        %5538 = vmatpush2.bf16.msra.mxu0 %v4488
        %5539 = vmatprep.mubr.bf16.mxu0 %v1963
        %5540 = vmatmul.mubr.bf16.gmra.mxu0 %v1962
        %v5541 = vpop.f32.mrf.mxu0
        %v5542 = vadd.f32 %v5499, %v5541
        %v5543 = vpop.f32.mrf.mxu0
        %v5544 = vadd.f32 %v5501, %v5543
        %v5545 = vpop.f32.mrf.mxu0
        %v5546 = vadd.f32 %v5503, %v5545
        %v5547 = vpop.f32.mrf.mxu0
        %v5548 = vadd.f32 %v5505, %v5547
        %5549 = vdwg.mxu0
        %5550 = vmatprep.subr.bf16.mxu0 %v4219
        %5551 = vmatpush1.bf16.msra.mxu0 %v4218
        %5552 = vmatprep.subr.bf16.mxu0 %v4203
        %5553 = vmatpush1.bf16.msra.mxu0 %v4202
        %5554 = vmatprep.subr.bf16.mxu0 %v4187
        %5555 = vmatpush1.bf16.msra.mxu0 %v4186
        %5556 = vmatprep.subr.bf16.mxu0 %v4171
        %5557 = vmatpush1.bf16.msra.mxu0 %v4170
        %5558 = vmatprep.subr.bf16.mxu0 %v4155
        %5559 = vmatpush1.bf16.msra.mxu0 %v4154
        %5560 = vmatprep.subr.bf16.mxu0 %v4139
        %5561 = vmatpush1.bf16.msra.mxu0 %v4138
        %5562 = vmatprep.subr.bf16.mxu0 %v4123
        %5563 = vmatpush1.bf16.msra.mxu0 %v4122
        %5564 = vmatprep.subr.bf16.mxu0 %v4107
        %5565 = vmatpush1.bf16.msra.mxu0 %v4106
        %5566 = vmatprep.subr.bf16.mxu0 %v4347
        %5567 = vmatpush2.bf16.msra.mxu0 %v4346
        %5568 = vmatprep.subr.bf16.mxu0 %v4331
        %5569 = vmatpush2.bf16.msra.mxu0 %v4330
        %5570 = vmatprep.subr.bf16.mxu0 %v4315
        %5571 = vmatpush2.bf16.msra.mxu0 %v4314
        %5572 = vmatprep.subr.bf16.mxu0 %v4299
        %5573 = vmatpush2.bf16.msra.mxu0 %v4298
        %5574 = vmatprep.subr.bf16.mxu0 %v4283
        %5575 = vmatpush2.bf16.msra.mxu0 %v4282
        %5576 = vmatprep.subr.bf16.mxu0 %v4267
        %5577 = vmatpush2.bf16.msra.mxu0 %v4266
        %5578 = vmatprep.subr.bf16.mxu0 %v4251
        %5579 = vmatpush2.bf16.msra.mxu0 %v4250
        %5580 = vmatprep.subr.bf16.mxu0 %v4235
        %5581 = vmatpush2.bf16.msra.mxu0 %v4234
        %5582 = vmatprep.mubr.bf16.mxu0 %v1961
        %5583 = vmatmul.mubr.bf16.gmra.mxu0 %v1960
        %v5584 = vpop.f32.mrf.mxu0
        %v5585 = vadd.f32 %v2523, %v5584
        %v5586 = vpop.f32.mrf.mxu0
        %v5587 = vadd.f32 %v2527, %v5586
        %v5588 = vpop.f32.mrf.mxu0
        %v5589 = vadd.f32 %v2523, %v5588
        %v5590 = vpop.f32.mrf.mxu0
        %v5591 = vadd.f32 %v2527, %v5590
        %5592 = vdwg.mxu0
        %5593 = vmatprep.subr.bf16.mxu0 %v4475
        %5594 = vmatpush1.bf16.msra.mxu0 %v4474
        %5595 = vmatprep.subr.bf16.mxu0 %v4459
        %5596 = vmatpush1.bf16.msra.mxu0 %v4458
        %5597 = vmatprep.subr.bf16.mxu0 %v4443
        %5598 = vmatpush1.bf16.msra.mxu0 %v4442
        %5599 = vmatprep.subr.bf16.mxu0 %v4427
        %5600 = vmatpush1.bf16.msra.mxu0 %v4426
        %5601 = vmatprep.subr.bf16.mxu0 %v4411
        %5602 = vmatpush1.bf16.msra.mxu0 %v4410
        %5603 = vmatprep.subr.bf16.mxu0 %v4395
        %5604 = vmatpush1.bf16.msra.mxu0 %v4394
        %5605 = vmatprep.subr.bf16.mxu0 %v4379
        %5606 = vmatpush1.bf16.msra.mxu0 %v4378
        %5607 = vmatprep.subr.bf16.mxu0 %v4363
        %5608 = vmatpush1.bf16.msra.mxu0 %v4362
        %5609 = vmatprep.subr.bf16.mxu0 %v4603
        %5610 = vmatpush2.bf16.msra.mxu0 %v4602
        %5611 = vmatprep.subr.bf16.mxu0 %v4587
        %5612 = vmatpush2.bf16.msra.mxu0 %v4586
        %5613 = vmatprep.subr.bf16.mxu0 %v4571
        %5614 = vmatpush2.bf16.msra.mxu0 %v4570
        %5615 = vmatprep.subr.bf16.mxu0 %v4555
        %5616 = vmatpush2.bf16.msra.mxu0 %v4554
        %5617 = vmatprep.subr.bf16.mxu0 %v4539
        %5618 = vmatpush2.bf16.msra.mxu0 %v4538
        %5619 = vmatprep.subr.bf16.mxu0 %v4523
        %5620 = vmatpush2.bf16.msra.mxu0 %v4522
        %5621 = vmatprep.subr.bf16.mxu0 %v4507
        %5622 = vmatpush2.bf16.msra.mxu0 %v4506
        %5623 = vmatprep.subr.bf16.mxu0 %v4491
        %5624 = vmatpush2.bf16.msra.mxu0 %v4490
        %5625 = vmatprep.mubr.bf16.mxu0 %v1963
        %5626 = vmatmul.mubr.bf16.gmra.mxu0 %v1962
        %v5627 = vpop.f32.mrf.mxu0
        %v5628 = vadd.f32 %v5585, %v5627
        %v5629 = vpop.f32.mrf.mxu0
        %v5630 = vadd.f32 %v5587, %v5629
        %v5631 = vpop.f32.mrf.mxu0
        %v5632 = vadd.f32 %v5589, %v5631
        %v5633 = vpop.f32.mrf.mxu0
        %v5634 = vadd.f32 %v5591, %v5633
        %5635 = vdwg.mxu0
        %5636 = vmatprep.subr.bf16.mxu0 %v4221
        %5637 = vmatpush1.bf16.msra.mxu0 %v4220
        %5638 = vmatprep.subr.bf16.mxu0 %v4205
        %5639 = vmatpush1.bf16.msra.mxu0 %v4204
        %5640 = vmatprep.subr.bf16.mxu0 %v4189
        %5641 = vmatpush1.bf16.msra.mxu0 %v4188
        %5642 = vmatprep.subr.bf16.mxu0 %v4173
        %5643 = vmatpush1.bf16.msra.mxu0 %v4172
        %5644 = vmatprep.subr.bf16.mxu0 %v4157
        %5645 = vmatpush1.bf16.msra.mxu0 %v4156
        %5646 = vmatprep.subr.bf16.mxu0 %v4141
        %5647 = vmatpush1.bf16.msra.mxu0 %v4140
        %5648 = vmatprep.subr.bf16.mxu0 %v4125
        %5649 = vmatpush1.bf16.msra.mxu0 %v4124
        %5650 = vmatprep.subr.bf16.mxu0 %v4109
        %5651 = vmatpush1.bf16.msra.mxu0 %v4108
        %5652 = vmatprep.subr.bf16.mxu0 %v4349
        %5653 = vmatpush2.bf16.msra.mxu0 %v4348
        %5654 = vmatprep.subr.bf16.mxu0 %v4333
        %5655 = vmatpush2.bf16.msra.mxu0 %v4332
        %5656 = vmatprep.subr.bf16.mxu0 %v4317
        %5657 = vmatpush2.bf16.msra.mxu0 %v4316
        %5658 = vmatprep.subr.bf16.mxu0 %v4301
        %5659 = vmatpush2.bf16.msra.mxu0 %v4300
        %5660 = vmatprep.subr.bf16.mxu0 %v4285
        %5661 = vmatpush2.bf16.msra.mxu0 %v4284
        %5662 = vmatprep.subr.bf16.mxu0 %v4269
        %5663 = vmatpush2.bf16.msra.mxu0 %v4268
        %5664 = vmatprep.subr.bf16.mxu0 %v4253
        %5665 = vmatpush2.bf16.msra.mxu0 %v4252
        %5666 = vmatprep.subr.bf16.mxu0 %v4237
        %5667 = vmatpush2.bf16.msra.mxu0 %v4236
        %5668 = vmatprep.mubr.bf16.mxu0 %v1961
        %5669 = vmatmul.mubr.bf16.gmra.mxu0 %v1960
        %v5670 = vpop.f32.mrf.mxu0
        %v5671 = vadd.f32 %v2531, %v5670
        %v5672 = vpop.f32.mrf.mxu0
        %v5673 = vadd.f32 %v2535, %v5672
        %v5674 = vpop.f32.mrf.mxu0
        %v5675 = vadd.f32 %v2531, %v5674
        %v5676 = vpop.f32.mrf.mxu0
        %v5677 = vadd.f32 %v2535, %v5676
        %5678 = vdwg.mxu0
        %5679 = vmatprep.subr.bf16.mxu0 %v4477
        %5680 = vmatpush1.bf16.msra.mxu0 %v4476
        %5681 = vmatprep.subr.bf16.mxu0 %v4461
        %5682 = vmatpush1.bf16.msra.mxu0 %v4460
        %5683 = vmatprep.subr.bf16.mxu0 %v4445
        %5684 = vmatpush1.bf16.msra.mxu0 %v4444
        %5685 = vmatprep.subr.bf16.mxu0 %v4429
        %5686 = vmatpush1.bf16.msra.mxu0 %v4428
        %5687 = vmatprep.subr.bf16.mxu0 %v4413
        %5688 = vmatpush1.bf16.msra.mxu0 %v4412
        %5689 = vmatprep.subr.bf16.mxu0 %v4397
        %5690 = vmatpush1.bf16.msra.mxu0 %v4396
        %5691 = vmatprep.subr.bf16.mxu0 %v4381
        %5692 = vmatpush1.bf16.msra.mxu0 %v4380
        %5693 = vmatprep.subr.bf16.mxu0 %v4365
        %5694 = vmatpush1.bf16.msra.mxu0 %v4364
        %5695 = vmatprep.subr.bf16.mxu0 %v4605
        %5696 = vmatpush2.bf16.msra.mxu0 %v4604
        %5697 = vmatprep.subr.bf16.mxu0 %v4589
        %5698 = vmatpush2.bf16.msra.mxu0 %v4588
        %5699 = vmatprep.subr.bf16.mxu0 %v4573
        %5700 = vmatpush2.bf16.msra.mxu0 %v4572
        %5701 = vmatprep.subr.bf16.mxu0 %v4557
        %5702 = vmatpush2.bf16.msra.mxu0 %v4556
        %5703 = vmatprep.subr.bf16.mxu0 %v4541
        %5704 = vmatpush2.bf16.msra.mxu0 %v4540
        %5705 = vmatprep.subr.bf16.mxu0 %v4525
        %5706 = vmatpush2.bf16.msra.mxu0 %v4524
        %5707 = vmatprep.subr.bf16.mxu0 %v4509
        %5708 = vmatpush2.bf16.msra.mxu0 %v4508
        %5709 = vmatprep.subr.bf16.mxu0 %v4493
        %5710 = vmatpush2.bf16.msra.mxu0 %v4492
        %5711 = vmatprep.mubr.bf16.mxu0 %v1963
        %5712 = vmatmul.mubr.bf16.gmra.mxu0 %v1962
        %v5713 = vpop.f32.mrf.mxu0
        %v5714 = vadd.f32 %v5671, %v5713
        %v5715 = vpop.f32.mrf.mxu0
        %v5716 = vadd.f32 %v5673, %v5715
        %v5717 = vpop.f32.mrf.mxu0
        %v5718 = vadd.f32 %v5675, %v5717
        %v5719 = vpop.f32.mrf.mxu0
        %v5720 = vadd.f32 %v5677, %v5719
        %5721 = vdwg.mxu0
        %5722 = vmatprep.subr.bf16.mxu0 %v4223
        %5723 = vmatpush1.bf16.msra.mxu0 %v4222
        %5724 = vmatprep.subr.bf16.mxu0 %v4207
        %5725 = vmatpush1.bf16.msra.mxu0 %v4206
        %5726 = vmatprep.subr.bf16.mxu0 %v4191
        %5727 = vmatpush1.bf16.msra.mxu0 %v4190
        %5728 = vmatprep.subr.bf16.mxu0 %v4175
        %5729 = vmatpush1.bf16.msra.mxu0 %v4174
        %5730 = vmatprep.subr.bf16.mxu0 %v4159
        %5731 = vmatpush1.bf16.msra.mxu0 %v4158
        %5732 = vmatprep.subr.bf16.mxu0 %v4143
        %5733 = vmatpush1.bf16.msra.mxu0 %v4142
        %5734 = vmatprep.subr.bf16.mxu0 %v4127
        %5735 = vmatpush1.bf16.msra.mxu0 %v4126
        %5736 = vmatprep.subr.bf16.mxu0 %v4111
        %5737 = vmatpush1.bf16.msra.mxu0 %v4110
        %5738 = vmatprep.subr.bf16.mxu0 %v4351
        %5739 = vmatpush2.bf16.msra.mxu0 %v4350
        %5740 = vmatprep.subr.bf16.mxu0 %v4335
        %5741 = vmatpush2.bf16.msra.mxu0 %v4334
        %5742 = vmatprep.subr.bf16.mxu0 %v4319
        %5743 = vmatpush2.bf16.msra.mxu0 %v4318
        %5744 = vmatprep.subr.bf16.mxu0 %v4303
        %5745 = vmatpush2.bf16.msra.mxu0 %v4302
        %5746 = vmatprep.subr.bf16.mxu0 %v4287
        %5747 = vmatpush2.bf16.msra.mxu0 %v4286
        %5748 = vmatprep.subr.bf16.mxu0 %v4271
        %5749 = vmatpush2.bf16.msra.mxu0 %v4270
        %5750 = vmatprep.subr.bf16.mxu0 %v4255
        %5751 = vmatpush2.bf16.msra.mxu0 %v4254
        %5752 = vmatprep.subr.bf16.mxu0 %v4239
        %5753 = vmatpush2.bf16.msra.mxu0 %v4238
        %5754 = vmatprep.mubr.bf16.mxu0 %v1961
        %5755 = vmatmul.mubr.bf16.gmra.mxu0 %v1960
        %v5756 = vpop.f32.mrf.mxu0
        %v5757 = vadd.f32 %v2539, %v5756
        %v5758 = vpop.f32.mrf.mxu0
        %v5759 = vadd.f32 %v2543, %v5758
        %v5760 = vpop.f32.mrf.mxu0
        %v5761 = vadd.f32 %v2539, %v5760
        %v5762 = vpop.f32.mrf.mxu0
        %v5763 = vadd.f32 %v2543, %v5762
        %5764 = vdwg.mxu0
        %5765 = vmatprep.subr.bf16.mxu0 %v4479
        %5766 = vmatpush1.bf16.msra.mxu0 %v4478
        %5767 = vmatprep.subr.bf16.mxu0 %v4463
        %5768 = vmatpush1.bf16.msra.mxu0 %v4462
        %5769 = vmatprep.subr.bf16.mxu0 %v4447
        %5770 = vmatpush1.bf16.msra.mxu0 %v4446
        %5771 = vmatprep.subr.bf16.mxu0 %v4431
        %5772 = vmatpush1.bf16.msra.mxu0 %v4430
        %5773 = vmatprep.subr.bf16.mxu0 %v4415
        %5774 = vmatpush1.bf16.msra.mxu0 %v4414
        %5775 = vmatprep.subr.bf16.mxu0 %v4399
        %5776 = vmatpush1.bf16.msra.mxu0 %v4398
        %5777 = vmatprep.subr.bf16.mxu0 %v4383
        %5778 = vmatpush1.bf16.msra.mxu0 %v4382
        %5779 = vmatprep.subr.bf16.mxu0 %v4367
        %5780 = vmatpush1.bf16.msra.mxu0 %v4366
        %5781 = vmatprep.subr.bf16.mxu0 %v4607
        %5782 = vmatpush2.bf16.msra.mxu0 %v4606
        %5783 = vmatprep.subr.bf16.mxu0 %v4591
        %5784 = vmatpush2.bf16.msra.mxu0 %v4590
        %5785 = vmatprep.subr.bf16.mxu0 %v4575
        %5786 = vmatpush2.bf16.msra.mxu0 %v4574
        %5787 = vmatprep.subr.bf16.mxu0 %v4559
        %5788 = vmatpush2.bf16.msra.mxu0 %v4558
        %5789 = vmatprep.subr.bf16.mxu0 %v4543
        %5790 = vmatpush2.bf16.msra.mxu0 %v4542
        %5791 = vmatprep.subr.bf16.mxu0 %v4527
        %5792 = vmatpush2.bf16.msra.mxu0 %v4526
        %5793 = vmatprep.subr.bf16.mxu0 %v4511
        %5794 = vmatpush2.bf16.msra.mxu0 %v4510
        %5795 = vmatprep.subr.bf16.mxu0 %v4495
        %5796 = vmatpush2.bf16.msra.mxu0 %v4494
        %5797 = vmatprep.mubr.bf16.mxu0 %v1963
        %5798 = vmatmul.mubr.bf16.gmra.mxu0 %v1962
        %v5799 = vpop.f32.mrf.mxu0
        %v5800 = vadd.f32 %v5757, %v5799
        %v5801 = vpop.f32.mrf.mxu0
        %v5802 = vadd.f32 %v5759, %v5801
        %v5803 = vpop.f32.mrf.mxu0
        %v5804 = vadd.f32 %v5761, %v5803
        %v5805 = vpop.f32.mrf.mxu0
        %v5806 = vadd.f32 %v5763, %v5805
        %5807 = vdwg.mxu0
        %v5808 = vtanh.pop %v5198
        %v5809 = vtanh.pop %v5200
        %v5810 = vtanh.pop %v5284
        %v5811 = vtanh.pop %v5286
        %v5812 = vtanh.pop %v5370
        %v5813 = vtanh.pop %v5372
        %v5814 = vtanh.pop %v5456
        %v5815 = vtanh.pop %v5458
        %v5816 = vtanh.pop %v5542
        %v5817 = vtanh.pop %v5544
        %v5818 = vtanh.pop %v5628
        %v5819 = vtanh.pop %v5630
        %v5820 = vtanh.pop %v5714
        %v5821 = vtanh.pop %v5716
        %v5822 = vtanh.pop %v5800
        %v5823 = vtanh.pop %v5802
        %v5824 = vtanh.pop %v5202
        %v5825 = vtanh.pop %v5204
        %v5826 = vtanh.pop %v5288
        %v5827 = vtanh.pop %v5290
        %v5828 = vtanh.pop %v5374
        %v5829 = vtanh.pop %v5376
        %v5830 = vtanh.pop %v5460
        %v5831 = vtanh.pop %v5462
        %v5832 = vtanh.pop %v5546
        %v5833 = vtanh.pop %v5548
        %v5834 = vtanh.pop %v5632
        %v5835 = vtanh.pop %v5634
        %v5836 = vtanh.pop %v5718
        %v5837 = vtanh.pop %v5720
        %v5838 = vtanh.pop %v5804
        %v5839 = vtanh.pop %v5806
        %5840 = vst [vmem:[%s514] sm:$0xff] %v5808
        %5841 = vst [vmem:[%s514 + $0x8] sm:$0xff] %v5809
        %5842 = vst [vmem:[%s514 + $0x10] sm:$0xff] %v5810
        %5843 = vst [vmem:[%s514 + $0x18] sm:$0xff] %v5811
        %5844 = vst [vmem:[%s514 + $0x20] sm:$0xff] %v5812
        %5845 = vst [vmem:[%s514 + $0x28] sm:$0xff] %v5813
        %5846 = vst [vmem:[%s514 + $0x30] sm:$0xff] %v5814
        %5847 = vst [vmem:[%s514 + $0x38] sm:$0xff] %v5815
        %5848 = vst [vmem:[%s514 + $0x40] sm:$0xff] %v5816
        %5849 = vst [vmem:[%s514 + $0x48] sm:$0xff] %v5817
        %5850 = vst [vmem:[%s514 + $0x50] sm:$0xff] %v5818
        %5851 = vst [vmem:[%s514 + $0x58] sm:$0xff] %v5819
        %5852 = vst [vmem:[%s514 + $0x60] sm:$0xff] %v5820
        %5853 = vst [vmem:[%s514 + $0x68] sm:$0xff] %v5821
        %5854 = vst [vmem:[%s514 + $0x70] sm:$0xff] %v5822
        %5855 = vst [vmem:[%s514 + $0x78] sm:$0xff] %v5823
        %5856 = vst [vmem:[%s514 + $0x80] sm:$0xff] %v5824
        %5857 = vst [vmem:[%s514 + $0x88] sm:$0xff] %v5825
        %5858 = vst [vmem:[%s514 + $0x90] sm:$0xff] %v5826
        %5859 = vst [vmem:[%s514 + $0x98] sm:$0xff] %v5827
        %5860 = vst [vmem:[%s514 + $0xa0] sm:$0xff] %v5828
        %5861 = vst [vmem:[%s514 + $0xa8] sm:$0xff] %v5829
        %5862 = vst [vmem:[%s514 + $0xb0] sm:$0xff] %v5830
        %5863 = vst [vmem:[%s514 + $0xb8] sm:$0xff] %v5831
        %5864 = vst [vmem:[%s514 + $0xc0] sm:$0xff] %v5832
        %5865 = vst [vmem:[%s514 + $0xc8] sm:$0xff] %v5833
        %5866 = vst [vmem:[%s514 + $0xd0] sm:$0xff] %v5834
        %5867 = vst [vmem:[%s514 + $0xd8] sm:$0xff] %v5835
        %5868 = vst [vmem:[%s514 + $0xe0] sm:$0xff] %v5836
        %5869 = vst [vmem:[%s514 + $0xe8] sm:$0xff] %v5837
        %5870 = vst [vmem:[%s514 + $0xf0] sm:$0xff] %v5838
        %5871 = vst [vmem:[%s514 + $0xf8] sm:$0xff] %v5839
        %s5872 = sand.u32 %s261, 1
        %s5873 = scalar_lea.sflag [#allocation4], %s5872
        %s5874 = sand.u32 %s261, 1
        %s5875 = smul.addr %s5874, 256
        %s5876 = scalar_lea.vmem [#allocation17], %s5875
        // Predicated region
        $region93: #{tpu_custom_call.1} parent=55 // pred_check
          %p5877 = pneg %p271
        $region94: #{tpu_custom_call.1} parent=55 // pred_check_branch
          %5879 = sbr.rel (%p5877) target = $region96
        $region95: #{tpu_custom_call.1} parent=55 // pred_region
          %s5880 = smul.u32 2, %s35
          %s5881 = smul.u32 16, %s34
          %s5883 = ssub.s32 4096, 4096
          %5884 = vsyncadd %s5873, %s5883
          %s5885 = smul.addr %s5880, 32
          %s5886 = sadd.s32 %s5881, %s5885
          %s5887 = smul.addr %s5886, 128
          %s5888 = scalar_lea.hbm %s9, %s5887
          %s5889 = sshll.u32 %s5876, 4
          %s5890 = int_to_ptr.vmem [resolvable:$true] %s5889
          %5895 = dma.vmem_to_hbm [thread:$0]  %s5890, 4096, %s5888, %s5873, 2048, 4096, 128
        $region96: #{tpu_custom_call.1} parent=55 // pred_fallthru
          _
      $region56: #{tpu_custom_call.1} parent=5 // pred_fallthru
        _
      %p5896 = scmp.le.s32.totalorder 2, %s25
      // Predicated region
      $region97: #{tpu_custom_call.1} parent=5 // pred_check
        %p5897 = pneg %p5896
      $region98: #{tpu_custom_call.1} parent=5 // pred_check_branch
        %5899 = sbr.rel (%p5897) target = $region100
      $region99: #{tpu_custom_call.1} parent=5 // pred_region
        %s5900 = ssub.s32 %s25, 2
        // Predicated region
        $region101: #{tpu_custom_call.1} parent=99 // pred_check
          %p5901 = pneg %p277
        $region102: #{tpu_custom_call.1} parent=99 // pred_check_branch
          %5903 = sbr.rel (%p5901) target = $region104
        $region103: #{tpu_custom_call.1} parent=99 // pred_region
          %s5904 = sand.u32 %s262, 1
          %s5905 = scalar_lea.sflag [#allocation4], %s5904
          %s5906 = sand.u32 %s262, 1
          %s5907 = smul.addr %s5906, 256
          %s5908 = scalar_lea.vmem [#allocation17], %s5907
          %5909 = dma.done %s5905, 4096
        $region104: #{tpu_custom_call.1} parent=99 // pred_fallthru
          _
      $region100: #{tpu_custom_call.1} parent=5 // pred_fallthru
        _
    $region6: #{tpu_custom_call.1} parent=1 // loop_footer
      %s29 = sadd.s32 1, %s25
    $region7: #{tpu_custom_call.1} parent=1 // loop_footer_branch
      %24 = sbr.rel target = $region3
    $region8: #{tpu_custom_call.1} parent=1 // loop_exit
      _
    %5910 = vsyncpa [#allocation3], 1
    %s5911 = scalar_lea.sflag [#allocation3], 1
    %5912 = vsyncpa %s5911, 1
    %5913 = vsyncpa [#allocation6], 1
    %5914 = vsyncpa [#allocation9], 1
    %5915 = vsyncpa [#allocation12], 1
    %5916 = vsyncpa [#allocation15], 1
    %s5917 = scalar_lea.sflag [#allocation15], 1
    %5918 = vsyncpa %s5917, 1
    %5919 = vsyncpa [#allocation4], 1
    %s5920 = scalar_lea.sflag [#allocation4], 1
    %5921 = vsyncpa %s5920, 1

</llo_original>
